<compile_context>
chip_gen: v5e
topology: v5e:2x2
jax: 0.10.0
libtpu: 0.0.40
codegen_flags: <defaults>
</compile_context>

<pallas_src>
import jax
import jax.numpy as jnp
from jax.experimental import pallas as pl
from jax.experimental.pallas import tpu as pltpu

LANE = 128


def _round_up(x, m):
    return (x + m - 1) // m * m


def _vmem_capacity_bytes():
    try:
        return int(pltpu.get_tpu_info().vmem_capacity_bytes)
    except Exception:
        return 64 << 20  # conservative (v7x-sized) fallback


_VMEM_CAP = _vmem_capacity_bytes()
_VMEM_BUDGET = max(int(0.45 * _VMEM_CAP), 8 << 20)   # per-kernel footprint target


def _vmem_limit(footprint):
    # Explicit scoped-VMEM limit: headroom over the accounted footprint, never above
    # ~90% of the physical per-core capacity (v5e/v6e 128 MiB, v7x 64 MiB).
    return int(min(int(0.9 * _VMEM_CAP), max(32 << 20, int(1.25 * footprint) + (8 << 20))))


# --------------------- shared tiled matmul + bias kernel ----------------------

def _matmul_bias_kernel(x_ref, w_ref, b_ref, o_ref, acc_ref):
    @pl.when(pl.program_id(2) == 0)
    def _():
        acc_ref[...] = jnp.zeros_like(acc_ref)

    # bf16 x bf16 -> f32 accumulation on the MXU; LHS arrives already bf16 from upstream
    # (no per-k-tile casts burning VPU slots / LHS HBM bytes).
    acc_ref[...] += jnp.dot(x_ref[...], w_ref[...], preferred_element_type=jnp.float32)

    @pl.when(pl.program_id(2) == pl.num_programs(2) - 1)
    def _():
        o_ref[...] = (acc_ref[...] + b_ref[...]).astype(o_ref.dtype)


def _matmul_tiles(M, K, N, out_bytes, budget):
    """Largest lane/sublane-dense tiles that fit the VMEM budget.

    Preference: big tm (512-class tiles ~85% of HBM roofline), then a fully resident
    weight (tk == K -> constant weight index map, DMA'd once for the whole grid), then
    wide 256-aligned tn (keeps the v6e/v7x 256x256 MXU fed, lane-dense stores).
    """
    def footprint(tm, tn, tk):
        return (2 * tm * tk * 2            # bf16 LHS tile, double buffered
                + 2 * tk * tn * 2          # bf16 weight tile, double buffered
                + 2 * tn * 4               # f32 bias row, double buffered
                + 2 * tm * tn * out_bytes  # output tile, double buffered
                + tm * tn * 4)             # f32 accumulator scratch

    tm_cands = [c for c in (512, 256, 128, 64, 32, 16) if M % c == 0]
    tn_cands = [c for c in dict.fromkeys((N, 2048, 1536, 1024, 768, 512, 384, 256, 128))
                if N % c == 0]
    tk_cands = [c for c in dict.fromkeys((K, 2048, 1024, 512, 256, 128)) if K % c == 0]

    best = None
    for tm in tm_cands:
        for tn in tn_cands:
            for tk in tk_cands:
                fp = footprint(tm, tn, tk)
                if fp > budget:
                    continue
                key = (min(tm, 512), tk == K, tn, tk)
                if best is None or key > best[0]:
                    best = (key, (tm, tn, tk, fp))
    if best is None:  # degenerate fallback: smallest legal tiles
        tm, tn, tk = tm_cands[-1], tn_cands[-1], tk_cands[-1]
        return tm, tn, tk, footprint(tm, tn, tk)
    return best[1]


def matmul_bias(x, w_t, b, out_dtype=jnp.float32):
    """(M, K) bf16 @ (K, N) bf16 + (1, N) f32 -> (M, N) out_dtype, f32 accumulation."""
    if x.dtype != jnp.bfloat16:
        x = x.astype(jnp.bfloat16)        # one-time upstream cast (normally already bf16)
    M, K = x.shape
    N = w_t.shape[1]
    # Guard awkward M = S*B: pad rows to a sublane-friendly multiple instead of letting
    # the block fall back to one enormous full-M block.
    M_p = _round_up(M, 16)
    if M_p != M:
        x = jnp.pad(x, ((0, M_p - M), (0, 0)))
    out_bytes = jnp.dtype(out_dtype).itemsize
    tm, tn, tk, fp = _matmul_tiles(M_p, K, N, out_bytes, _VMEM_BUDGET)
    grid = (M_p // tm, N // tn, K // tk)
    out = pl.pallas_call(
        _matmul_bias_kernel,
        out_shape=jax.ShapeDtypeStruct((M_p, N), out_dtype),
        grid=grid,
        in_specs=[
            pl.BlockSpec((tm, tk), lambda i, j, k: (i, k)),
            pl.BlockSpec((tk, tn), lambda i, j, k: (k, j)),
            pl.BlockSpec((1, tn), lambda i, j, k: (0, j)),
        ],
        out_specs=pl.BlockSpec((tm, tn), lambda i, j, k: (i, j)),
        scratch_shapes=[pltpu.VMEM((tm, tn), jnp.float32)],
        compiler_params=pltpu.CompilerParams(
            dimension_semantics=("parallel", "parallel", "arbitrary"),
            vmem_limit_bytes=_vmem_limit(fp)),
    )(x, w_t, b)
    return out[:M] if M_p != M else out


# --------------------------- GRU recurrence kernel ----------------------------

def _sigmoid_tanh(x):
    # sigmoid(x) = 0.5 * (tanh(x/2) + 1): one EUP push instead of exp + reciprocal.
    return 0.5 * jnp.tanh(0.5 * x) + 0.5


def _gru_recurrence_kernel(gi_ref, h0_ref, w_hh_ref, b_hn_ref, y_ref, hfin_ref, h_scratch):
    # gi_ref:    (T_BLK, TB, 3*Dp) bf16  hoisted x@W_ih + b_ih (+ b_hr, b_hz folded)
    # h0_ref:    (TB, Dp)           f32  initial hidden for this batch tile
    # w_hh_ref:  (Dp, 3*Dp)         bf16 VMEM-resident hidden-to-hidden weights (r, z, n)
    # b_hn_ref:  (1, Dp)            f32  only the n-gate hidden bias stays in the loop
    # y_ref:     (T_BLK, TB, Dp)    bf16 per-step hidden output (next layer's LHS)
    # hfin_ref:  (TB, Dp)           f32  final hidden state of the layer (h_n)
    # h_scratch: (TB, Dp)           f32  hidden carried across time blocks
    @pl.when(pl.program_id(1) == 0)
    def _():
        h_scratch[...] = h0_ref[...]

    dp = h_scratch.shape[-1]
    t_blk = y_ref.shape[0]

    def step(tt, h):
        gi = gi_ref[tt]                                              # (TB, 3*Dp) bf16
        gh = jnp.dot(h.astype(jnp.bfloat16), w_hh_ref[...],
                     preferred_element_type=jnp.float32)             # (TB, 3*Dp) f32
        # bf16 gi promotes to f32 at the adds.
        r = _sigmoid_tanh(gi[:, 0:dp] + gh[:, 0:dp])
        z = _sigmoid_tanh(gi[:, dp:2 * dp] + gh[:, dp:2 * dp])
        n = jnp.tanh(gi[:, 2 * dp:] + r * (gh[:, 2 * dp:] + b_hn_ref[...]))
        h_new = (1.0 - z) * n + z * h
        y_ref[tt] = h_new.astype(jnp.bfloat16)
        return h_new

    h_final = jax.lax.fori_loop(0, t_blk, step, h_scratch[...], unroll=True)
    h_scratch[...] = h_final

    @pl.when(pl.program_id(1) == pl.num_programs(1) - 1)
    def _():
        hfin_ref[...] = h_final


def _gru_tiles(S, B, dp, budget):
    """Explicit VMEM accounting for the recurrence kernel (generation-safe tiling)."""
    G = 3 * dp

    def footprint(t_blk, tb):
        return (2 * t_blk * tb * G * 2       # bf16 gi block, double buffered
                + 2 * t_blk * tb * dp * 2    # bf16 y block, double buffered
                + 2 * tb * dp * 4            # f32 h0 tile, double buffered
                + 2 * tb * dp * 4            # f32 h_final tile, double buffered
                + dp * G * 2                 # W_hh, VMEM resident single copy
                + dp * 4                     # b_hn
                + tb * dp * 4)               # f32 hidden-carry scratch

    tb_cands = [c for c in (128, 64, 32, 16, 8) if B % c == 0]
    if B >= 16:
        # keep >=2 batch tiles so the only parallel axis can use both v7x TensorCores
        capped = [c for c in tb_cands if c <= B // 2]
        tb_cands = capped or tb_cands
    if not tb_cands:
        tb_cands = [B]                       # tiny batch: single full-batch tile (legal)
    t_cands = [c for c in (8, 4, 2, 1) if S % c == 0]   # 8 already amortizes ~0.35us/step

    for t_blk in t_cands:
        for tb in tb_cands:
            fp = footprint(t_blk, tb)
            if fp <= budget:
                return t_blk, tb, fp
    t_blk, tb = t_cands[-1], tb_cands[-1]
    return t_blk, tb, footprint(t_blk, tb)


def gru_layer(gi_seq, h0_p, w_hh_t, b_hn):
    """Serial GRU recurrence over pre-computed input projections.

    gi_seq: (S, B, 3*Dp) bf16; h0_p: (B, Dp) f32; w_hh_t: (Dp, 3*Dp) bf16; b_hn: (1, Dp) f32.
    Returns (y (S, B, Dp) bf16, h_final (B, Dp) f32).
    """
    S, B, G = gi_seq.shape
    dp = G // 3
    t_blk, tb, fp = _gru_tiles(S, B, dp, _VMEM_BUDGET)
    grid = (B // tb, S // t_blk)
    return pl.pallas_call(
        _gru_recurrence_kernel,
        out_shape=(jax.ShapeDtypeStruct((S, B, dp), jnp.bfloat16),
                   jax.ShapeDtypeStruct((B, dp), jnp.float32)),
        grid=grid,
        in_specs=[
            pl.BlockSpec((t_blk, tb, G), lambda b, t: (t, b, 0)),
            pl.BlockSpec((tb, dp), lambda b, t: (b, 0)),
            # Loop-invariant operands: whole-array VMEM residents (single copy,
            # no double-buffer allocation, DMA'd once for the whole grid).
            pl.BlockSpec(memory_space=pltpu.MemorySpace.VMEM),
            pl.BlockSpec(memory_space=pltpu.MemorySpace.VMEM),
        ],
        out_specs=(
            pl.BlockSpec((t_blk, tb, dp), lambda b, t: (t, b, 0)),
            pl.BlockSpec((tb, dp), lambda b, t: (b, 0)),
        ),
        scratch_shapes=[pltpu.VMEM((tb, dp), jnp.float32)],
        compiler_params=pltpu.CompilerParams(
            dimension_semantics=("parallel", "arbitrary"),   # time is a true recurrence
            vmem_limit_bytes=_vmem_limit(fp)),
    )(gi_seq, h0_p, w_hh_t, b_hn)


# ------------------------------ Parameters ------------------------------------

def init_params(key, ntoken, d_model, num_layers):
    """Raw f32 parameters at true (unpadded) sizes, PyTorch-like init."""
    ks = jax.random.split(key, 3 + 4 * num_layers)
    k = 1.0 / jnp.sqrt(d_model)
    params = {
        "embedding": jax.random.normal(ks[0], (ntoken, d_model), jnp.float32),
        "pred_w_t": jax.random.uniform(ks[1], (d_model, ntoken), jnp.float32, -k, k),
        "pred_b": jax.random.uniform(ks[2], (ntoken,), jnp.float32, -k, k),
        "gru": [],
    }
    for l in range(num_layers):
        kw = ks[3 + 4 * l: 3 + 4 * (l + 1)]
        params["gru"].append({
            # stored pre-transposed: (input_size, 3*hidden), gate order (r, z, n)
            "w_ih_t": jax.random.uniform(kw[0], (d_model, 3 * d_model), jnp.float32, -k, k),
            "w_hh_t": jax.random.uniform(kw[1], (d_model, 3 * d_model), jnp.float32, -k, k),
            "b_ih": jax.random.uniform(kw[2], (3 * d_model,), jnp.float32, -k, k),
            "b_hh": jax.random.uniform(kw[3], (3 * d_model,), jnp.float32, -k, k),
        })
    return params


def _pad_gate_weight(w_t, d, dp):
    """(in, 3*d) -> (round_up(in,128), 3*dp); each gate block zero-padded to dp lanes."""
    in_dim = w_t.shape[0]
    in_p = _round_up(in_dim, LANE)
    blocks = []
    for g in range(3):
        blk = w_t[:, g * d:(g + 1) * d]
        blocks.append(jnp.pad(blk, ((0, in_p - in_dim), (0, dp - d))))
    return jnp.concatenate(blocks, axis=1)


def _pad_gate_bias(b, d, dp):
    return jnp.concatenate([jnp.pad(b[g * d:(g + 1) * d], (0, dp - d)) for g in range(3)])


def prepare_params(raw, d_model, ntoken):
    """Lane-align to 128, fold r/z hidden biases into the hoisted bias, cast to bf16."""
    dp = _round_up(d_model, LANE)
    vp = _round_up(ntoken, LANE)
    prepared = {
        # rows stay at true ntoken (indexed by token id); columns zero-padded; bf16 table
        # so the gather output feeds the first projection without an extra cast.
        "embedding": jnp.pad(raw["embedding"], ((0, 0), (0, dp - d_model))).astype(jnp.bfloat16),
        "pred_w_t": jnp.pad(raw["pred_w_t"],
                            ((0, dp - d_model), (0, vp - ntoken))).astype(jnp.bfloat16),
        "pred_b": jnp.pad(raw["pred_b"], (0, vp - ntoken)).reshape(1, vp),
        "gru": [],
    }
    for lp in raw["gru"]:
        b_ih_p = _pad_gate_bias(lp["b_ih"], d_model, dp)
        b_hh_p = _pad_gate_bias(lp["b_hh"], d_model, dp)
        # b_hr, b_hz fold into the hoisted input projection; only b_hn must stay inside
        # r * (W_hn h + b_hn) within the time loop (matches torch.nn.GRU).
        gi_bias = b_ih_p + jnp.concatenate(
            [b_hh_p[:2 * dp], jnp.zeros((dp,), jnp.float32)])
        prepared["gru"].append({
            "w_ih_t": _pad_gate_weight(lp["w_ih_t"], d_model, dp).astype(jnp.bfloat16),
            "w_hh_t": _pad_gate_weight(lp["w_hh_t"], d_model, dp).astype(jnp.bfloat16),
            "gi_bias": gi_bias.reshape(1, 3 * dp),
            "b_hn": b_hh_p[2 * dp:].reshape(1, dp),
        })
    return prepared


# ------------------------------- Forward pass ---------------------------------

@jax.jit
def recurrent_model_forward(params, x_tokens, hidden):
    """x_tokens: (S, B) int32, hidden: (L, B, D) f32.
    Returns (logits (S, B, ntoken) f32, hidden_n (L, B, D) f32)."""
    S, B = x_tokens.shape
    L, _, D = hidden.shape
    V = params["embedding"].shape[0]
    dp = params["embedding"].shape[1]

    # Embedding lookup (data-dependent gather) stays in XLA.
    out = jnp.take(params["embedding"], x_tokens, axis=0)            # (S, B, dp) bf16

    # Zero-pad the hidden state; padded lanes provably stay 0 through the recurrence.
    hidden_p = jnp.pad(hidden, ((0, 0), (0, 0), (0, dp - D)))        # (L, B, dp) f32

    finals = []
    for l in range(L):
        lp = params["gru"][l]
        # Hoisted input projection for the whole sequence, emitted in bf16 (largest
        # intermediate; halves its HBM round-trip).
        gi = matmul_bias(out.reshape(S * B, dp), lp["w_ih_t"], lp["gi_bias"],
                         out_dtype=jnp.bfloat16)
        gi = gi.reshape(S, B, 3 * dp)
        # Serial recurrence: only h @ W_hh + gates remain per timestep.
        out, h_last = gru_layer(gi, hidden_p[l], lp["w_hh_t"], lp["b_hn"])
        finals.append(h_last)
        # TODO(synk): inter-layer dropout (training mode only in PyTorch) omitted.

    hidden_n = jnp.stack(finals, axis=0)[:, :, :D]                   # (L, B, D) f32

    # Output projection: lane-dense padded-vocab slab; the valid-width slice is a no-op
    # whenever ntoken is already a multiple of 128.
    logits_p = matmul_bias(out.reshape(S * B, dp), params["pred_w_t"], params["pred_b"],
                           out_dtype=jnp.float32)                    # (S*B, vp) f32
    vp = logits_p.shape[1]
    logits = logits_p if vp == V else logits_p[:, :V]
    return logits.reshape(S, B, V), hidden_n


# --------------------------- Pure-JAX f32 reference ----------------------------

def reference_forward(raw, x_tokens, hidden):
    """Pure-JAX f32 reference matching torch.nn.GRU eval-mode semantics."""
    d = hidden.shape[-1]
    out = raw["embedding"][x_tokens]                                 # (S, B, D)
    finals = []
    for l, lp in enumerate(raw["gru"]):
        h = hidden[l]
        ys = []
        for t in range(out.shape[0]):
            gi = out[t] @ lp["w_ih_t"] + lp["b_ih"]
            gh = h @ lp["w_hh_t"] + lp["b_hh"]
            r = jax.nn.sigmoid(gi[:, :d] + gh[:, :d])
            z = jax.nn.sigmoid(gi[:, d:2 * d] + gh[:, d:2 * d])
            n = jnp.tanh(gi[:, 2 * d:] + r * gh[:, 2 * d:])
            h = (1.0 - z) * n + z * h
            ys.append(h)
        out = jnp.stack(ys, axis=0)
        finals.append(h)
    logits = out @ raw["pred_w_t"] + raw["pred_b"]
    return logits, jnp.stack(finals, axis=0)


# ----------------------------------- Main --------------------------------------

if __name__ == "__main__":
    ntoken = 16
    d_model = 32
    num_layers = 2
    seq_len = 8
    batch = 2

    key = jax.random.PRNGKey(0)
    k_par, k_x, k_h = jax.random.split(key, 3)

    raw_params = init_params(k_par, ntoken, d_model, num_layers)
    params = prepare_params(raw_params, d_model, ntoken)

    x_tokens = jax.random.randint(k_x, (seq_len, batch), 0, ntoken, dtype=jnp.int32)
    hidden0 = jax.random.normal(k_h, (num_layers, batch, d_model), jnp.float32)

    logits, hidden_n = recurrent_model_forward(params, x_tokens, hidden0)
    jax.block_until_ready((logits, hidden_n))

    assert logits.shape == (seq_len, batch, ntoken)
    assert hidden_n.shape == (num_layers, batch, d_model)
    assert bool(jnp.all(jnp.isfinite(logits)))
    assert bool(jnp.all(jnp.isfinite(hidden_n)))

    # bf16 weights/activations vs pure f32 reference: documented tolerance (max-abs < 0.2
    # on O(1)-magnitude outputs at these sizes; a semantic bug would be O(1) off).
    ref_logits, ref_hidden = reference_forward(raw_params, x_tokens, hidden0)
    assert float(jnp.max(jnp.abs(logits - ref_logits))) < 0.2, "logits mismatch vs f32 reference"
    assert float(jnp.max(jnp.abs(hidden_n - ref_hidden))) < 0.2, "hidden mismatch vs f32 reference"

    print("KERNEL_OK")
</pallas_src>

<mosaic_0001>
module attributes {stable_mosaic.version = 11 : i64} {
  func.func @_matmul_bias_kernel(%arg0: i32, %arg1: i32, %arg2: i32, %arg3: memref<16x128xbf16, #tpu.memory_space<vmem>>, %arg4: memref<128x384xbf16, #tpu.memory_space<vmem>>, %arg5: memref<1x384xf32, #tpu.memory_space<vmem>>, %arg6: memref<16x384xbf16, #tpu.memory_space<vmem>>, %arg7: memref<16x384xf32, #tpu.memory_space<vmem>>) attributes {dimension_semantics = [#tpu.dimension_semantics<parallel>, #tpu.dimension_semantics<parallel>, #tpu.dimension_semantics<arbitrary>], iteration_bounds = array<i64: 1, 1, 1>, scalar_prefetch = 0 : i64, scratch_operands = 1 : i64, tpu.core_type = #tpu.core_type<tc>, window_params = [{transform_indices = @transform_0, window_bounds = array<i64: 16, 128>}, {transform_indices = @transform_1, window_bounds = array<i64: 128, 384>}, {transform_indices = @transform_2, window_bounds = array<i64: 1, 384>}, {transform_indices = @transform_3, window_bounds = array<i64: 16, 384>}]} {
    %c0_i32 = arith.constant 0 : i32
    %0 = arith.cmpi eq, %arg2, %c0_i32 : i32
    %1 = arith.extui %0 : i1 to i32
    %c0_i32_0 = arith.constant 0 : i32
    %2 = arith.cmpi ne, %1, %c0_i32_0 : i32
    scf.if %2 {
      %cst_10 = arith.constant 0.000000e+00 : f32
      %12 = vector.broadcast %cst_10 : f32 to vector<16x384xf32>
      %c0_11 = arith.constant 0 : index
      %c0_12 = arith.constant 0 : index
      %13 = vector.load %arg7[%c0_11, %c0_12] : memref<16x384xf32, #tpu.memory_space<vmem>>, vector<16x384xf32>
      tpu.vector_store %arg7[%c0_11, %c0_12], %12 {strides = array<i32>} : memref<16x384xf32, #tpu.memory_space<vmem>>, vector<16x384xf32>,
    } else {
    }
    %c0 = arith.constant 0 : index
    %c0_1 = arith.constant 0 : index
    %3 = vector.load %arg7[%c0, %c0_1] : memref<16x384xf32, #tpu.memory_space<vmem>>, vector<16x384xf32>
    %c0_2 = arith.constant 0 : index
    %c0_3 = arith.constant 0 : index
    %4 = vector.load %arg3[%c0_2, %c0_3] : memref<16x128xbf16, #tpu.memory_space<vmem>>, vector<16x128xbf16>
    %c0_4 = arith.constant 0 : index
    %c0_5 = arith.constant 0 : index
    %5 = vector.load %arg4[%c0_4, %c0_5] : memref<128x384xbf16, #tpu.memory_space<vmem>>, vector<128x384xbf16>
    %cst = arith.constant dense<0.000000e+00> : vector<16x384xf32>
    %6 = tpu.matmul %4, %5, %cst {dimension_numbers = #tpu.dot_dimension_numbers<[1], [0], [0], [1], [0, 0, 1, 1], [], []>} : vector<16x128xbf16>, vector<128x384xbf16>, vector<16x384xf32> -> vector<16x384xf32>
    %7 = arith.addf %3, %6 : vector<16x384xf32>
    %c0_6 = arith.constant 0 : index
    %c0_7 = arith.constant 0 : index
    %8 = vector.load %arg7[%c0_6, %c0_7] : memref<16x384xf32, #tpu.memory_space<vmem>>, vector<16x384xf32>
    tpu.vector_store %arg7[%c0_6, %c0_7], %7 {strides = array<i32>} : memref<16x384xf32, #tpu.memory_space<vmem>>, vector<16x384xf32>,
    %c0_i32_8 = arith.constant 0 : i32
    %9 = arith.cmpi eq, %arg2, %c0_i32_8 : i32
    %10 = arith.extui %9 : i1 to i32
    %c0_i32_9 = arith.constant 0 : i32
    %11 = arith.cmpi ne, %10, %c0_i32_9 : i32
    scf.if %11 {
      %c0_10 = arith.constant 0 : index
      %c0_11 = arith.constant 0 : index
      %12 = vector.load %arg7[%c0_10, %c0_11] : memref<16x384xf32, #tpu.memory_space<vmem>>, vector<16x384xf32>
      %c0_12 = arith.constant 0 : index
      %c0_13 = arith.constant 0 : index
      %13 = vector.load %arg5[%c0_12, %c0_13] : memref<1x384xf32, #tpu.memory_space<vmem>>, vector<1x384xf32>
      %14 = vector.broadcast %13 : vector<1x384xf32> to vector<16x384xf32>
      %15 = arith.addf %12, %14 : vector<16x384xf32>
      %16 = arith.truncf %15 : vector<16x384xf32> to vector<16x384xbf16>
      %c0_14 = arith.constant 0 : index
      %c0_15 = arith.constant 0 : index
      %17 = vector.load %arg6[%c0_14, %c0_15] : memref<16x384xbf16, #tpu.memory_space<vmem>>, vector<16x384xbf16>
      tpu.vector_store %arg6[%c0_14, %c0_15], %16 {strides = array<i32>} : memref<16x384xbf16, #tpu.memory_space<vmem>>, vector<16x384xbf16>,
    } else {
    }
    return
  }
  func.func @transform_0(%arg0: i32, %arg1: i32, %arg2: i32) -> (i32, i32) {
    %c0_i32 = arith.constant 0 : i32
    return %arg0, %arg2 : i32, i32
  }
  func.func @transform_1(%arg0: i32, %arg1: i32, %arg2: i32) -> (i32, i32) {
    %c0_i32 = arith.constant 0 : i32
    return %arg2, %arg1 : i32, i32
  }
  func.func @transform_2(%arg0: i32, %arg1: i32, %arg2: i32) -> (i32, i32) {
    %c0_i32 = arith.constant 0 : i32
    %c0_i32_0 = arith.constant 0 : i32
    return %c0_i32, %arg1 : i32, i32
  }
  func.func @transform_3(%arg0: i32, %arg1: i32, %arg2: i32) -> (i32, i32) {
    %c0_i32 = arith.constant 0 : i32
    return %arg0, %arg1 : i32, i32
  }
}

module attributes {stable_mosaic.version = 11 : i64} {
  func.func @_matmul_bias_kernel(%arg0: i32, %arg1: i32, %arg2: i32, %arg3: memref<16x128xbf16, #tpu.memory_space<vmem>>, %arg4: memref<128x128xbf16, #tpu.memory_space<vmem>>, %arg5: memref<1x128xf32, #tpu.memory_space<vmem>>, %arg6: memref<16x128xf32, #tpu.memory_space<vmem>>, %arg7: memref<16x128xf32, #tpu.memory_space<vmem>>) attributes {dimension_semantics = [#tpu.dimension_semantics<parallel>, #tpu.dimension_semantics<parallel>, #tpu.dimension_semantics<arbitrary>], iteration_bounds = array<i64: 1, 1, 1>, scalar_prefetch = 0 : i64, scratch_operands = 1 : i64, tpu.core_type = #tpu.core_type<tc>, window_params = [{transform_indices = @transform_0, window_bounds = array<i64: 16, 128>}, {transform_indices = @transform_1, window_bounds = array<i64: 128, 128>}, {transform_indices = @transform_2, window_bounds = array<i64: 1, 128>}, {transform_indices = @transform_3, window_bounds = array<i64: 16, 128>}]} {
    %c0_i32 = arith.constant 0 : i32
    %0 = arith.cmpi eq, %arg2, %c0_i32 : i32
    %1 = arith.extui %0 : i1 to i32
    %c0_i32_0 = arith.constant 0 : i32
    %2 = arith.cmpi ne, %1, %c0_i32_0 : i32
    scf.if %2 {
      %cst_10 = arith.constant 0.000000e+00 : f32
      %12 = vector.broadcast %cst_10 : f32 to vector<16x128xf32>
      %c0_11 = arith.constant 0 : index
      %c0_12 = arith.constant 0 : index
      %13 = vector.load %arg7[%c0_11, %c0_12] : memref<16x128xf32, #tpu.memory_space<vmem>>, vector<16x128xf32>
      tpu.vector_store %arg7[%c0_11, %c0_12], %12 {strides = array<i32>} : memref<16x128xf32, #tpu.memory_space<vmem>>, vector<16x128xf32>,
    } else {
    }
    %c0 = arith.constant 0 : index
    %c0_1 = arith.constant 0 : index
    %3 = vector.load %arg7[%c0, %c0_1] : memref<16x128xf32, #tpu.memory_space<vmem>>, vector<16x128xf32>
    %c0_2 = arith.constant 0 : index
    %c0_3 = arith.constant 0 : index
    %4 = vector.load %arg3[%c0_2, %c0_3] : memref<16x128xbf16, #tpu.memory_space<vmem>>, vector<16x128xbf16>
    %c0_4 = arith.constant 0 : index
    %c0_5 = arith.constant 0 : index
    %5 = vector.load %arg4[%c0_4, %c0_5] : memref<128x128xbf16, #tpu.memory_space<vmem>>, vector<128x128xbf16>
    %cst = arith.constant dense<0.000000e+00> : vector<16x128xf32>
    %6 = tpu.matmul %4, %5, %cst {dimension_numbers = #tpu.dot_dimension_numbers<[1], [0], [0], [1], [0, 0, 1, 1], [], []>} : vector<16x128xbf16>, vector<128x128xbf16>, vector<16x128xf32> -> vector<16x128xf32>
    %7 = arith.addf %3, %6 : vector<16x128xf32>
    %c0_6 = arith.constant 0 : index
    %c0_7 = arith.constant 0 : index
    %8 = vector.load %arg7[%c0_6, %c0_7] : memref<16x128xf32, #tpu.memory_space<vmem>>, vector<16x128xf32>
    tpu.vector_store %arg7[%c0_6, %c0_7], %7 {strides = array<i32>} : memref<16x128xf32, #tpu.memory_space<vmem>>, vector<16x128xf32>,
    %c0_i32_8 = arith.constant 0 : i32
    %9 = arith.cmpi eq, %arg2, %c0_i32_8 : i32
    %10 = arith.extui %9 : i1 to i32
    %c0_i32_9 = arith.constant 0 : i32
    %11 = arith.cmpi ne, %10, %c0_i32_9 : i32
    scf.if %11 {
      %c0_10 = arith.constant 0 : index
      %c0_11 = arith.constant 0 : index
      %12 = vector.load %arg7[%c0_10, %c0_11] : memref<16x128xf32, #tpu.memory_space<vmem>>, vector<16x128xf32>
      %c0_12 = arith.constant 0 : index
      %c0_13 = arith.constant 0 : index
      %13 = vector.load %arg5[%c0_12, %c0_13] : memref<1x128xf32, #tpu.memory_space<vmem>>, vector<1x128xf32>
      %14 = vector.broadcast %13 : vector<1x128xf32> to vector<16x128xf32>
      %15 = arith.addf %12, %14 : vector<16x128xf32>
      %c0_14 = arith.constant 0 : index
      %c0_15 = arith.constant 0 : index
      %16 = vector.load %arg6[%c0_14, %c0_15] : memref<16x128xf32, #tpu.memory_space<vmem>>, vector<16x128xf32>
      tpu.vector_store %arg6[%c0_14, %c0_15], %15 {strides = array<i32>} : memref<16x128xf32, #tpu.memory_space<vmem>>, vector<16x128xf32>,
    } else {
    }
    return
  }
  func.func @transform_0(%arg0: i32, %arg1: i32, %arg2: i32) -> (i32, i32) {
    %c0_i32 = arith.constant 0 : i32
    return %arg0, %arg2 : i32, i32
  }
  func.func @transform_1(%arg0: i32, %arg1: i32, %arg2: i32) -> (i32, i32) {
    %c0_i32 = arith.constant 0 : i32
    return %arg2, %arg1 : i32, i32
  }
  func.func @transform_2(%arg0: i32, %arg1: i32, %arg2: i32) -> (i32, i32) {
    %c0_i32 = arith.constant 0 : i32
    %c0_i32_0 = arith.constant 0 : i32
    return %c0_i32, %arg1 : i32, i32
  }
  func.func @transform_3(%arg0: i32, %arg1: i32, %arg2: i32) -> (i32, i32) {
    %c0_i32 = arith.constant 0 : i32
    return %arg0, %arg1 : i32, i32
  }
}

module attributes {stable_mosaic.version = 11 : i64} {
  func.func @_gru_recurrence_kernel(%arg0: i32, %arg1: i32, %arg2: memref<8x2x384xbf16, #tpu.memory_space<vmem>>, %arg3: memref<2x128xf32, #tpu.memory_space<vmem>>, %arg4: memref<128x384xbf16, #tpu.memory_space<vmem>>, %arg5: memref<1x128xf32, #tpu.memory_space<vmem>>, %arg6: memref<8x2x128xbf16, #tpu.memory_space<vmem>>, %arg7: memref<2x128xf32, #tpu.memory_space<vmem>>, %arg8: memref<2x128xf32, #tpu.memory_space<vmem>>) attributes {dimension_semantics = [#tpu.dimension_semantics<parallel>, #tpu.dimension_semantics<arbitrary>], iteration_bounds = array<i64: 1, 1>, scalar_prefetch = 0 : i64, scratch_operands = 1 : i64, tpu.core_type = #tpu.core_type<tc>, window_params = [{transform_indices = @transform_0, window_bounds = array<i64: 8, 2, 384>}, {transform_indices = @transform_1, window_bounds = array<i64: 2, 128>}, {pipeline_mode = #tpu.pipeline_mode<synchronous>, transform_indices = @transform_2, window_bounds = array<i64: 128, 384>}, {pipeline_mode = #tpu.pipeline_mode<synchronous>, transform_indices = @transform_3, window_bounds = array<i64: 1, 128>}, {transform_indices = @transform_4, window_bounds = array<i64: 8, 2, 128>}, {transform_indices = @transform_5, window_bounds = array<i64: 2, 128>}]} {
    %c0_i32 = arith.constant 0 : i32
    %0 = arith.cmpi eq, %arg1, %c0_i32 : i32
    %1 = arith.extui %0 : i1 to i32
    %c0_i32_0 = arith.constant 0 : i32
    %2 = arith.cmpi ne, %1, %c0_i32_0 : i32
    scf.if %2 {
      %c0_134 = arith.constant 0 : index
      %c0_135 = arith.constant 0 : index
      %384 = vector.load %arg3[%c0_134, %c0_135] : memref<2x128xf32, #tpu.memory_space<vmem>>, vector<2x128xf32>
      %c0_136 = arith.constant 0 : index
      %c0_137 = arith.constant 0 : index
      %385 = vector.load %arg8[%c0_136, %c0_137] : memref<2x128xf32, #tpu.memory_space<vmem>>, vector<2x128xf32>
      tpu.vector_store %arg8[%c0_136, %c0_137], %384 {strides = array<i32>} : memref<2x128xf32, #tpu.memory_space<vmem>>, vector<2x128xf32>,
    } else {
    }
    %c0 = arith.constant 0 : index
    %c0_1 = arith.constant 0 : index
    %3 = vector.load %arg8[%c0, %c0_1] : memref<2x128xf32, #tpu.memory_space<vmem>>, vector<2x128xf32>
    %c0_i32_2 = arith.constant 0 : i32
    %4 = arith.index_cast %c0_i32_2 : i32 to index
    %c0_3 = arith.constant 0 : index
    %c0_4 = arith.constant 0 : index
    %5 = vector.load %arg2[%4, %c0_3, %c0_4] : memref<8x2x384xbf16, #tpu.memory_space<vmem>>, vector<1x2x384xbf16>
    %6 = vector.shape_cast %5 : vector<1x2x384xbf16> to vector<2x384xbf16>
    %7 = arith.truncf %3 : vector<2x128xf32> to vector<2x128xbf16>
    %c0_5 = arith.constant 0 : index
    %c0_6 = arith.constant 0 : index
    %8 = vector.load %arg4[%c0_5, %c0_6] : memref<128x384xbf16, #tpu.memory_space<vmem>>, vector<128x384xbf16>
    %cst = arith.constant dense<0.000000e+00> : vector<2x384xf32>
    %9 = tpu.matmul %7, %8, %cst {dimension_numbers = #tpu.dot_dimension_numbers<[1], [0], [0], [1], [0, 0, 1, 1], [], []>} : vector<2x128xbf16>, vector<128x384xbf16>, vector<2x384xf32> -> vector<2x384xf32>
    %10 = vector.extract_strided_slice %6 {offsets = [0, 0], sizes = [2, 128], strides = [1, 1]} : vector<2x384xbf16> to vector<2x128xbf16>
    %11 = vector.extract_strided_slice %9 {offsets = [0, 0], sizes = [2, 128], strides = [1, 1]} : vector<2x384xf32> to vector<2x128xf32>
    %12 = arith.extf %10 : vector<2x128xbf16> to vector<2x128xf32>
    %13 = arith.addf %12, %11 : vector<2x128xf32>
    %cst_7 = arith.constant 5.000000e-01 : f32
    %14 = vector.broadcast %cst_7 : f32 to vector<2x128xf32>
    %15 = arith.mulf %14, %13 : vector<2x128xf32>
    %16 = math.tanh %15 : vector<2x128xf32>
    %cst_8 = arith.constant 5.000000e-01 : f32
    %17 = vector.broadcast %cst_8 : f32 to vector<2x128xf32>
    %18 = arith.mulf %17, %16 : vector<2x128xf32>
    %cst_9 = arith.constant 5.000000e-01 : f32
    %19 = vector.broadcast %cst_9 : f32 to vector<2x128xf32>
    %20 = arith.addf %18, %19 : vector<2x128xf32>
    %21 = vector.extract_strided_slice %6 {offsets = [0, 128], sizes = [2, 128], strides = [1, 1]} : vector<2x384xbf16> to vector<2x128xbf16>
    %22 = vector.extract_strided_slice %9 {offsets = [0, 128], sizes = [2, 128], strides = [1, 1]} : vector<2x384xf32> to vector<2x128xf32>
    %23 = arith.extf %21 : vector<2x128xbf16> to vector<2x128xf32>
    %24 = arith.addf %23, %22 : vector<2x128xf32>
    %cst_10 = arith.constant 5.000000e-01 : f32
    %25 = vector.broadcast %cst_10 : f32 to vector<2x128xf32>
    %26 = arith.mulf %25, %24 : vector<2x128xf32>
    %27 = math.tanh %26 : vector<2x128xf32>
    %cst_11 = arith.constant 5.000000e-01 : f32
    %28 = vector.broadcast %cst_11 : f32 to vector<2x128xf32>
    %29 = arith.mulf %28, %27 : vector<2x128xf32>
    %cst_12 = arith.constant 5.000000e-01 : f32
    %30 = vector.broadcast %cst_12 : f32 to vector<2x128xf32>
    %31 = arith.addf %29, %30 : vector<2x128xf32>
    %32 = vector.extract_strided_slice %6 {offsets = [0, 256], sizes = [2, 128], strides = [1, 1]} : vector<2x384xbf16> to vector<2x128xbf16>
    %33 = vector.extract_strided_slice %9 {offsets = [0, 256], sizes = [2, 128], strides = [1, 1]} : vector<2x384xf32> to vector<2x128xf32>
    %c0_13 = arith.constant 0 : index
    %c0_14 = arith.constant 0 : index
    %34 = vector.load %arg5[%c0_13, %c0_14] : memref<1x128xf32, #tpu.memory_space<vmem>>, vector<1x128xf32>
    %35 = vector.broadcast %34 : vector<1x128xf32> to vector<2x128xf32>
    %36 = arith.addf %33, %35 : vector<2x128xf32>
    %37 = arith.mulf %20, %36 : vector<2x128xf32>
    %38 = arith.extf %32 : vector<2x128xbf16> to vector<2x128xf32>
    %39 = arith.addf %38, %37 : vector<2x128xf32>
    %40 = math.tanh %39 : vector<2x128xf32>
    %cst_15 = arith.constant 1.000000e+00 : f32
    %41 = vector.broadcast %cst_15 : f32 to vector<2x128xf32>
    %42 = arith.subf %41, %31 : vector<2x128xf32>
    %43 = arith.mulf %42, %40 : vector<2x128xf32>
    %44 = arith.mulf %31, %3 : vector<2x128xf32>
    %45 = arith.addf %43, %44 : vector<2x128xf32>
    %46 = arith.truncf %45 : vector<2x128xf32> to vector<2x128xbf16>
    %47 = arith.index_cast %c0_i32_2 : i32 to index
    %c0_16 = arith.constant 0 : index
    %c0_17 = arith.constant 0 : index
    %48 = vector.load %arg6[%47, %c0_16, %c0_17] : memref<8x2x128xbf16, #tpu.memory_space<vmem>>, vector<1x2x128xbf16>
    %49 = vector.shape_cast %48 : vector<1x2x128xbf16> to vector<2x128xbf16>
    %50 = vector.shape_cast %46 : vector<2x128xbf16> to vector<1x2x128xbf16>
    tpu.vector_store %arg6[%47, %c0_16, %c0_17], %50 {strides = array<i32>} : memref<8x2x128xbf16, #tpu.memory_space<vmem>>, vector<1x2x128xbf16>,
    %c1_i32 = arith.constant 1 : i32
    %51 = arith.index_cast %c1_i32 : i32 to index
    %c0_18 = arith.constant 0 : index
    %c0_19 = arith.constant 0 : index
    %52 = vector.load %arg2[%51, %c0_18, %c0_19] : memref<8x2x384xbf16, #tpu.memory_space<vmem>>, vector<1x2x384xbf16>
    %53 = vector.shape_cast %52 : vector<1x2x384xbf16> to vector<2x384xbf16>
    %54 = arith.truncf %45 : vector<2x128xf32> to vector<2x128xbf16>
    %c0_20 = arith.constant 0 : index
    %c0_21 = arith.constant 0 : index
    %55 = vector.load %arg4[%c0_20, %c0_21] : memref<128x384xbf16, #tpu.memory_space<vmem>>, vector<128x384xbf16>
    %cst_22 = arith.constant dense<0.000000e+00> : vector<2x384xf32>
    %56 = tpu.matmul %54, %55, %cst_22 {dimension_numbers = #tpu.dot_dimension_numbers<[1], [0], [0], [1], [0, 0, 1, 1], [], []>} : vector<2x128xbf16>, vector<128x384xbf16>, vector<2x384xf32> -> vector<2x384xf32>
    %57 = vector.extract_strided_slice %53 {offsets = [0, 0], sizes = [2, 128], strides = [1, 1]} : vector<2x384xbf16> to vector<2x128xbf16>
    %58 = vector.extract_strided_slice %56 {offsets = [0, 0], sizes = [2, 128], strides = [1, 1]} : vector<2x384xf32> to vector<2x128xf32>
    %59 = arith.extf %57 : vector<2x128xbf16> to vector<2x128xf32>
    %60 = arith.addf %59, %58 : vector<2x128xf32>
    %cst_23 = arith.constant 5.000000e-01 : f32
    %61 = vector.broadcast %cst_23 : f32 to vector<2x128xf32>
    %62 = arith.mulf %61, %60 : vector<2x128xf32>
    %63 = math.tanh %62 : vector<2x128xf32>
    %cst_24 = arith.constant 5.000000e-01 : f32
    %64 = vector.broadcast %cst_24 : f32 to vector<2x128xf32>
    %65 = arith.mulf %64, %63 : vector<2x128xf32>
    %cst_25 = arith.constant 5.000000e-01 : f32
    %66 = vector.broadcast %cst_25 : f32 to vector<2x128xf32>
    %67 = arith.addf %65, %66 : vector<2x128xf32>
    %68 = vector.extract_strided_slice %53 {offsets = [0, 128], sizes = [2, 128], strides = [1, 1]} : vector<2x384xbf16> to vector<2x128xbf16>
    %69 = vector.extract_strided_slice %56 {offsets = [0, 128], sizes = [2, 128], strides = [1, 1]} : vector<2x384xf32> to vector<2x128xf32>
    %70 = arith.extf %68 : vector<2x128xbf16> to vector<2x128xf32>
    %71 = arith.addf %70, %69 : vector<2x128xf32>
    %cst_26 = arith.constant 5.000000e-01 : f32
    %72 = vector.broadcast %cst_26 : f32 to vector<2x128xf32>
    %73 = arith.mulf %72, %71 : vector<2x128xf32>
    %74 = math.tanh %73 : vector<2x128xf32>
    %cst_27 = arith.constant 5.000000e-01 : f32
    %75 = vector.broadcast %cst_27 : f32 to vector<2x128xf32>
    %76 = arith.mulf %75, %74 : vector<2x128xf32>
    %cst_28 = arith.constant 5.000000e-01 : f32
    %77 = vector.broadcast %cst_28 : f32 to vector<2x128xf32>
    %78 = arith.addf %76, %77 : vector<2x128xf32>
    %79 = vector.extract_strided_slice %53 {offsets = [0, 256], sizes = [2, 128], strides = [1, 1]} : vector<2x384xbf16> to vector<2x128xbf16>
    %80 = vector.extract_strided_slice %56 {offsets = [0, 256], sizes = [2, 128], strides = [1, 1]} : vector<2x384xf32> to vector<2x128xf32>
    %c0_29 = arith.constant 0 : index
    %c0_30 = arith.constant 0 : index
    %81 = vector.load %arg5[%c0_29, %c0_30] : memref<1x128xf32, #tpu.memory_space<vmem>>, vector<1x128xf32>
    %82 = vector.broadcast %81 : vector<1x128xf32> to vector<2x128xf32>
    %83 = arith.addf %80, %82 : vector<2x128xf32>
    %84 = arith.mulf %67, %83 : vector<2x128xf32>
    %85 = arith.extf %79 : vector<2x128xbf16> to vector<2x128xf32>
    %86 = arith.addf %85, %84 : vector<2x128xf32>
    %87 = math.tanh %86 : vector<2x128xf32>
    %cst_31 = arith.constant 1.000000e+00 : f32
    %88 = vector.broadcast %cst_31 : f32 to vector<2x128xf32>
    %89 = arith.subf %88, %78 : vector<2x128xf32>
    %90 = arith.mulf %89, %87 : vector<2x128xf32>
    %91 = arith.mulf %78, %45 : vector<2x128xf32>
    %92 = arith.addf %90, %91 : vector<2x128xf32>
    %93 = arith.truncf %92 : vector<2x128xf32> to vector<2x128xbf16>
    %94 = arith.index_cast %c1_i32 : i32 to index
    %c0_32 = arith.constant 0 : index
    %c0_33 = arith.constant 0 : index
    %95 = vector.load %arg6[%94, %c0_32, %c0_33] : memref<8x2x128xbf16, #tpu.memory_space<vmem>>, vector<1x2x128xbf16>
    %96 = vector.shape_cast %95 : vector<1x2x128xbf16> to vector<2x128xbf16>
    %97 = vector.shape_cast %93 : vector<2x128xbf16> to vector<1x2x128xbf16>
    tpu.vector_store %arg6[%94, %c0_32, %c0_33], %97 {strides = array<i32>} : memref<8x2x128xbf16, #tpu.memory_space<vmem>>, vector<1x2x128xbf16>,
    %c2_i32 = arith.constant 2 : i32
    %98 = arith.index_cast %c2_i32 : i32 to index
    %c0_34 = arith.constant 0 : index
    %c0_35 = arith.constant 0 : index
    %99 = vector.load %arg2[%98, %c0_34, %c0_35] : memref<8x2x384xbf16, #tpu.memory_space<vmem>>, vector<1x2x384xbf16>
    %100 = vector.shape_cast %99 : vector<1x2x384xbf16> to vector<2x384xbf16>
    %101 = arith.truncf %92 : vector<2x128xf32> to vector<2x128xbf16>
    %c0_36 = arith.constant 0 : index
    %c0_37 = arith.constant 0 : index
    %102 = vector.load %arg4[%c0_36, %c0_37] : memref<128x384xbf16, #tpu.memory_space<vmem>>, vector<128x384xbf16>
    %cst_38 = arith.constant dense<0.000000e+00> : vector<2x384xf32>
    %103 = tpu.matmul %101, %102, %cst_38 {dimension_numbers = #tpu.dot_dimension_numbers<[1], [0], [0], [1], [0, 0, 1, 1], [], []>} : vector<2x128xbf16>, vector<128x384xbf16>, vector<2x384xf32> -> vector<2x384xf32>
    %104 = vector.extract_strided_slice %100 {offsets = [0, 0], sizes = [2, 128], strides = [1, 1]} : vector<2x384xbf16> to vector<2x128xbf16>
    %105 = vector.extract_strided_slice %103 {offsets = [0, 0], sizes = [2, 128], strides = [1, 1]} : vector<2x384xf32> to vector<2x128xf32>
    %106 = arith.extf %104 : vector<2x128xbf16> to vector<2x128xf32>
    %107 = arith.addf %106, %105 : vector<2x128xf32>
    %cst_39 = arith.constant 5.000000e-01 : f32
    %108 = vector.broadcast %cst_39 : f32 to vector<2x128xf32>
    %109 = arith.mulf %108, %107 : vector<2x128xf32>
    %110 = math.tanh %109 : vector<2x128xf32>
    %cst_40 = arith.constant 5.000000e-01 : f32
    %111 = vector.broadcast %cst_40 : f32 to vector<2x128xf32>
    %112 = arith.mulf %111, %110 : vector<2x128xf32>
    %cst_41 = arith.constant 5.000000e-01 : f32
    %113 = vector.broadcast %cst_41 : f32 to vector<2x128xf32>
    %114 = arith.addf %112, %113 : vector<2x128xf32>
    %115 = vector.extract_strided_slice %100 {offsets = [0, 128], sizes = [2, 128], strides = [1, 1]} : vector<2x384xbf16> to vector<2x128xbf16>
    %116 = vector.extract_strided_slice %103 {offsets = [0, 128], sizes = [2, 128], strides = [1, 1]} : vector<2x384xf32> to vector<2x128xf32>
    %117 = arith.extf %115 : vector<2x128xbf16> to vector<2x128xf32>
    %118 = arith.addf %117, %116 : vector<2x128xf32>
    %cst_42 = arith.constant 5.000000e-01 : f32
    %119 = vector.broadcast %cst_42 : f32 to vector<2x128xf32>
    %120 = arith.mulf %119, %118 : vector<2x128xf32>
    %121 = math.tanh %120 : vector<2x128xf32>
    %cst_43 = arith.constant 5.000000e-01 : f32
    %122 = vector.broadcast %cst_43 : f32 to vector<2x128xf32>
    %123 = arith.mulf %122, %121 : vector<2x128xf32>
    %cst_44 = arith.constant 5.000000e-01 : f32
    %124 = vector.broadcast %cst_44 : f32 to vector<2x128xf32>
    %125 = arith.addf %123, %124 : vector<2x128xf32>
    %126 = vector.extract_strided_slice %100 {offsets = [0, 256], sizes = [2, 128], strides = [1, 1]} : vector<2x384xbf16> to vector<2x128xbf16>
    %127 = vector.extract_strided_slice %103 {offsets = [0, 256], sizes = [2, 128], strides = [1, 1]} : vector<2x384xf32> to vector<2x128xf32>
    %c0_45 = arith.constant 0 : index
    %c0_46 = arith.constant 0 : index
    %128 = vector.load %arg5[%c0_45, %c0_46] : memref<1x128xf32, #tpu.memory_space<vmem>>, vector<1x128xf32>
    %129 = vector.broadcast %128 : vector<1x128xf32> to vector<2x128xf32>
    %130 = arith.addf %127, %129 : vector<2x128xf32>
    %131 = arith.mulf %114, %130 : vector<2x128xf32>
    %132 = arith.extf %126 : vector<2x128xbf16> to vector<2x128xf32>
    %133 = arith.addf %132, %131 : vector<2x128xf32>
    %134 = math.tanh %133 : vector<2x128xf32>
    %cst_47 = arith.constant 1.000000e+00 : f32
    %135 = vector.broadcast %cst_47 : f32 to vector<2x128xf32>
    %136 = arith.subf %135, %125 : vector<2x128xf32>
    %137 = arith.mulf %136, %134 : vector<2x128xf32>
    %138 = arith.mulf %125, %92 : vector<2x128xf32>
    %139 = arith.addf %137, %138 : vector<2x128xf32>
    %140 = arith.truncf %139 : vector<2x128xf32> to vector<2x128xbf16>
    %141 = arith.index_cast %c2_i32 : i32 to index
    %c0_48 = arith.constant 0 : index
    %c0_49 = arith.constant 0 : index
    %142 = vector.load %arg6[%141, %c0_48, %c0_49] : memref<8x2x128xbf16, #tpu.memory_space<vmem>>, vector<1x2x128xbf16>
    %143 = vector.shape_cast %142 : vector<1x2x128xbf16> to vector<2x128xbf16>
    %144 = vector.shape_cast %140 : vector<2x128xbf16> to vector<1x2x128xbf16>
    tpu.vector_store %arg6[%141, %c0_48, %c0_49], %144 {strides = array<i32>} : memref<8x2x128xbf16, #tpu.memory_space<vmem>>, vector<1x2x128xbf16>,
    %c3_i32 = arith.constant 3 : i32
    %145 = arith.index_cast %c3_i32 : i32 to index
    %c0_50 = arith.constant 0 : index
    %c0_51 = arith.constant 0 : index
    %146 = vector.load %arg2[%145, %c0_50, %c0_51] : memref<8x2x384xbf16, #tpu.memory_space<vmem>>, vector<1x2x384xbf16>
    %147 = vector.shape_cast %146 : vector<1x2x384xbf16> to vector<2x384xbf16>
    %148 = arith.truncf %139 : vector<2x128xf32> to vector<2x128xbf16>
    %c0_52 = arith.constant 0 : index
    %c0_53 = arith.constant 0 : index
    %149 = vector.load %arg4[%c0_52, %c0_53] : memref<128x384xbf16, #tpu.memory_space<vmem>>, vector<128x384xbf16>
    %cst_54 = arith.constant dense<0.000000e+00> : vector<2x384xf32>
    %150 = tpu.matmul %148, %149, %cst_54 {dimension_numbers = #tpu.dot_dimension_numbers<[1], [0], [0], [1], [0, 0, 1, 1], [], []>} : vector<2x128xbf16>, vector<128x384xbf16>, vector<2x384xf32> -> vector<2x384xf32>
    %151 = vector.extract_strided_slice %147 {offsets = [0, 0], sizes = [2, 128], strides = [1, 1]} : vector<2x384xbf16> to vector<2x128xbf16>
    %152 = vector.extract_strided_slice %150 {offsets = [0, 0], sizes = [2, 128], strides = [1, 1]} : vector<2x384xf32> to vector<2x128xf32>
    %153 = arith.extf %151 : vector<2x128xbf16> to vector<2x128xf32>
    %154 = arith.addf %153, %152 : vector<2x128xf32>
    %cst_55 = arith.constant 5.000000e-01 : f32
    %155 = vector.broadcast %cst_55 : f32 to vector<2x128xf32>
    %156 = arith.mulf %155, %154 : vector<2x128xf32>
    %157 = math.tanh %156 : vector<2x128xf32>
    %cst_56 = arith.constant 5.000000e-01 : f32
    %158 = vector.broadcast %cst_56 : f32 to vector<2x128xf32>
    %159 = arith.mulf %158, %157 : vector<2x128xf32>
    %cst_57 = arith.constant 5.000000e-01 : f32
    %160 = vector.broadcast %cst_57 : f32 to vector<2x128xf32>
    %161 = arith.addf %159, %160 : vector<2x128xf32>
    %162 = vector.extract_strided_slice %147 {offsets = [0, 128], sizes = [2, 128], strides = [1, 1]} : vector<2x384xbf16> to vector<2x128xbf16>
    %163 = vector.extract_strided_slice %150 {offsets = [0, 128], sizes = [2, 128], strides = [1, 1]} : vector<2x384xf32> to vector<2x128xf32>
    %164 = arith.extf %162 : vector<2x128xbf16> to vector<2x128xf32>
    %165 = arith.addf %164, %163 : vector<2x128xf32>
    %cst_58 = arith.constant 5.000000e-01 : f32
    %166 = vector.broadcast %cst_58 : f32 to vector<2x128xf32>
    %167 = arith.mulf %166, %165 : vector<2x128xf32>
    %168 = math.tanh %167 : vector<2x128xf32>
    %cst_59 = arith.constant 5.000000e-01 : f32
    %169 = vector.broadcast %cst_59 : f32 to vector<2x128xf32>
    %170 = arith.mulf %169, %168 : vector<2x128xf32>
    %cst_60 = arith.constant 5.000000e-01 : f32
    %171 = vector.broadcast %cst_60 : f32 to vector<2x128xf32>
    %172 = arith.addf %170, %171 : vector<2x128xf32>
    %173 = vector.extract_strided_slice %147 {offsets = [0, 256], sizes = [2, 128], strides = [1, 1]} : vector<2x384xbf16> to vector<2x128xbf16>
    %174 = vector.extract_strided_slice %150 {offsets = [0, 256], sizes = [2, 128], strides = [1, 1]} : vector<2x384xf32> to vector<2x128xf32>
    %c0_61 = arith.constant 0 : index
    %c0_62 = arith.constant 0 : index
    %175 = vector.load %arg5[%c0_61, %c0_62] : memref<1x128xf32, #tpu.memory_space<vmem>>, vector<1x128xf32>
    %176 = vector.broadcast %175 : vector<1x128xf32> to vector<2x128xf32>
    %177 = arith.addf %174, %176 : vector<2x128xf32>
    %178 = arith.mulf %161, %177 : vector<2x128xf32>
    %179 = arith.extf %173 : vector<2x128xbf16> to vector<2x128xf32>
    %180 = arith.addf %179, %178 : vector<2x128xf32>
    %181 = math.tanh %180 : vector<2x128xf32>
    %cst_63 = arith.constant 1.000000e+00 : f32
    %182 = vector.broadcast %cst_63 : f32 to vector<2x128xf32>
    %183 = arith.subf %182, %172 : vector<2x128xf32>
    %184 = arith.mulf %183, %181 : vector<2x128xf32>
    %185 = arith.mulf %172, %139 : vector<2x128xf32>
    %186 = arith.addf %184, %185 : vector<2x128xf32>
    %187 = arith.truncf %186 : vector<2x128xf32> to vector<2x128xbf16>
    %188 = arith.index_cast %c3_i32 : i32 to index
    %c0_64 = arith.constant 0 : index
    %c0_65 = arith.constant 0 : index
    %189 = vector.load %arg6[%188, %c0_64, %c0_65] : memref<8x2x128xbf16, #tpu.memory_space<vmem>>, vector<1x2x128xbf16>
    %190 = vector.shape_cast %189 : vector<1x2x128xbf16> to vector<2x128xbf16>
    %191 = vector.shape_cast %187 : vector<2x128xbf16> to vector<1x2x128xbf16>
    tpu.vector_store %arg6[%188, %c0_64, %c0_65], %191 {strides = array<i32>} : memref<8x2x128xbf16, #tpu.memory_space<vmem>>, vector<1x2x128xbf16>,
    %c4_i32 = arith.constant 4 : i32
    %192 = arith.index_cast %c4_i32 : i32 to index
    %c0_66 = arith.constant 0 : index
    %c0_67 = arith.constant 0 : index
    %193 = vector.load %arg2[%192, %c0_66, %c0_67] : memref<8x2x384xbf16, #tpu.memory_space<vmem>>, vector<1x2x384xbf16>
    %194 = vector.shape_cast %193 : vector<1x2x384xbf16> to vector<2x384xbf16>
    %195 = arith.truncf %186 : vector<2x128xf32> to vector<2x128xbf16>
    %c0_68 = arith.constant 0 : index
    %c0_69 = arith.constant 0 : index
    %196 = vector.load %arg4[%c0_68, %c0_69] : memref<128x384xbf16, #tpu.memory_space<vmem>>, vector<128x384xbf16>
    %cst_70 = arith.constant dense<0.000000e+00> : vector<2x384xf32>
    %197 = tpu.matmul %195, %196, %cst_70 {dimension_numbers = #tpu.dot_dimension_numbers<[1], [0], [0], [1], [0, 0, 1, 1], [], []>} : vector<2x128xbf16>, vector<128x384xbf16>, vector<2x384xf32> -> vector<2x384xf32>
    %198 = vector.extract_strided_slice %194 {offsets = [0, 0], sizes = [2, 128], strides = [1, 1]} : vector<2x384xbf16> to vector<2x128xbf16>
    %199 = vector.extract_strided_slice %197 {offsets = [0, 0], sizes = [2, 128], strides = [1, 1]} : vector<2x384xf32> to vector<2x128xf32>
    %200 = arith.extf %198 : vector<2x128xbf16> to vector<2x128xf32>
    %201 = arith.addf %200, %199 : vector<2x128xf32>
    %cst_71 = arith.constant 5.000000e-01 : f32
    %202 = vector.broadcast %cst_71 : f32 to vector<2x128xf32>
    %203 = arith.mulf %202, %201 : vector<2x128xf32>
    %204 = math.tanh %203 : vector<2x128xf32>
    %cst_72 = arith.constant 5.000000e-01 : f32
    %205 = vector.broadcast %cst_72 : f32 to vector<2x128xf32>
    %206 = arith.mulf %205, %204 : vector<2x128xf32>
    %cst_73 = arith.constant 5.000000e-01 : f32
    %207 = vector.broadcast %cst_73 : f32 to vector<2x128xf32>
    %208 = arith.addf %206, %207 : vector<2x128xf32>
    %209 = vector.extract_strided_slice %194 {offsets = [0, 128], sizes = [2, 128], strides = [1, 1]} : vector<2x384xbf16> to vector<2x128xbf16>
    %210 = vector.extract_strided_slice %197 {offsets = [0, 128], sizes = [2, 128], strides = [1, 1]} : vector<2x384xf32> to vector<2x128xf32>
    %211 = arith.extf %209 : vector<2x128xbf16> to vector<2x128xf32>
    %212 = arith.addf %211, %210 : vector<2x128xf32>
    %cst_74 = arith.constant 5.000000e-01 : f32
    %213 = vector.broadcast %cst_74 : f32 to vector<2x128xf32>
    %214 = arith.mulf %213, %212 : vector<2x128xf32>
    %215 = math.tanh %214 : vector<2x128xf32>
    %cst_75 = arith.constant 5.000000e-01 : f32
    %216 = vector.broadcast %cst_75 : f32 to vector<2x128xf32>
    %217 = arith.mulf %216, %215 : vector<2x128xf32>
    %cst_76 = arith.constant 5.000000e-01 : f32
    %218 = vector.broadcast %cst_76 : f32 to vector<2x128xf32>
    %219 = arith.addf %217, %218 : vector<2x128xf32>
    %220 = vector.extract_strided_slice %194 {offsets = [0, 256], sizes = [2, 128], strides = [1, 1]} : vector<2x384xbf16> to vector<2x128xbf16>
    %221 = vector.extract_strided_slice %197 {offsets = [0, 256], sizes = [2, 128], strides = [1, 1]} : vector<2x384xf32> to vector<2x128xf32>
    %c0_77 = arith.constant 0 : index
    %c0_78 = arith.constant 0 : index
    %222 = vector.load %arg5[%c0_77, %c0_78] : memref<1x128xf32, #tpu.memory_space<vmem>>, vector<1x128xf32>
    %223 = vector.broadcast %222 : vector<1x128xf32> to vector<2x128xf32>
    %224 = arith.addf %221, %223 : vector<2x128xf32>
    %225 = arith.mulf %208, %224 : vector<2x128xf32>
    %226 = arith.extf %220 : vector<2x128xbf16> to vector<2x128xf32>
    %227 = arith.addf %226, %225 : vector<2x128xf32>
    %228 = math.tanh %227 : vector<2x128xf32>
    %cst_79 = arith.constant 1.000000e+00 : f32
    %229 = vector.broadcast %cst_79 : f32 to vector<2x128xf32>
    %230 = arith.subf %229, %219 : vector<2x128xf32>
    %231 = arith.mulf %230, %228 : vector<2x128xf32>
    %232 = arith.mulf %219, %186 : vector<2x128xf32>
    %233 = arith.addf %231, %232 : vector<2x128xf32>
    %234 = arith.truncf %233 : vector<2x128xf32> to vector<2x128xbf16>
    %235 = arith.index_cast %c4_i32 : i32 to index
    %c0_80 = arith.constant 0 : index
    %c0_81 = arith.constant 0 : index
    %236 = vector.load %arg6[%235, %c0_80, %c0_81] : memref<8x2x128xbf16, #tpu.memory_space<vmem>>, vector<1x2x128xbf16>
    %237 = vector.shape_cast %236 : vector<1x2x128xbf16> to vector<2x128xbf16>
    %238 = vector.shape_cast %234 : vector<2x128xbf16> to vector<1x2x128xbf16>
    tpu.vector_store %arg6[%235, %c0_80, %c0_81], %238 {strides = array<i32>} : memref<8x2x128xbf16, #tpu.memory_space<vmem>>, vector<1x2x128xbf16>,
    %c5_i32 = arith.constant 5 : i32
    %239 = arith.index_cast %c5_i32 : i32 to index
    %c0_82 = arith.constant 0 : index
    %c0_83 = arith.constant 0 : index
    %240 = vector.load %arg2[%239, %c0_82, %c0_83] : memref<8x2x384xbf16, #tpu.memory_space<vmem>>, vector<1x2x384xbf16>
    %241 = vector.shape_cast %240 : vector<1x2x384xbf16> to vector<2x384xbf16>
    %242 = arith.truncf %233 : vector<2x128xf32> to vector<2x128xbf16>
    %c0_84 = arith.constant 0 : index
    %c0_85 = arith.constant 0 : index
    %243 = vector.load %arg4[%c0_84, %c0_85] : memref<128x384xbf16, #tpu.memory_space<vmem>>, vector<128x384xbf16>
    %cst_86 = arith.constant dense<0.000000e+00> : vector<2x384xf32>
    %244 = tpu.matmul %242, %243, %cst_86 {dimension_numbers = #tpu.dot_dimension_numbers<[1], [0], [0], [1], [0, 0, 1, 1], [], []>} : vector<2x128xbf16>, vector<128x384xbf16>, vector<2x384xf32> -> vector<2x384xf32>
    %245 = vector.extract_strided_slice %241 {offsets = [0, 0], sizes = [2, 128], strides = [1, 1]} : vector<2x384xbf16> to vector<2x128xbf16>
    %246 = vector.extract_strided_slice %244 {offsets = [0, 0], sizes = [2, 128], strides = [1, 1]} : vector<2x384xf32> to vector<2x128xf32>
    %247 = arith.extf %245 : vector<2x128xbf16> to vector<2x128xf32>
    %248 = arith.addf %247, %246 : vector<2x128xf32>
    %cst_87 = arith.constant 5.000000e-01 : f32
    %249 = vector.broadcast %cst_87 : f32 to vector<2x128xf32>
    %250 = arith.mulf %249, %248 : vector<2x128xf32>
    %251 = math.tanh %250 : vector<2x128xf32>
    %cst_88 = arith.constant 5.000000e-01 : f32
    %252 = vector.broadcast %cst_88 : f32 to vector<2x128xf32>
    %253 = arith.mulf %252, %251 : vector<2x128xf32>
    %cst_89 = arith.constant 5.000000e-01 : f32
    %254 = vector.broadcast %cst_89 : f32 to vector<2x128xf32>
    %255 = arith.addf %253, %254 : vector<2x128xf32>
    %256 = vector.extract_strided_slice %241 {offsets = [0, 128], sizes = [2, 128], strides = [1, 1]} : vector<2x384xbf16> to vector<2x128xbf16>
    %257 = vector.extract_strided_slice %244 {offsets = [0, 128], sizes = [2, 128], strides = [1, 1]} : vector<2x384xf32> to vector<2x128xf32>
    %258 = arith.extf %256 : vector<2x128xbf16> to vector<2x128xf32>
    %259 = arith.addf %258, %257 : vector<2x128xf32>
    %cst_90 = arith.constant 5.000000e-01 : f32
    %260 = vector.broadcast %cst_90 : f32 to vector<2x128xf32>
    %261 = arith.mulf %260, %259 : vector<2x128xf32>
    %262 = math.tanh %261 : vector<2x128xf32>
    %cst_91 = arith.constant 5.000000e-01 : f32
    %263 = vector.broadcast %cst_91 : f32 to vector<2x128xf32>
    %264 = arith.mulf %263, %262 : vector<2x128xf32>
    %cst_92 = arith.constant 5.000000e-01 : f32
    %265 = vector.broadcast %cst_92 : f32 to vector<2x128xf32>
    %266 = arith.addf %264, %265 : vector<2x128xf32>
    %267 = vector.extract_strided_slice %241 {offsets = [0, 256], sizes = [2, 128], strides = [1, 1]} : vector<2x384xbf16> to vector<2x128xbf16>
    %268 = vector.extract_strided_slice %244 {offsets = [0, 256], sizes = [2, 128], strides = [1, 1]} : vector<2x384xf32> to vector<2x128xf32>
    %c0_93 = arith.constant 0 : index
    %c0_94 = arith.constant 0 : index
    %269 = vector.load %arg5[%c0_93, %c0_94] : memref<1x128xf32, #tpu.memory_space<vmem>>, vector<1x128xf32>
    %270 = vector.broadcast %269 : vector<1x128xf32> to vector<2x128xf32>
    %271 = arith.addf %268, %270 : vector<2x128xf32>
    %272 = arith.mulf %255, %271 : vector<2x128xf32>
    %273 = arith.extf %267 : vector<2x128xbf16> to vector<2x128xf32>
    %274 = arith.addf %273, %272 : vector<2x128xf32>
    %275 = math.tanh %274 : vector<2x128xf32>
    %cst_95 = arith.constant 1.000000e+00 : f32
    %276 = vector.broadcast %cst_95 : f32 to vector<2x128xf32>
    %277 = arith.subf %276, %266 : vector<2x128xf32>
    %278 = arith.mulf %277, %275 : vector<2x128xf32>
    %279 = arith.mulf %266, %233 : vector<2x128xf32>
    %280 = arith.addf %278, %279 : vector<2x128xf32>
    %281 = arith.truncf %280 : vector<2x128xf32> to vector<2x128xbf16>
    %282 = arith.index_cast %c5_i32 : i32 to index
    %c0_96 = arith.constant 0 : index
    %c0_97 = arith.constant 0 : index
    %283 = vector.load %arg6[%282, %c0_96, %c0_97] : memref<8x2x128xbf16, #tpu.memory_space<vmem>>, vector<1x2x128xbf16>
    %284 = vector.shape_cast %283 : vector<1x2x128xbf16> to vector<2x128xbf16>
    %285 = vector.shape_cast %281 : vector<2x128xbf16> to vector<1x2x128xbf16>
    tpu.vector_store %arg6[%282, %c0_96, %c0_97], %285 {strides = array<i32>} : memref<8x2x128xbf16, #tpu.memory_space<vmem>>, vector<1x2x128xbf16>,
    %c6_i32 = arith.constant 6 : i32
    %286 = arith.index_cast %c6_i32 : i32 to index
    %c0_98 = arith.constant 0 : index
    %c0_99 = arith.constant 0 : index
    %287 = vector.load %arg2[%286, %c0_98, %c0_99] : memref<8x2x384xbf16, #tpu.memory_space<vmem>>, vector<1x2x384xbf16>
    %288 = vector.shape_cast %287 : vector<1x2x384xbf16> to vector<2x384xbf16>
    %289 = arith.truncf %280 : vector<2x128xf32> to vector<2x128xbf16>
    %c0_100 = arith.constant 0 : index
    %c0_101 = arith.constant 0 : index
    %290 = vector.load %arg4[%c0_100, %c0_101] : memref<128x384xbf16, #tpu.memory_space<vmem>>, vector<128x384xbf16>
    %cst_102 = arith.constant dense<0.000000e+00> : vector<2x384xf32>
    %291 = tpu.matmul %289, %290, %cst_102 {dimension_numbers = #tpu.dot_dimension_numbers<[1], [0], [0], [1], [0, 0, 1, 1], [], []>} : vector<2x128xbf16>, vector<128x384xbf16>, vector<2x384xf32> -> vector<2x384xf32>
    %292 = vector.extract_strided_slice %288 {offsets = [0, 0], sizes = [2, 128], strides = [1, 1]} : vector<2x384xbf16> to vector<2x128xbf16>
    %293 = vector.extract_strided_slice %291 {offsets = [0, 0], sizes = [2, 128], strides = [1, 1]} : vector<2x384xf32> to vector<2x128xf32>
    %294 = arith.extf %292 : vector<2x128xbf16> to vector<2x128xf32>
    %295 = arith.addf %294, %293 : vector<2x128xf32>
    %cst_103 = arith.constant 5.000000e-01 : f32
    %296 = vector.broadcast %cst_103 : f32 to vector<2x128xf32>
    %297 = arith.mulf %296, %295 : vector<2x128xf32>
    %298 = math.tanh %297 : vector<2x128xf32>
    %cst_104 = arith.constant 5.000000e-01 : f32
    %299 = vector.broadcast %cst_104 : f32 to vector<2x128xf32>
    %300 = arith.mulf %299, %298 : vector<2x128xf32>
    %cst_105 = arith.constant 5.000000e-01 : f32
    %301 = vector.broadcast %cst_105 : f32 to vector<2x128xf32>
    %302 = arith.addf %300, %301 : vector<2x128xf32>
    %303 = vector.extract_strided_slice %288 {offsets = [0, 128], sizes = [2, 128], strides = [1, 1]} : vector<2x384xbf16> to vector<2x128xbf16>
    %304 = vector.extract_strided_slice %291 {offsets = [0, 128], sizes = [2, 128], strides = [1, 1]} : vector<2x384xf32> to vector<2x128xf32>
    %305 = arith.extf %303 : vector<2x128xbf16> to vector<2x128xf32>
    %306 = arith.addf %305, %304 : vector<2x128xf32>
    %cst_106 = arith.constant 5.000000e-01 : f32
    %307 = vector.broadcast %cst_106 : f32 to vector<2x128xf32>
    %308 = arith.mulf %307, %306 : vector<2x128xf32>
    %309 = math.tanh %308 : vector<2x128xf32>
    %cst_107 = arith.constant 5.000000e-01 : f32
    %310 = vector.broadcast %cst_107 : f32 to vector<2x128xf32>
    %311 = arith.mulf %310, %309 : vector<2x128xf32>
    %cst_108 = arith.constant 5.000000e-01 : f32
    %312 = vector.broadcast %cst_108 : f32 to vector<2x128xf32>
    %313 = arith.addf %311, %312 : vector<2x128xf32>
    %314 = vector.extract_strided_slice %288 {offsets = [0, 256], sizes = [2, 128], strides = [1, 1]} : vector<2x384xbf16> to vector<2x128xbf16>
    %315 = vector.extract_strided_slice %291 {offsets = [0, 256], sizes = [2, 128], strides = [1, 1]} : vector<2x384xf32> to vector<2x128xf32>
    %c0_109 = arith.constant 0 : index
    %c0_110 = arith.constant 0 : index
    %316 = vector.load %arg5[%c0_109, %c0_110] : memref<1x128xf32, #tpu.memory_space<vmem>>, vector<1x128xf32>
    %317 = vector.broadcast %316 : vector<1x128xf32> to vector<2x128xf32>
    %318 = arith.addf %315, %317 : vector<2x128xf32>
    %319 = arith.mulf %302, %318 : vector<2x128xf32>
    %320 = arith.extf %314 : vector<2x128xbf16> to vector<2x128xf32>
    %321 = arith.addf %320, %319 : vector<2x128xf32>
    %322 = math.tanh %321 : vector<2x128xf32>
    %cst_111 = arith.constant 1.000000e+00 : f32
    %323 = vector.broadcast %cst_111 : f32 to vector<2x128xf32>
    %324 = arith.subf %323, %313 : vector<2x128xf32>
    %325 = arith.mulf %324, %322 : vector<2x128xf32>
    %326 = arith.mulf %313, %280 : vector<2x128xf32>
    %327 = arith.addf %325, %326 : vector<2x128xf32>
    %328 = arith.truncf %327 : vector<2x128xf32> to vector<2x128xbf16>
    %329 = arith.index_cast %c6_i32 : i32 to index
    %c0_112 = arith.constant 0 : index
    %c0_113 = arith.constant 0 : index
    %330 = vector.load %arg6[%329, %c0_112, %c0_113] : memref<8x2x128xbf16, #tpu.memory_space<vmem>>, vector<1x2x128xbf16>
    %331 = vector.shape_cast %330 : vector<1x2x128xbf16> to vector<2x128xbf16>
    %332 = vector.shape_cast %328 : vector<2x128xbf16> to vector<1x2x128xbf16>
    tpu.vector_store %arg6[%329, %c0_112, %c0_113], %332 {strides = array<i32>} : memref<8x2x128xbf16, #tpu.memory_space<vmem>>, vector<1x2x128xbf16>,
    %c7_i32 = arith.constant 7 : i32
    %333 = arith.index_cast %c7_i32 : i32 to index
    %c0_114 = arith.constant 0 : index
    %c0_115 = arith.constant 0 : index
    %334 = vector.load %arg2[%333, %c0_114, %c0_115] : memref<8x2x384xbf16, #tpu.memory_space<vmem>>, vector<1x2x384xbf16>
    %335 = vector.shape_cast %334 : vector<1x2x384xbf16> to vector<2x384xbf16>
    %336 = arith.truncf %327 : vector<2x128xf32> to vector<2x128xbf16>
    %c0_116 = arith.constant 0 : index
    %c0_117 = arith.constant 0 : index
    %337 = vector.load %arg4[%c0_116, %c0_117] : memref<128x384xbf16, #tpu.memory_space<vmem>>, vector<128x384xbf16>
    %cst_118 = arith.constant dense<0.000000e+00> : vector<2x384xf32>
    %338 = tpu.matmul %336, %337, %cst_118 {dimension_numbers = #tpu.dot_dimension_numbers<[1], [0], [0], [1], [0, 0, 1, 1], [], []>} : vector<2x128xbf16>, vector<128x384xbf16>, vector<2x384xf32> -> vector<2x384xf32>
    %339 = vector.extract_strided_slice %335 {offsets = [0, 0], sizes = [2, 128], strides = [1, 1]} : vector<2x384xbf16> to vector<2x128xbf16>
    %340 = vector.extract_strided_slice %338 {offsets = [0, 0], sizes = [2, 128], strides = [1, 1]} : vector<2x384xf32> to vector<2x128xf32>
    %341 = arith.extf %339 : vector<2x128xbf16> to vector<2x128xf32>
    %342 = arith.addf %341, %340 : vector<2x128xf32>
    %cst_119 = arith.constant 5.000000e-01 : f32
    %343 = vector.broadcast %cst_119 : f32 to vector<2x128xf32>
    %344 = arith.mulf %343, %342 : vector<2x128xf32>
    %345 = math.tanh %344 : vector<2x128xf32>
    %cst_120 = arith.constant 5.000000e-01 : f32
    %346 = vector.broadcast %cst_120 : f32 to vector<2x128xf32>
    %347 = arith.mulf %346, %345 : vector<2x128xf32>
    %cst_121 = arith.constant 5.000000e-01 : f32
    %348 = vector.broadcast %cst_121 : f32 to vector<2x128xf32>
    %349 = arith.addf %347, %348 : vector<2x128xf32>
    %350 = vector.extract_strided_slice %335 {offsets = [0, 128], sizes = [2, 128], strides = [1, 1]} : vector<2x384xbf16> to vector<2x128xbf16>
    %351 = vector.extract_strided_slice %338 {offsets = [0, 128], sizes = [2, 128], strides = [1, 1]} : vector<2x384xf32> to vector<2x128xf32>
    %352 = arith.extf %350 : vector<2x128xbf16> to vector<2x128xf32>
    %353 = arith.addf %352, %351 : vector<2x128xf32>
    %cst_122 = arith.constant 5.000000e-01 : f32
    %354 = vector.broadcast %cst_122 : f32 to vector<2x128xf32>
    %355 = arith.mulf %354, %353 : vector<2x128xf32>
    %356 = math.tanh %355 : vector<2x128xf32>
    %cst_123 = arith.constant 5.000000e-01 : f32
    %357 = vector.broadcast %cst_123 : f32 to vector<2x128xf32>
    %358 = arith.mulf %357, %356 : vector<2x128xf32>
    %cst_124 = arith.constant 5.000000e-01 : f32
    %359 = vector.broadcast %cst_124 : f32 to vector<2x128xf32>
    %360 = arith.addf %358, %359 : vector<2x128xf32>
    %361 = vector.extract_strided_slice %335 {offsets = [0, 256], sizes = [2, 128], strides = [1, 1]} : vector<2x384xbf16> to vector<2x128xbf16>
    %362 = vector.extract_strided_slice %338 {offsets = [0, 256], sizes = [2, 128], strides = [1, 1]} : vector<2x384xf32> to vector<2x128xf32>
    %c0_125 = arith.constant 0 : index
    %c0_126 = arith.constant 0 : index
    %363 = vector.load %arg5[%c0_125, %c0_126] : memref<1x128xf32, #tpu.memory_space<vmem>>, vector<1x128xf32>
    %364 = vector.broadcast %363 : vector<1x128xf32> to vector<2x128xf32>
    %365 = arith.addf %362, %364 : vector<2x128xf32>
    %366 = arith.mulf %349, %365 : vector<2x128xf32>
    %367 = arith.extf %361 : vector<2x128xbf16> to vector<2x128xf32>
    %368 = arith.addf %367, %366 : vector<2x128xf32>
    %369 = math.tanh %368 : vector<2x128xf32>
    %cst_127 = arith.constant 1.000000e+00 : f32
    %370 = vector.broadcast %cst_127 : f32 to vector<2x128xf32>
    %371 = arith.subf %370, %360 : vector<2x128xf32>
    %372 = arith.mulf %371, %369 : vector<2x128xf32>
    %373 = arith.mulf %360, %327 : vector<2x128xf32>
    %374 = arith.addf %372, %373 : vector<2x128xf32>
    %375 = arith.truncf %374 : vector<2x128xf32> to vector<2x128xbf16>
    %376 = arith.index_cast %c7_i32 : i32 to index
    %c0_128 = arith.constant 0 : index
    %c0_129 = arith.constant 0 : index
    %377 = vector.load %arg6[%376, %c0_128, %c0_129] : memref<8x2x128xbf16, #tpu.memory_space<vmem>>, vector<1x2x128xbf16>
    %378 = vector.shape_cast %377 : vector<1x2x128xbf16> to vector<2x128xbf16>
    %379 = vector.shape_cast %375 : vector<2x128xbf16> to vector<1x2x128xbf16>
    tpu.vector_store %arg6[%376, %c0_128, %c0_129], %379 {strides = array<i32>} : memref<8x2x128xbf16, #tpu.memory_space<vmem>>, vector<1x2x128xbf16>,
    %c8_i32 = arith.constant 8 : i32
    %c0_130 = arith.constant 0 : index
    %c0_131 = arith.constant 0 : index
    %380 = vector.load %arg8[%c0_130, %c0_131] : memref<2x128xf32, #tpu.memory_space<vmem>>, vector<2x128xf32>
    tpu.vector_store %arg8[%c0_130, %c0_131], %374 {strides = array<i32>} : memref<2x128xf32, #tpu.memory_space<vmem>>, vector<2x128xf32>,
    %c0_i32_132 = arith.constant 0 : i32
    %381 = arith.cmpi eq, %arg1, %c0_i32_132 : i32
    %382 = arith.extui %381 : i1 to i32
    %c0_i32_133 = arith.constant 0 : i32
    %383 = arith.cmpi ne, %382, %c0_i32_133 : i32
    scf.if %383 {
      %c0_134 = arith.constant 0 : index
      %c0_135 = arith.constant 0 : index
      %384 = vector.load %arg7[%c0_134, %c0_135] : memref<2x128xf32, #tpu.memory_space<vmem>>, vector<2x128xf32>
      tpu.vector_store %arg7[%c0_134, %c0_135], %374 {strides = array<i32>} : memref<2x128xf32, #tpu.memory_space<vmem>>, vector<2x128xf32>,
    } else {
    }
    return
  }
  func.func @transform_0(%arg0: i32, %arg1: i32) -> (i32, i32, i32) {
    %c0_i32 = arith.constant 0 : i32
    %c0_i32_0 = arith.constant 0 : i32
    return %arg1, %arg0, %c0_i32 : i32, i32, i32
  }
  func.func @transform_1(%arg0: i32, %arg1: i32) -> (i32, i32) {
    %c0_i32 = arith.constant 0 : i32
    %c0_i32_0 = arith.constant 0 : i32
    return %arg0, %c0_i32 : i32, i32
  }
  func.func @transform_2(%arg0: i32, %arg1: i32) -> (i32, i32) {
    %c0_i32 = arith.constant 0 : i32
    %c0_i32_0 = arith.constant 0 : i32
    %c0_i32_1 = arith.constant 0 : i32
    return %c0_i32, %c0_i32_0 : i32, i32
  }
  func.func @transform_3(%arg0: i32, %arg1: i32) -> (i32, i32) {
    %c0_i32 = arith.constant 0 : i32
    %c0_i32_0 = arith.constant 0 : i32
    %c0_i32_1 = arith.constant 0 : i32
    return %c0_i32, %c0_i32_0 : i32, i32
  }
  func.func @transform_4(%arg0: i32, %arg1: i32) -> (i32, i32, i32) {
    %c0_i32 = arith.constant 0 : i32
    %c0_i32_0 = arith.constant 0 : i32
    return %arg1, %arg0, %c0_i32 : i32, i32, i32
  }
  func.func @transform_5(%arg0: i32, %arg1: i32) -> (i32, i32) {
    %c0_i32 = arith.constant 0 : i32
    %c0_i32_0 = arith.constant 0 : i32
    return %arg0, %c0_i32 : i32, i32
  }
}

module attributes {stable_mosaic.version = 11 : i64} {
  func.func @_gru_recurrence_kernel(%arg0: i32, %arg1: i32, %arg2: memref<8x2x384xbf16, #tpu.memory_space<vmem>>, %arg3: memref<2x128xf32, #tpu.memory_space<vmem>>, %arg4: memref<128x384xbf16, #tpu.memory_space<vmem>>, %arg5: memref<1x128xf32, #tpu.memory_space<vmem>>, %arg6: memref<8x2x128xbf16, #tpu.memory_space<vmem>>, %arg7: memref<2x128xf32, #tpu.memory_space<vmem>>, %arg8: memref<2x128xf32, #tpu.memory_space<vmem>>) attributes {dimension_semantics = [#tpu.dimension_semantics<parallel>, #tpu.dimension_semantics<arbitrary>], iteration_bounds = array<i64: 1, 1>, scalar_prefetch = 0 : i64, scratch_operands = 1 : i64, tpu.core_type = #tpu.core_type<tc>, window_params = [{transform_indices = @transform_0, window_bounds = array<i64: 8, 2, 384>}, {transform_indices = @transform_1, window_bounds = array<i64: 2, 128>}, {pipeline_mode = #tpu.pipeline_mode<synchronous>, transform_indices = @transform_2, window_bounds = array<i64: 128, 384>}, {pipeline_mode = #tpu.pipeline_mode<synchronous>, transform_indices = @transform_3, window_bounds = array<i64: 1, 128>}, {transform_indices = @transform_4, window_bounds = array<i64: 8, 2, 128>}, {transform_indices = @transform_5, window_bounds = array<i64: 2, 128>}]} {
    %c0_i32 = arith.constant 0 : i32
    %0 = arith.cmpi eq, %arg1, %c0_i32 : i32
    %1 = arith.extui %0 : i1 to i32
    %c0_i32_0 = arith.constant 0 : i32
    %2 = arith.cmpi ne, %1, %c0_i32_0 : i32
    scf.if %2 {
      %c0_134 = arith.constant 0 : index
      %c0_135 = arith.constant 0 : index
      %384 = vector.load %arg3[%c0_134, %c0_135] : memref<2x128xf32, #tpu.memory_space<vmem>>, vector<2x128xf32>
      %c0_136 = arith.constant 0 : index
      %c0_137 = arith.constant 0 : index
      %385 = vector.load %arg8[%c0_136, %c0_137] : memref<2x128xf32, #tpu.memory_space<vmem>>, vector<2x128xf32>
      tpu.vector_store %arg8[%c0_136, %c0_137], %384 {strides = array<i32>} : memref<2x128xf32, #tpu.memory_space<vmem>>, vector<2x128xf32>,
    } else {
    }
    %c0 = arith.constant 0 : index
    %c0_1 = arith.constant 0 : index
    %3 = vector.load %arg8[%c0, %c0_1] : memref<2x128xf32, #tpu.memory_space<vmem>>, vector<2x128xf32>
    %c0_i32_2 = arith.constant 0 : i32
    %4 = arith.index_cast %c0_i32_2 : i32 to index
    %c0_3 = arith.constant 0 : index
    %c0_4 = arith.constant 0 : index
    %5 = vector.load %arg2[%4, %c0_3, %c0_4] : memref<8x2x384xbf16, #tpu.memory_space<vmem>>, vector<1x2x384xbf16>
    %6 = vector.shape_cast %5 : vector<1x2x384xbf16> to vector<2x384xbf16>
    %7 = arith.truncf %3 : vector<2x128xf32> to vector<2x128xbf16>
    %c0_5 = arith.constant 0 : index
    %c0_6 = arith.constant 0 : index
    %8 = vector.load %arg4[%c0_5, %c0_6] : memref<128x384xbf16, #tpu.memory_space<vmem>>, vector<128x384xbf16>
    %cst = arith.constant dense<0.000000e+00> : vector<2x384xf32>
    %9 = tpu.matmul %7, %8, %cst {dimension_numbers = #tpu.dot_dimension_numbers<[1], [0], [0], [1], [0, 0, 1, 1], [], []>} : vector<2x128xbf16>, vector<128x384xbf16>, vector<2x384xf32> -> vector<2x384xf32>
    %10 = vector.extract_strided_slice %6 {offsets = [0, 0], sizes = [2, 128], strides = [1, 1]} : vector<2x384xbf16> to vector<2x128xbf16>
    %11 = vector.extract_strided_slice %9 {offsets = [0, 0], sizes = [2, 128], strides = [1, 1]} : vector<2x384xf32> to vector<2x128xf32>
    %12 = arith.extf %10 : vector<2x128xbf16> to vector<2x128xf32>
    %13 = arith.addf %12, %11 : vector<2x128xf32>
    %cst_7 = arith.constant 5.000000e-01 : f32
    %14 = vector.broadcast %cst_7 : f32 to vector<2x128xf32>
    %15 = arith.mulf %14, %13 : vector<2x128xf32>
    %16 = math.tanh %15 : vector<2x128xf32>
    %cst_8 = arith.constant 5.000000e-01 : f32
    %17 = vector.broadcast %cst_8 : f32 to vector<2x128xf32>
    %18 = arith.mulf %17, %16 : vector<2x128xf32>
    %cst_9 = arith.constant 5.000000e-01 : f32
    %19 = vector.broadcast %cst_9 : f32 to vector<2x128xf32>
    %20 = arith.addf %18, %19 : vector<2x128xf32>
    %21 = vector.extract_strided_slice %6 {offsets = [0, 128], sizes = [2, 128], strides = [1, 1]} : vector<2x384xbf16> to vector<2x128xbf16>
    %22 = vector.extract_strided_slice %9 {offsets = [0, 128], sizes = [2, 128], strides = [1, 1]} : vector<2x384xf32> to vector<2x128xf32>
    %23 = arith.extf %21 : vector<2x128xbf16> to vector<2x128xf32>
    %24 = arith.addf %23, %22 : vector<2x128xf32>
    %cst_10 = arith.constant 5.000000e-01 : f32
    %25 = vector.broadcast %cst_10 : f32 to vector<2x128xf32>
    %26 = arith.mulf %25, %24 : vector<2x128xf32>
    %27 = math.tanh %26 : vector<2x128xf32>
    %cst_11 = arith.constant 5.000000e-01 : f32
    %28 = vector.broadcast %cst_11 : f32 to vector<2x128xf32>
    %29 = arith.mulf %28, %27 : vector<2x128xf32>
    %cst_12 = arith.constant 5.000000e-01 : f32
    %30 = vector.broadcast %cst_12 : f32 to vector<2x128xf32>
    %31 = arith.addf %29, %30 : vector<2x128xf32>
    %32 = vector.extract_strided_slice %6 {offsets = [0, 256], sizes = [2, 128], strides = [1, 1]} : vector<2x384xbf16> to vector<2x128xbf16>
    %33 = vector.extract_strided_slice %9 {offsets = [0, 256], sizes = [2, 128], strides = [1, 1]} : vector<2x384xf32> to vector<2x128xf32>
    %c0_13 = arith.constant 0 : index
    %c0_14 = arith.constant 0 : index
    %34 = vector.load %arg5[%c0_13, %c0_14] : memref<1x128xf32, #tpu.memory_space<vmem>>, vector<1x128xf32>
    %35 = vector.broadcast %34 : vector<1x128xf32> to vector<2x128xf32>
    %36 = arith.addf %33, %35 : vector<2x128xf32>
    %37 = arith.mulf %20, %36 : vector<2x128xf32>
    %38 = arith.extf %32 : vector<2x128xbf16> to vector<2x128xf32>
    %39 = arith.addf %38, %37 : vector<2x128xf32>
    %40 = math.tanh %39 : vector<2x128xf32>
    %cst_15 = arith.constant 1.000000e+00 : f32
    %41 = vector.broadcast %cst_15 : f32 to vector<2x128xf32>
    %42 = arith.subf %41, %31 : vector<2x128xf32>
    %43 = arith.mulf %42, %40 : vector<2x128xf32>
    %44 = arith.mulf %31, %3 : vector<2x128xf32>
    %45 = arith.addf %43, %44 : vector<2x128xf32>
    %46 = arith.truncf %45 : vector<2x128xf32> to vector<2x128xbf16>
    %47 = arith.index_cast %c0_i32_2 : i32 to index
    %c0_16 = arith.constant 0 : index
    %c0_17 = arith.constant 0 : index
    %48 = vector.load %arg6[%47, %c0_16, %c0_17] : memref<8x2x128xbf16, #tpu.memory_space<vmem>>, vector<1x2x128xbf16>
    %49 = vector.shape_cast %48 : vector<1x2x128xbf16> to vector<2x128xbf16>
    %50 = vector.shape_cast %46 : vector<2x128xbf16> to vector<1x2x128xbf16>
    tpu.vector_store %arg6[%47, %c0_16, %c0_17], %50 {strides = array<i32>} : memref<8x2x128xbf16, #tpu.memory_space<vmem>>, vector<1x2x128xbf16>,
    %c1_i32 = arith.constant 1 : i32
    %51 = arith.index_cast %c1_i32 : i32 to index
    %c0_18 = arith.constant 0 : index
    %c0_19 = arith.constant 0 : index
    %52 = vector.load %arg2[%51, %c0_18, %c0_19] : memref<8x2x384xbf16, #tpu.memory_space<vmem>>, vector<1x2x384xbf16>
    %53 = vector.shape_cast %52 : vector<1x2x384xbf16> to vector<2x384xbf16>
    %54 = arith.truncf %45 : vector<2x128xf32> to vector<2x128xbf16>
    %c0_20 = arith.constant 0 : index
    %c0_21 = arith.constant 0 : index
    %55 = vector.load %arg4[%c0_20, %c0_21] : memref<128x384xbf16, #tpu.memory_space<vmem>>, vector<128x384xbf16>
    %cst_22 = arith.constant dense<0.000000e+00> : vector<2x384xf32>
    %56 = tpu.matmul %54, %55, %cst_22 {dimension_numbers = #tpu.dot_dimension_numbers<[1], [0], [0], [1], [0, 0, 1, 1], [], []>} : vector<2x128xbf16>, vector<128x384xbf16>, vector<2x384xf32> -> vector<2x384xf32>
    %57 = vector.extract_strided_slice %53 {offsets = [0, 0], sizes = [2, 128], strides = [1, 1]} : vector<2x384xbf16> to vector<2x128xbf16>
    %58 = vector.extract_strided_slice %56 {offsets = [0, 0], sizes = [2, 128], strides = [1, 1]} : vector<2x384xf32> to vector<2x128xf32>
    %59 = arith.extf %57 : vector<2x128xbf16> to vector<2x128xf32>
    %60 = arith.addf %59, %58 : vector<2x128xf32>
    %cst_23 = arith.constant 5.000000e-01 : f32
    %61 = vector.broadcast %cst_23 : f32 to vector<2x128xf32>
    %62 = arith.mulf %61, %60 : vector<2x128xf32>
    %63 = math.tanh %62 : vector<2x128xf32>
    %cst_24 = arith.constant 5.000000e-01 : f32
    %64 = vector.broadcast %cst_24 : f32 to vector<2x128xf32>
    %65 = arith.mulf %64, %63 : vector<2x128xf32>
    %cst_25 = arith.constant 5.000000e-01 : f32
    %66 = vector.broadcast %cst_25 : f32 to vector<2x128xf32>
    %67 = arith.addf %65, %66 : vector<2x128xf32>
    %68 = vector.extract_strided_slice %53 {offsets = [0, 128], sizes = [2, 128], strides = [1, 1]} : vector<2x384xbf16> to vector<2x128xbf16>
    %69 = vector.extract_strided_slice %56 {offsets = [0, 128], sizes = [2, 128], strides = [1, 1]} : vector<2x384xf32> to vector<2x128xf32>
    %70 = arith.extf %68 : vector<2x128xbf16> to vector<2x128xf32>
    %71 = arith.addf %70, %69 : vector<2x128xf32>
    %cst_26 = arith.constant 5.000000e-01 : f32
    %72 = vector.broadcast %cst_26 : f32 to vector<2x128xf32>
    %73 = arith.mulf %72, %71 : vector<2x128xf32>
    %74 = math.tanh %73 : vector<2x128xf32>
    %cst_27 = arith.constant 5.000000e-01 : f32
    %75 = vector.broadcast %cst_27 : f32 to vector<2x128xf32>
    %76 = arith.mulf %75, %74 : vector<2x128xf32>
    %cst_28 = arith.constant 5.000000e-01 : f32
    %77 = vector.broadcast %cst_28 : f32 to vector<2x128xf32>
    %78 = arith.addf %76, %77 : vector<2x128xf32>
    %79 = vector.extract_strided_slice %53 {offsets = [0, 256], sizes = [2, 128], strides = [1, 1]} : vector<2x384xbf16> to vector<2x128xbf16>
    %80 = vector.extract_strided_slice %56 {offsets = [0, 256], sizes = [2, 128], strides = [1, 1]} : vector<2x384xf32> to vector<2x128xf32>
    %c0_29 = arith.constant 0 : index
    %c0_30 = arith.constant 0 : index
    %81 = vector.load %arg5[%c0_29, %c0_30] : memref<1x128xf32, #tpu.memory_space<vmem>>, vector<1x128xf32>
    %82 = vector.broadcast %81 : vector<1x128xf32> to vector<2x128xf32>
    %83 = arith.addf %80, %82 : vector<2x128xf32>
    %84 = arith.mulf %67, %83 : vector<2x128xf32>
    %85 = arith.extf %79 : vector<2x128xbf16> to vector<2x128xf32>
    %86 = arith.addf %85, %84 : vector<2x128xf32>
    %87 = math.tanh %86 : vector<2x128xf32>
    %cst_31 = arith.constant 1.000000e+00 : f32
    %88 = vector.broadcast %cst_31 : f32 to vector<2x128xf32>
    %89 = arith.subf %88, %78 : vector<2x128xf32>
    %90 = arith.mulf %89, %87 : vector<2x128xf32>
    %91 = arith.mulf %78, %45 : vector<2x128xf32>
    %92 = arith.addf %90, %91 : vector<2x128xf32>
    %93 = arith.truncf %92 : vector<2x128xf32> to vector<2x128xbf16>
    %94 = arith.index_cast %c1_i32 : i32 to index
    %c0_32 = arith.constant 0 : index
    %c0_33 = arith.constant 0 : index
    %95 = vector.load %arg6[%94, %c0_32, %c0_33] : memref<8x2x128xbf16, #tpu.memory_space<vmem>>, vector<1x2x128xbf16>
    %96 = vector.shape_cast %95 : vector<1x2x128xbf16> to vector<2x128xbf16>
    %97 = vector.shape_cast %93 : vector<2x128xbf16> to vector<1x2x128xbf16>
    tpu.vector_store %arg6[%94, %c0_32, %c0_33], %97 {strides = array<i32>} : memref<8x2x128xbf16, #tpu.memory_space<vmem>>, vector<1x2x128xbf16>,
    %c2_i32 = arith.constant 2 : i32
    %98 = arith.index_cast %c2_i32 : i32 to index
    %c0_34 = arith.constant 0 : index
    %c0_35 = arith.constant 0 : index
    %99 = vector.load %arg2[%98, %c0_34, %c0_35] : memref<8x2x384xbf16, #tpu.memory_space<vmem>>, vector<1x2x384xbf16>
    %100 = vector.shape_cast %99 : vector<1x2x384xbf16> to vector<2x384xbf16>
    %101 = arith.truncf %92 : vector<2x128xf32> to vector<2x128xbf16>
    %c0_36 = arith.constant 0 : index
    %c0_37 = arith.constant 0 : index
    %102 = vector.load %arg4[%c0_36, %c0_37] : memref<128x384xbf16, #tpu.memory_space<vmem>>, vector<128x384xbf16>
    %cst_38 = arith.constant dense<0.000000e+00> : vector<2x384xf32>
    %103 = tpu.matmul %101, %102, %cst_38 {dimension_numbers = #tpu.dot_dimension_numbers<[1], [0], [0], [1], [0, 0, 1, 1], [], []>} : vector<2x128xbf16>, vector<128x384xbf16>, vector<2x384xf32> -> vector<2x384xf32>
    %104 = vector.extract_strided_slice %100 {offsets = [0, 0], sizes = [2, 128], strides = [1, 1]} : vector<2x384xbf16> to vector<2x128xbf16>
    %105 = vector.extract_strided_slice %103 {offsets = [0, 0], sizes = [2, 128], strides = [1, 1]} : vector<2x384xf32> to vector<2x128xf32>
    %106 = arith.extf %104 : vector<2x128xbf16> to vector<2x128xf32>
    %107 = arith.addf %106, %105 : vector<2x128xf32>
    %cst_39 = arith.constant 5.000000e-01 : f32
    %108 = vector.broadcast %cst_39 : f32 to vector<2x128xf32>
    %109 = arith.mulf %108, %107 : vector<2x128xf32>
    %110 = math.tanh %109 : vector<2x128xf32>
    %cst_40 = arith.constant 5.000000e-01 : f32
    %111 = vector.broadcast %cst_40 : f32 to vector<2x128xf32>
    %112 = arith.mulf %111, %110 : vector<2x128xf32>
    %cst_41 = arith.constant 5.000000e-01 : f32
    %113 = vector.broadcast %cst_41 : f32 to vector<2x128xf32>
    %114 = arith.addf %112, %113 : vector<2x128xf32>
    %115 = vector.extract_strided_slice %100 {offsets = [0, 128], sizes = [2, 128], strides = [1, 1]} : vector<2x384xbf16> to vector<2x128xbf16>
    %116 = vector.extract_strided_slice %103 {offsets = [0, 128], sizes = [2, 128], strides = [1, 1]} : vector<2x384xf32> to vector<2x128xf32>
    %117 = arith.extf %115 : vector<2x128xbf16> to vector<2x128xf32>
    %118 = arith.addf %117, %116 : vector<2x128xf32>
    %cst_42 = arith.constant 5.000000e-01 : f32
    %119 = vector.broadcast %cst_42 : f32 to vector<2x128xf32>
    %120 = arith.mulf %119, %118 : vector<2x128xf32>
    %121 = math.tanh %120 : vector<2x128xf32>
    %cst_43 = arith.constant 5.000000e-01 : f32
    %122 = vector.broadcast %cst_43 : f32 to vector<2x128xf32>
    %123 = arith.mulf %122, %121 : vector<2x128xf32>
    %cst_44 = arith.constant 5.000000e-01 : f32
    %124 = vector.broadcast %cst_44 : f32 to vector<2x128xf32>
    %125 = arith.addf %123, %124 : vector<2x128xf32>
    %126 = vector.extract_strided_slice %100 {offsets = [0, 256], sizes = [2, 128], strides = [1, 1]} : vector<2x384xbf16> to vector<2x128xbf16>
    %127 = vector.extract_strided_slice %103 {offsets = [0, 256], sizes = [2, 128], strides = [1, 1]} : vector<2x384xf32> to vector<2x128xf32>
    %c0_45 = arith.constant 0 : index
    %c0_46 = arith.constant 0 : index
    %128 = vector.load %arg5[%c0_45, %c0_46] : memref<1x128xf32, #tpu.memory_space<vmem>>, vector<1x128xf32>
    %129 = vector.broadcast %128 : vector<1x128xf32> to vector<2x128xf32>
    %130 = arith.addf %127, %129 : vector<2x128xf32>
    %131 = arith.mulf %114, %130 : vector<2x128xf32>
    %132 = arith.extf %126 : vector<2x128xbf16> to vector<2x128xf32>
    %133 = arith.addf %132, %131 : vector<2x128xf32>
    %134 = math.tanh %133 : vector<2x128xf32>
    %cst_47 = arith.constant 1.000000e+00 : f32
    %135 = vector.broadcast %cst_47 : f32 to vector<2x128xf32>
    %136 = arith.subf %135, %125 : vector<2x128xf32>
    %137 = arith.mulf %136, %134 : vector<2x128xf32>
    %138 = arith.mulf %125, %92 : vector<2x128xf32>
    %139 = arith.addf %137, %138 : vector<2x128xf32>
    %140 = arith.truncf %139 : vector<2x128xf32> to vector<2x128xbf16>
    %141 = arith.index_cast %c2_i32 : i32 to index
    %c0_48 = arith.constant 0 : index
    %c0_49 = arith.constant 0 : index
    %142 = vector.load %arg6[%141, %c0_48, %c0_49] : memref<8x2x128xbf16, #tpu.memory_space<vmem>>, vector<1x2x128xbf16>
    %143 = vector.shape_cast %142 : vector<1x2x128xbf16> to vector<2x128xbf16>
    %144 = vector.shape_cast %140 : vector<2x128xbf16> to vector<1x2x128xbf16>
    tpu.vector_store %arg6[%141, %c0_48, %c0_49], %144 {strides = array<i32>} : memref<8x2x128xbf16, #tpu.memory_space<vmem>>, vector<1x2x128xbf16>,
    %c3_i32 = arith.constant 3 : i32
    %145 = arith.index_cast %c3_i32 : i32 to index
    %c0_50 = arith.constant 0 : index
    %c0_51 = arith.constant 0 : index
    %146 = vector.load %arg2[%145, %c0_50, %c0_51] : memref<8x2x384xbf16, #tpu.memory_space<vmem>>, vector<1x2x384xbf16>
    %147 = vector.shape_cast %146 : vector<1x2x384xbf16> to vector<2x384xbf16>
    %148 = arith.truncf %139 : vector<2x128xf32> to vector<2x128xbf16>
    %c0_52 = arith.constant 0 : index
    %c0_53 = arith.constant 0 : index
    %149 = vector.load %arg4[%c0_52, %c0_53] : memref<128x384xbf16, #tpu.memory_space<vmem>>, vector<128x384xbf16>
    %cst_54 = arith.constant dense<0.000000e+00> : vector<2x384xf32>
    %150 = tpu.matmul %148, %149, %cst_54 {dimension_numbers = #tpu.dot_dimension_numbers<[1], [0], [0], [1], [0, 0, 1, 1], [], []>} : vector<2x128xbf16>, vector<128x384xbf16>, vector<2x384xf32> -> vector<2x384xf32>
    %151 = vector.extract_strided_slice %147 {offsets = [0, 0], sizes = [2, 128], strides = [1, 1]} : vector<2x384xbf16> to vector<2x128xbf16>
    %152 = vector.extract_strided_slice %150 {offsets = [0, 0], sizes = [2, 128], strides = [1, 1]} : vector<2x384xf32> to vector<2x128xf32>
    %153 = arith.extf %151 : vector<2x128xbf16> to vector<2x128xf32>
    %154 = arith.addf %153, %152 : vector<2x128xf32>
    %cst_55 = arith.constant 5.000000e-01 : f32
    %155 = vector.broadcast %cst_55 : f32 to vector<2x128xf32>
    %156 = arith.mulf %155, %154 : vector<2x128xf32>
    %157 = math.tanh %156 : vector<2x128xf32>
    %cst_56 = arith.constant 5.000000e-01 : f32
    %158 = vector.broadcast %cst_56 : f32 to vector<2x128xf32>
    %159 = arith.mulf %158, %157 : vector<2x128xf32>
    %cst_57 = arith.constant 5.000000e-01 : f32
    %160 = vector.broadcast %cst_57 : f32 to vector<2x128xf32>
    %161 = arith.addf %159, %160 : vector<2x128xf32>
    %162 = vector.extract_strided_slice %147 {offsets = [0, 128], sizes = [2, 128], strides = [1, 1]} : vector<2x384xbf16> to vector<2x128xbf16>
    %163 = vector.extract_strided_slice %150 {offsets = [0, 128], sizes = [2, 128], strides = [1, 1]} : vector<2x384xf32> to vector<2x128xf32>
    %164 = arith.extf %162 : vector<2x128xbf16> to vector<2x128xf32>
    %165 = arith.addf %164, %163 : vector<2x128xf32>
    %cst_58 = arith.constant 5.000000e-01 : f32
    %166 = vector.broadcast %cst_58 : f32 to vector<2x128xf32>
    %167 = arith.mulf %166, %165 : vector<2x128xf32>
    %168 = math.tanh %167 : vector<2x128xf32>
    %cst_59 = arith.constant 5.000000e-01 : f32
    %169 = vector.broadcast %cst_59 : f32 to vector<2x128xf32>
    %170 = arith.mulf %169, %168 : vector<2x128xf32>
    %cst_60 = arith.constant 5.000000e-01 : f32
    %171 = vector.broadcast %cst_60 : f32 to vector<2x128xf32>
    %172 = arith.addf %170, %171 : vector<2x128xf32>
    %173 = vector.extract_strided_slice %147 {offsets = [0, 256], sizes = [2, 128], strides = [1, 1]} : vector<2x384xbf16> to vector<2x128xbf16>
    %174 = vector.extract_strided_slice %150 {offsets = [0, 256], sizes = [2, 128], strides = [1, 1]} : vector<2x384xf32> to vector<2x128xf32>
    %c0_61 = arith.constant 0 : index
    %c0_62 = arith.constant 0 : index
    %175 = vector.load %arg5[%c0_61, %c0_62] : memref<1x128xf32, #tpu.memory_space<vmem>>, vector<1x128xf32>
    %176 = vector.broadcast %175 : vector<1x128xf32> to vector<2x128xf32>
    %177 = arith.addf %174, %176 : vector<2x128xf32>
    %178 = arith.mulf %161, %177 : vector<2x128xf32>
    %179 = arith.extf %173 : vector<2x128xbf16> to vector<2x128xf32>
    %180 = arith.addf %179, %178 : vector<2x128xf32>
    %181 = math.tanh %180 : vector<2x128xf32>
    %cst_63 = arith.constant 1.000000e+00 : f32
    %182 = vector.broadcast %cst_63 : f32 to vector<2x128xf32>
    %183 = arith.subf %182, %172 : vector<2x128xf32>
    %184 = arith.mulf %183, %181 : vector<2x128xf32>
    %185 = arith.mulf %172, %139 : vector<2x128xf32>
    %186 = arith.addf %184, %185 : vector<2x128xf32>
    %187 = arith.truncf %186 : vector<2x128xf32> to vector<2x128xbf16>
    %188 = arith.index_cast %c3_i32 : i32 to index
    %c0_64 = arith.constant 0 : index
    %c0_65 = arith.constant 0 : index
    %189 = vector.load %arg6[%188, %c0_64, %c0_65] : memref<8x2x128xbf16, #tpu.memory_space<vmem>>, vector<1x2x128xbf16>
    %190 = vector.shape_cast %189 : vector<1x2x128xbf16> to vector<2x128xbf16>
    %191 = vector.shape_cast %187 : vector<2x128xbf16> to vector<1x2x128xbf16>
    tpu.vector_store %arg6[%188, %c0_64, %c0_65], %191 {strides = array<i32>} : memref<8x2x128xbf16, #tpu.memory_space<vmem>>, vector<1x2x128xbf16>,
    %c4_i32 = arith.constant 4 : i32
    %192 = arith.index_cast %c4_i32 : i32 to index
    %c0_66 = arith.constant 0 : index
    %c0_67 = arith.constant 0 : index
    %193 = vector.load %arg2[%192, %c0_66, %c0_67] : memref<8x2x384xbf16, #tpu.memory_space<vmem>>, vector<1x2x384xbf16>
    %194 = vector.shape_cast %193 : vector<1x2x384xbf16> to vector<2x384xbf16>
    %195 = arith.truncf %186 : vector<2x128xf32> to vector<2x128xbf16>
    %c0_68 = arith.constant 0 : index
    %c0_69 = arith.constant 0 : index
    %196 = vector.load %arg4[%c0_68, %c0_69] : memref<128x384xbf16, #tpu.memory_space<vmem>>, vector<128x384xbf16>
    %cst_70 = arith.constant dense<0.000000e+00> : vector<2x384xf32>
    %197 = tpu.matmul %195, %196, %cst_70 {dimension_numbers = #tpu.dot_dimension_numbers<[1], [0], [0], [1], [0, 0, 1, 1], [], []>} : vector<2x128xbf16>, vector<128x384xbf16>, vector<2x384xf32> -> vector<2x384xf32>
    %198 = vector.extract_strided_slice %194 {offsets = [0, 0], sizes = [2, 128], strides = [1, 1]} : vector<2x384xbf16> to vector<2x128xbf16>
    %199 = vector.extract_strided_slice %197 {offsets = [0, 0], sizes = [2, 128], strides = [1, 1]} : vector<2x384xf32> to vector<2x128xf32>
    %200 = arith.extf %198 : vector<2x128xbf16> to vector<2x128xf32>
    %201 = arith.addf %200, %199 : vector<2x128xf32>
    %cst_71 = arith.constant 5.000000e-01 : f32
    %202 = vector.broadcast %cst_71 : f32 to vector<2x128xf32>
    %203 = arith.mulf %202, %201 : vector<2x128xf32>
    %204 = math.tanh %203 : vector<2x128xf32>
    %cst_72 = arith.constant 5.000000e-01 : f32
    %205 = vector.broadcast %cst_72 : f32 to vector<2x128xf32>
    %206 = arith.mulf %205, %204 : vector<2x128xf32>
    %cst_73 = arith.constant 5.000000e-01 : f32
    %207 = vector.broadcast %cst_73 : f32 to vector<2x128xf32>
    %208 = arith.addf %206, %207 : vector<2x128xf32>
    %209 = vector.extract_strided_slice %194 {offsets = [0, 128], sizes = [2, 128], strides = [1, 1]} : vector<2x384xbf16> to vector<2x128xbf16>
    %210 = vector.extract_strided_slice %197 {offsets = [0, 128], sizes = [2, 128], strides = [1, 1]} : vector<2x384xf32> to vector<2x128xf32>
    %211 = arith.extf %209 : vector<2x128xbf16> to vector<2x128xf32>
    %212 = arith.addf %211, %210 : vector<2x128xf32>
    %cst_74 = arith.constant 5.000000e-01 : f32
    %213 = vector.broadcast %cst_74 : f32 to vector<2x128xf32>
    %214 = arith.mulf %213, %212 : vector<2x128xf32>
    %215 = math.tanh %214 : vector<2x128xf32>
    %cst_75 = arith.constant 5.000000e-01 : f32
    %216 = vector.broadcast %cst_75 : f32 to vector<2x128xf32>
    %217 = arith.mulf %216, %215 : vector<2x128xf32>
    %cst_76 = arith.constant 5.000000e-01 : f32
    %218 = vector.broadcast %cst_76 : f32 to vector<2x128xf32>
    %219 = arith.addf %217, %218 : vector<2x128xf32>
    %220 = vector.extract_strided_slice %194 {offsets = [0, 256], sizes = [2, 128], strides = [1, 1]} : vector<2x384xbf16> to vector<2x128xbf16>
    %221 = vector.extract_strided_slice %197 {offsets = [0, 256], sizes = [2, 128], strides = [1, 1]} : vector<2x384xf32> to vector<2x128xf32>
    %c0_77 = arith.constant 0 : index
    %c0_78 = arith.constant 0 : index
    %222 = vector.load %arg5[%c0_77, %c0_78] : memref<1x128xf32, #tpu.memory_space<vmem>>, vector<1x128xf32>
    %223 = vector.broadcast %222 : vector<1x128xf32> to vector<2x128xf32>
    %224 = arith.addf %221, %223 : vector<2x128xf32>
    %225 = arith.mulf %208, %224 : vector<2x128xf32>
    %226 = arith.extf %220 : vector<2x128xbf16> to vector<2x128xf32>
    %227 = arith.addf %226, %225 : vector<2x128xf32>
    %228 = math.tanh %227 : vector<2x128xf32>
    %cst_79 = arith.constant 1.000000e+00 : f32
    %229 = vector.broadcast %cst_79 : f32 to vector<2x128xf32>
    %230 = arith.subf %229, %219 : vector<2x128xf32>
    %231 = arith.mulf %230, %228 : vector<2x128xf32>
    %232 = arith.mulf %219, %186 : vector<2x128xf32>
    %233 = arith.addf %231, %232 : vector<2x128xf32>
    %234 = arith.truncf %233 : vector<2x128xf32> to vector<2x128xbf16>
    %235 = arith.index_cast %c4_i32 : i32 to index
    %c0_80 = arith.constant 0 : index
    %c0_81 = arith.constant 0 : index
    %236 = vector.load %arg6[%235, %c0_80, %c0_81] : memref<8x2x128xbf16, #tpu.memory_space<vmem>>, vector<1x2x128xbf16>
    %237 = vector.shape_cast %236 : vector<1x2x128xbf16> to vector<2x128xbf16>
    %238 = vector.shape_cast %234 : vector<2x128xbf16> to vector<1x2x128xbf16>
    tpu.vector_store %arg6[%235, %c0_80, %c0_81], %238 {strides = array<i32>} : memref<8x2x128xbf16, #tpu.memory_space<vmem>>, vector<1x2x128xbf16>,
    %c5_i32 = arith.constant 5 : i32
    %239 = arith.index_cast %c5_i32 : i32 to index
    %c0_82 = arith.constant 0 : index
    %c0_83 = arith.constant 0 : index
    %240 = vector.load %arg2[%239, %c0_82, %c0_83] : memref<8x2x384xbf16, #tpu.memory_space<vmem>>, vector<1x2x384xbf16>
    %241 = vector.shape_cast %240 : vector<1x2x384xbf16> to vector<2x384xbf16>
    %242 = arith.truncf %233 : vector<2x128xf32> to vector<2x128xbf16>
    %c0_84 = arith.constant 0 : index
    %c0_85 = arith.constant 0 : index
    %243 = vector.load %arg4[%c0_84, %c0_85] : memref<128x384xbf16, #tpu.memory_space<vmem>>, vector<128x384xbf16>
    %cst_86 = arith.constant dense<0.000000e+00> : vector<2x384xf32>
    %244 = tpu.matmul %242, %243, %cst_86 {dimension_numbers = #tpu.dot_dimension_numbers<[1], [0], [0], [1], [0, 0, 1, 1], [], []>} : vector<2x128xbf16>, vector<128x384xbf16>, vector<2x384xf32> -> vector<2x384xf32>
    %245 = vector.extract_strided_slice %241 {offsets = [0, 0], sizes = [2, 128], strides = [1, 1]} : vector<2x384xbf16> to vector<2x128xbf16>
    %246 = vector.extract_strided_slice %244 {offsets = [0, 0], sizes = [2, 128], strides = [1, 1]} : vector<2x384xf32> to vector<2x128xf32>
    %247 = arith.extf %245 : vector<2x128xbf16> to vector<2x128xf32>
    %248 = arith.addf %247, %246 : vector<2x128xf32>
    %cst_87 = arith.constant 5.000000e-01 : f32
    %249 = vector.broadcast %cst_87 : f32 to vector<2x128xf32>
    %250 = arith.mulf %249, %248 : vector<2x128xf32>
    %251 = math.tanh %250 : vector<2x128xf32>
    %cst_88 = arith.constant 5.000000e-01 : f32
    %252 = vector.broadcast %cst_88 : f32 to vector<2x128xf32>
    %253 = arith.mulf %252, %251 : vector<2x128xf32>
    %cst_89 = arith.constant 5.000000e-01 : f32
    %254 = vector.broadcast %cst_89 : f32 to vector<2x128xf32>
    %255 = arith.addf %253, %254 : vector<2x128xf32>
    %256 = vector.extract_strided_slice %241 {offsets = [0, 128], sizes = [2, 128], strides = [1, 1]} : vector<2x384xbf16> to vector<2x128xbf16>
    %257 = vector.extract_strided_slice %244 {offsets = [0, 128], sizes = [2, 128], strides = [1, 1]} : vector<2x384xf32> to vector<2x128xf32>
    %258 = arith.extf %256 : vector<2x128xbf16> to vector<2x128xf32>
    %259 = arith.addf %258, %257 : vector<2x128xf32>
    %cst_90 = arith.constant 5.000000e-01 : f32
    %260 = vector.broadcast %cst_90 : f32 to vector<2x128xf32>
    %261 = arith.mulf %260, %259 : vector<2x128xf32>
    %262 = math.tanh %261 : vector<2x128xf32>
    %cst_91 = arith.constant 5.000000e-01 : f32
    %263 = vector.broadcast %cst_91 : f32 to vector<2x128xf32>
    %264 = arith.mulf %263, %262 : vector<2x128xf32>
    %cst_92 = arith.constant 5.000000e-01 : f32
    %265 = vector.broadcast %cst_92 : f32 to vector<2x128xf32>
    %266 = arith.addf %264, %265 : vector<2x128xf32>
    %267 = vector.extract_strided_slice %241 {offsets = [0, 256], sizes = [2, 128], strides = [1, 1]} : vector<2x384xbf16> to vector<2x128xbf16>
    %268 = vector.extract_strided_slice %244 {offsets = [0, 256], sizes = [2, 128], strides = [1, 1]} : vector<2x384xf32> to vector<2x128xf32>
    %c0_93 = arith.constant 0 : index
    %c0_94 = arith.constant 0 : index
    %269 = vector.load %arg5[%c0_93, %c0_94] : memref<1x128xf32, #tpu.memory_space<vmem>>, vector<1x128xf32>
    %270 = vector.broadcast %269 : vector<1x128xf32> to vector<2x128xf32>
    %271 = arith.addf %268, %270 : vector<2x128xf32>
    %272 = arith.mulf %255, %271 : vector<2x128xf32>
    %273 = arith.extf %267 : vector<2x128xbf16> to vector<2x128xf32>
    %274 = arith.addf %273, %272 : vector<2x128xf32>
    %275 = math.tanh %274 : vector<2x128xf32>
    %cst_95 = arith.constant 1.000000e+00 : f32
    %276 = vector.broadcast %cst_95 : f32 to vector<2x128xf32>
    %277 = arith.subf %276, %266 : vector<2x128xf32>
    %278 = arith.mulf %277, %275 : vector<2x128xf32>
    %279 = arith.mulf %266, %233 : vector<2x128xf32>
    %280 = arith.addf %278, %279 : vector<2x128xf32>
    %281 = arith.truncf %280 : vector<2x128xf32> to vector<2x128xbf16>
    %282 = arith.index_cast %c5_i32 : i32 to index
    %c0_96 = arith.constant 0 : index
    %c0_97 = arith.constant 0 : index
    %283 = vector.load %arg6[%282, %c0_96, %c0_97] : memref<8x2x128xbf16, #tpu.memory_space<vmem>>, vector<1x2x128xbf16>
    %284 = vector.shape_cast %283 : vector<1x2x128xbf16> to vector<2x128xbf16>
    %285 = vector.shape_cast %281 : vector<2x128xbf16> to vector<1x2x128xbf16>
    tpu.vector_store %arg6[%282, %c0_96, %c0_97], %285 {strides = array<i32>} : memref<8x2x128xbf16, #tpu.memory_space<vmem>>, vector<1x2x128xbf16>,
    %c6_i32 = arith.constant 6 : i32
    %286 = arith.index_cast %c6_i32 : i32 to index
    %c0_98 = arith.constant 0 : index
    %c0_99 = arith.constant 0 : index
    %287 = vector.load %arg2[%286, %c0_98, %c0_99] : memref<8x2x384xbf16, #tpu.memory_space<vmem>>, vector<1x2x384xbf16>
    %288 = vector.shape_cast %287 : vector<1x2x384xbf16> to vector<2x384xbf16>
    %289 = arith.truncf %280 : vector<2x128xf32> to vector<2x128xbf16>
    %c0_100 = arith.constant 0 : index
    %c0_101 = arith.constant 0 : index
    %290 = vector.load %arg4[%c0_100, %c0_101] : memref<128x384xbf16, #tpu.memory_space<vmem>>, vector<128x384xbf16>
    %cst_102 = arith.constant dense<0.000000e+00> : vector<2x384xf32>
    %291 = tpu.matmul %289, %290, %cst_102 {dimension_numbers = #tpu.dot_dimension_numbers<[1], [0], [0], [1], [0, 0, 1, 1], [], []>} : vector<2x128xbf16>, vector<128x384xbf16>, vector<2x384xf32> -> vector<2x384xf32>
    %292 = vector.extract_strided_slice %288 {offsets = [0, 0], sizes = [2, 128], strides = [1, 1]} : vector<2x384xbf16> to vector<2x128xbf16>
    %293 = vector.extract_strided_slice %291 {offsets = [0, 0], sizes = [2, 128], strides = [1, 1]} : vector<2x384xf32> to vector<2x128xf32>
    %294 = arith.extf %292 : vector<2x128xbf16> to vector<2x128xf32>
    %295 = arith.addf %294, %293 : vector<2x128xf32>
    %cst_103 = arith.constant 5.000000e-01 : f32
    %296 = vector.broadcast %cst_103 : f32 to vector<2x128xf32>
    %297 = arith.mulf %296, %295 : vector<2x128xf32>
    %298 = math.tanh %297 : vector<2x128xf32>
    %cst_104 = arith.constant 5.000000e-01 : f32
    %299 = vector.broadcast %cst_104 : f32 to vector<2x128xf32>
    %300 = arith.mulf %299, %298 : vector<2x128xf32>
    %cst_105 = arith.constant 5.000000e-01 : f32
    %301 = vector.broadcast %cst_105 : f32 to vector<2x128xf32>
    %302 = arith.addf %300, %301 : vector<2x128xf32>
    %303 = vector.extract_strided_slice %288 {offsets = [0, 128], sizes = [2, 128], strides = [1, 1]} : vector<2x384xbf16> to vector<2x128xbf16>
    %304 = vector.extract_strided_slice %291 {offsets = [0, 128], sizes = [2, 128], strides = [1, 1]} : vector<2x384xf32> to vector<2x128xf32>
    %305 = arith.extf %303 : vector<2x128xbf16> to vector<2x128xf32>
    %306 = arith.addf %305, %304 : vector<2x128xf32>
    %cst_106 = arith.constant 5.000000e-01 : f32
    %307 = vector.broadcast %cst_106 : f32 to vector<2x128xf32>
    %308 = arith.mulf %307, %306 : vector<2x128xf32>
    %309 = math.tanh %308 : vector<2x128xf32>
    %cst_107 = arith.constant 5.000000e-01 : f32
    %310 = vector.broadcast %cst_107 : f32 to vector<2x128xf32>
    %311 = arith.mulf %310, %309 : vector<2x128xf32>
    %cst_108 = arith.constant 5.000000e-01 : f32
    %312 = vector.broadcast %cst_108 : f32 to vector<2x128xf32>
    %313 = arith.addf %311, %312 : vector<2x128xf32>
    %314 = vector.extract_strided_slice %288 {offsets = [0, 256], sizes = [2, 128], strides = [1, 1]} : vector<2x384xbf16> to vector<2x128xbf16>
    %315 = vector.extract_strided_slice %291 {offsets = [0, 256], sizes = [2, 128], strides = [1, 1]} : vector<2x384xf32> to vector<2x128xf32>
    %c0_109 = arith.constant 0 : index
    %c0_110 = arith.constant 0 : index
    %316 = vector.load %arg5[%c0_109, %c0_110] : memref<1x128xf32, #tpu.memory_space<vmem>>, vector<1x128xf32>
    %317 = vector.broadcast %316 : vector<1x128xf32> to vector<2x128xf32>
    %318 = arith.addf %315, %317 : vector<2x128xf32>
    %319 = arith.mulf %302, %318 : vector<2x128xf32>
    %320 = arith.extf %314 : vector<2x128xbf16> to vector<2x128xf32>
    %321 = arith.addf %320, %319 : vector<2x128xf32>
    %322 = math.tanh %321 : vector<2x128xf32>
    %cst_111 = arith.constant 1.000000e+00 : f32
    %323 = vector.broadcast %cst_111 : f32 to vector<2x128xf32>
    %324 = arith.subf %323, %313 : vector<2x128xf32>
    %325 = arith.mulf %324, %322 : vector<2x128xf32>
    %326 = arith.mulf %313, %280 : vector<2x128xf32>
    %327 = arith.addf %325, %326 : vector<2x128xf32>
    %328 = arith.truncf %327 : vector<2x128xf32> to vector<2x128xbf16>
    %329 = arith.index_cast %c6_i32 : i32 to index
    %c0_112 = arith.constant 0 : index
    %c0_113 = arith.constant 0 : index
    %330 = vector.load %arg6[%329, %c0_112, %c0_113] : memref<8x2x128xbf16, #tpu.memory_space<vmem>>, vector<1x2x128xbf16>
    %331 = vector.shape_cast %330 : vector<1x2x128xbf16> to vector<2x128xbf16>
    %332 = vector.shape_cast %328 : vector<2x128xbf16> to vector<1x2x128xbf16>
    tpu.vector_store %arg6[%329, %c0_112, %c0_113], %332 {strides = array<i32>} : memref<8x2x128xbf16, #tpu.memory_space<vmem>>, vector<1x2x128xbf16>,
    %c7_i32 = arith.constant 7 : i32
    %333 = arith.index_cast %c7_i32 : i32 to index
    %c0_114 = arith.constant 0 : index
    %c0_115 = arith.constant 0 : index
    %334 = vector.load %arg2[%333, %c0_114, %c0_115] : memref<8x2x384xbf16, #tpu.memory_space<vmem>>, vector<1x2x384xbf16>
    %335 = vector.shape_cast %334 : vector<1x2x384xbf16> to vector<2x384xbf16>
    %336 = arith.truncf %327 : vector<2x128xf32> to vector<2x128xbf16>
    %c0_116 = arith.constant 0 : index
    %c0_117 = arith.constant 0 : index
    %337 = vector.load %arg4[%c0_116, %c0_117] : memref<128x384xbf16, #tpu.memory_space<vmem>>, vector<128x384xbf16>
    %cst_118 = arith.constant dense<0.000000e+00> : vector<2x384xf32>
    %338 = tpu.matmul %336, %337, %cst_118 {dimension_numbers = #tpu.dot_dimension_numbers<[1], [0], [0], [1], [0, 0, 1, 1], [], []>} : vector<2x128xbf16>, vector<128x384xbf16>, vector<2x384xf32> -> vector<2x384xf32>
    %339 = vector.extract_strided_slice %335 {offsets = [0, 0], sizes = [2, 128], strides = [1, 1]} : vector<2x384xbf16> to vector<2x128xbf16>
    %340 = vector.extract_strided_slice %338 {offsets = [0, 0], sizes = [2, 128], strides = [1, 1]} : vector<2x384xf32> to vector<2x128xf32>
    %341 = arith.extf %339 : vector<2x128xbf16> to vector<2x128xf32>
    %342 = arith.addf %341, %340 : vector<2x128xf32>
    %cst_119 = arith.constant 5.000000e-01 : f32
    %343 = vector.broadcast %cst_119 : f32 to vector<2x128xf32>
    %344 = arith.mulf %343, %342 : vector<2x128xf32>
    %345 = math.tanh %344 : vector<2x128xf32>
    %cst_120 = arith.constant 5.000000e-01 : f32
    %346 = vector.broadcast %cst_120 : f32 to vector<2x128xf32>
    %347 = arith.mulf %346, %345 : vector<2x128xf32>
    %cst_121 = arith.constant 5.000000e-01 : f32
    %348 = vector.broadcast %cst_121 : f32 to vector<2x128xf32>
    %349 = arith.addf %347, %348 : vector<2x128xf32>
    %350 = vector.extract_strided_slice %335 {offsets = [0, 128], sizes = [2, 128], strides = [1, 1]} : vector<2x384xbf16> to vector<2x128xbf16>
    %351 = vector.extract_strided_slice %338 {offsets = [0, 128], sizes = [2, 128], strides = [1, 1]} : vector<2x384xf32> to vector<2x128xf32>
    %352 = arith.extf %350 : vector<2x128xbf16> to vector<2x128xf32>
    %353 = arith.addf %352, %351 : vector<2x128xf32>
    %cst_122 = arith.constant 5.000000e-01 : f32
    %354 = vector.broadcast %cst_122 : f32 to vector<2x128xf32>
    %355 = arith.mulf %354, %353 : vector<2x128xf32>
    %356 = math.tanh %355 : vector<2x128xf32>
    %cst_123 = arith.constant 5.000000e-01 : f32
    %357 = vector.broadcast %cst_123 : f32 to vector<2x128xf32>
    %358 = arith.mulf %357, %356 : vector<2x128xf32>
    %cst_124 = arith.constant 5.000000e-01 : f32
    %359 = vector.broadcast %cst_124 : f32 to vector<2x128xf32>
    %360 = arith.addf %358, %359 : vector<2x128xf32>
    %361 = vector.extract_strided_slice %335 {offsets = [0, 256], sizes = [2, 128], strides = [1, 1]} : vector<2x384xbf16> to vector<2x128xbf16>
    %362 = vector.extract_strided_slice %338 {offsets = [0, 256], sizes = [2, 128], strides = [1, 1]} : vector<2x384xf32> to vector<2x128xf32>
    %c0_125 = arith.constant 0 : index
    %c0_126 = arith.constant 0 : index
    %363 = vector.load %arg5[%c0_125, %c0_126] : memref<1x128xf32, #tpu.memory_space<vmem>>, vector<1x128xf32>
    %364 = vector.broadcast %363 : vector<1x128xf32> to vector<2x128xf32>
    %365 = arith.addf %362, %364 : vector<2x128xf32>
    %366 = arith.mulf %349, %365 : vector<2x128xf32>
    %367 = arith.extf %361 : vector<2x128xbf16> to vector<2x128xf32>
    %368 = arith.addf %367, %366 : vector<2x128xf32>
    %369 = math.tanh %368 : vector<2x128xf32>
    %cst_127 = arith.constant 1.000000e+00 : f32
    %370 = vector.broadcast %cst_127 : f32 to vector<2x128xf32>
    %371 = arith.subf %370, %360 : vector<2x128xf32>
    %372 = arith.mulf %371, %369 : vector<2x128xf32>
    %373 = arith.mulf %360, %327 : vector<2x128xf32>
    %374 = arith.addf %372, %373 : vector<2x128xf32>
    %375 = arith.truncf %374 : vector<2x128xf32> to vector<2x128xbf16>
    %376 = arith.index_cast %c7_i32 : i32 to index
    %c0_128 = arith.constant 0 : index
    %c0_129 = arith.constant 0 : index
    %377 = vector.load %arg6[%376, %c0_128, %c0_129] : memref<8x2x128xbf16, #tpu.memory_space<vmem>>, vector<1x2x128xbf16>
    %378 = vector.shape_cast %377 : vector<1x2x128xbf16> to vector<2x128xbf16>
    %379 = vector.shape_cast %375 : vector<2x128xbf16> to vector<1x2x128xbf16>
    tpu.vector_store %arg6[%376, %c0_128, %c0_129], %379 {strides = array<i32>} : memref<8x2x128xbf16, #tpu.memory_space<vmem>>, vector<1x2x128xbf16>,
    %c8_i32 = arith.constant 8 : i32
    %c0_130 = arith.constant 0 : index
    %c0_131 = arith.constant 0 : index
    %380 = vector.load %arg8[%c0_130, %c0_131] : memref<2x128xf32, #tpu.memory_space<vmem>>, vector<2x128xf32>
    tpu.vector_store %arg8[%c0_130, %c0_131], %374 {strides = array<i32>} : memref<2x128xf32, #tpu.memory_space<vmem>>, vector<2x128xf32>,
    %c0_i32_132 = arith.constant 0 : i32
    %381 = arith.cmpi eq, %arg1, %c0_i32_132 : i32
    %382 = arith.extui %381 : i1 to i32
    %c0_i32_133 = arith.constant 0 : i32
    %383 = arith.cmpi ne, %382, %c0_i32_133 : i32
    scf.if %383 {
      %c0_134 = arith.constant 0 : index
      %c0_135 = arith.constant 0 : index
      %384 = vector.load %arg7[%c0_134, %c0_135] : memref<2x128xf32, #tpu.memory_space<vmem>>, vector<2x128xf32>
      tpu.vector_store %arg7[%c0_134, %c0_135], %374 {strides = array<i32>} : memref<2x128xf32, #tpu.memory_space<vmem>>, vector<2x128xf32>,
    } else {
    }
    return
  }
  func.func @transform_0(%arg0: i32, %arg1: i32) -> (i32, i32, i32) {
    %c0_i32 = arith.constant 0 : i32
    %c0_i32_0 = arith.constant 0 : i32
    return %arg1, %arg0, %c0_i32 : i32, i32, i32
  }
  func.func @transform_1(%arg0: i32, %arg1: i32) -> (i32, i32) {
    %c0_i32 = arith.constant 0 : i32
    %c0_i32_0 = arith.constant 0 : i32
    return %arg0, %c0_i32 : i32, i32
  }
  func.func @transform_2(%arg0: i32, %arg1: i32) -> (i32, i32) {
    %c0_i32 = arith.constant 0 : i32
    %c0_i32_0 = arith.constant 0 : i32
    %c0_i32_1 = arith.constant 0 : i32
    return %c0_i32, %c0_i32_0 : i32, i32
  }
  func.func @transform_3(%arg0: i32, %arg1: i32) -> (i32, i32) {
    %c0_i32 = arith.constant 0 : i32
    %c0_i32_0 = arith.constant 0 : i32
    %c0_i32_1 = arith.constant 0 : i32
    return %c0_i32, %c0_i32_0 : i32, i32
  }
  func.func @transform_4(%arg0: i32, %arg1: i32) -> (i32, i32, i32) {
    %c0_i32 = arith.constant 0 : i32
    %c0_i32_0 = arith.constant 0 : i32
    return %arg1, %arg0, %c0_i32 : i32, i32, i32
  }
  func.func @transform_5(%arg0: i32, %arg1: i32) -> (i32, i32) {
    %c0_i32 = arith.constant 0 : i32
    %c0_i32_0 = arith.constant 0 : i32
    return %arg0, %c0_i32 : i32, i32
  }
}

</mosaic_0001>

<llo_original>
// kernel: recurrent_model_forward.9
$region0: #{recurrent_model_forward.9}
  #allocation0 [shape = 'u32[]', space=smem, size = 0x4, offset = 0x4, fixed_abs, tag = 'smem constant byte address 0x4 - core index']
  #allocation1 [shape = 'u32[72,128]{1,0:T(1,128)}', space=vmem, size = 0x9000, scoped, tag = 'internal scratch']
  #allocation2 [shape = 'f32[16,128]{1,0:T(8,128)}', space=vmem, size = 0x2000, scoped, tag = 'scratch operand']
  %s0 = inlined_call_operand.vmem [shape: bf16[16,128], index: 0, kind: input, shape index: {}]
  %s1 = inlined_call_operand.hbm [shape: bf16[128,128], index: 1, kind: input, shape index: {}]
  %s2 = inlined_call_operand.vmem [shape: f32[1,128], index: 2, kind: input, shape index: {}]
  %s3 = inlined_call_operand.hbm [shape: f32[16,128], index: 3, kind: output, shape index: {}]
  %s4 = sld [smem:[#allocation0]]
  $region34: #{recurrent_model_forward.9} parent=0
    _
  %s6 = ssub.s32 1, %s4
  %s7 = scalar_select 0, %s6, %s4
  $region1: #{recurrent_model_forward.9} parent=0
    #allocation3 [shape = 'u8[32768]{0}', space=vmem, size = 0x8000, scoped, tag = 'input window, operand 1, single buffered']
    #allocation4 [shape = 's32[1]{0}', space=sflag, size = 0x4, scoped, tag = 'scoped memory for recurrent_model_forward.9']
    #allocation5 [shape = 's32[1]{0}', space=sflag, size = 0x4, scoped, tag = 'scoped memory for recurrent_model_forward.9']
    #allocation6 [shape = 'u8[8192]{0}', space=vmem, size = 0x2000, scoped, tag = 'output window, operand 0, single buffered']
    %8 = vsyncpa [#allocation4], 0
    %9 = vsyncpa [#allocation5], 0
    // Predicated region
    $region2: #{recurrent_model_forward.9} parent=1 // pred_check
      _
    $region3: #{recurrent_model_forward.9} parent=1 // pred_check_branch
      %11 = sbr.rel (0) target = $region5
    $region4: #{recurrent_model_forward.9} parent=1 // pred_region
      _
    $region5: #{recurrent_model_forward.9} parent=1 // pred_fallthru
      _
    // Predicated region
    $region6: #{recurrent_model_forward.9} parent=1 // pred_check
      _
    $region7: #{recurrent_model_forward.9} parent=1 // pred_check_branch
      %13 = sbr.rel (0) target = $region9
    $region8: #{recurrent_model_forward.9} parent=1 // pred_region
      %15 = vsyncadd [#allocation4], 0
      %s16 = sshll.u32 %s1, 4
      %s17 = int_to_ptr.hbm [resolvable:$true] %s16
      %s18 = sshll.u32 [#allocation3], 4
      %s19 = int_to_ptr.vmem [resolvable:$true] %s18
      %24 = dma.hbm_to_vmem [thread:$0]  %s17, 1024, %s19, [#allocation4], 64, 64, 4
    $region9: #{recurrent_model_forward.9} parent=1 // pred_fallthru
      _
    // Predicated region
    $region10: #{recurrent_model_forward.9} parent=1 // pred_check
      _
    $region11: #{recurrent_model_forward.9} parent=1 // pred_check_branch
      %26 = sbr.rel (0) target = $region13
    $region12: #{recurrent_model_forward.9} parent=1 // pred_region
      _
    $region13: #{recurrent_model_forward.9} parent=1 // pred_fallthru
      _
    // Predicated region
    $region14: #{recurrent_model_forward.9} parent=1 // pred_check
      _
    $region15: #{recurrent_model_forward.9} parent=1 // pred_check_branch
      %28 = sbr.rel (0) target = $region17
    $region16: #{recurrent_model_forward.9} parent=1 // pred_region
      %30 = dma.done [#allocation4], 1024
    $region17: #{recurrent_model_forward.9} parent=1 // pred_fallthru
      _
    %p31 = scmp.eq.s32.totalorder 0, 0
    // Predicated region
    $region18: #{recurrent_model_forward.9} parent=1 // pred_check
      %p32 = pneg %p31
    $region19: #{recurrent_model_forward.9} parent=1 // pred_check_branch
      %34 = sbr.rel (%p32) target = $region21
    $region20: #{recurrent_model_forward.9} parent=1 // pred_region
      %35 = vst [vmem:[#allocation2] sm:$0xff] 0.0
      %36 = vst [vmem:[#allocation2 + $0x8] sm:$0xff] 0.0
    $region21: #{recurrent_model_forward.9} parent=1 // pred_fallthru
      _
    %v37 = vld [vmem:[#allocation2] sm:$0xff]
    %v38 = vld [vmem:[#allocation2 + $0x8] sm:$0xff]
    %v39 = vld [vmem:[%s0] sm:$0xf]
    %v40 = vld [vmem:[%s0 + $0x4] sm:$0xf]
    %v41 = vld [vmem:[#allocation3] sm:$0xf]
    %v42 = vld [vmem:[#allocation3 + $0x4] sm:$0xf]
    %v43 = vld [vmem:[#allocation3 + $0x8] sm:$0xf]
    %v44 = vld [vmem:[#allocation3 + $0xc] sm:$0xf]
    %v45 = vld [vmem:[#allocation3 + $0x10] sm:$0xf]
    %v46 = vld [vmem:[#allocation3 + $0x14] sm:$0xf]
    %v47 = vld [vmem:[#allocation3 + $0x18] sm:$0xf]
    %v48 = vld [vmem:[#allocation3 + $0x1c] sm:$0xf]
    %v49 = vld [vmem:[#allocation3 + $0x20] sm:$0xf]
    %v50 = vld [vmem:[#allocation3 + $0x24] sm:$0xf]
    %v51 = vld [vmem:[#allocation3 + $0x28] sm:$0xf]
    %v52 = vld [vmem:[#allocation3 + $0x2c] sm:$0xf]
    %v53 = vld [vmem:[#allocation3 + $0x30] sm:$0xf]
    %v54 = vld [vmem:[#allocation3 + $0x34] sm:$0xf]
    %v55 = vld [vmem:[#allocation3 + $0x38] sm:$0xf]
    %v56 = vld [vmem:[#allocation3 + $0x3c] sm:$0xf]
    %v59 = vunpack.c.l.b16 %v39
    %v60 = vunpack.c.l.b16 %v40
    %v61 = vpack.c.b16 %v60, %v59
    %v79 = vunpack.c.l.b16 %v41
    %v80 = vunpack.c.l.b16 %v42
    %v81 = vunpack.c.l.b16 %v43
    %v82 = vunpack.c.l.b16 %v44
    %v83 = vunpack.c.l.b16 %v45
    %v84 = vunpack.c.l.b16 %v46
    %v85 = vunpack.c.l.b16 %v47
    %v86 = vunpack.c.l.b16 %v48
    %v87 = vunpack.c.l.b16 %v49
    %v88 = vunpack.c.l.b16 %v50
    %v89 = vunpack.c.l.b16 %v51
    %v90 = vunpack.c.l.b16 %v52
    %v91 = vunpack.c.l.b16 %v53
    %v92 = vunpack.c.l.b16 %v54
    %v93 = vunpack.c.l.b16 %v55
    %v94 = vunpack.c.l.b16 %v56
    %v95 = vpack.c.b16 %v80, %v79
    %v96 = vpack.c.b16 %v82, %v81
    %v97 = vpack.c.b16 %v84, %v83
    %v98 = vpack.c.b16 %v86, %v85
    %v99 = vpack.c.b16 %v88, %v87
    %v100 = vpack.c.b16 %v90, %v89
    %v101 = vpack.c.b16 %v92, %v91
    %v102 = vpack.c.b16 %v94, %v93
    %111 = vmatpush.bf16.msra.mxu0 %v102
    %112 = vmatpush.bf16.msra.mxu0 %v101
    %113 = vmatpush.bf16.msra.mxu0 %v100
    %114 = vmatpush.bf16.msra.mxu0 %v99
    %115 = vmatpush.bf16.msra.mxu0 %v98
    %116 = vmatpush.bf16.msra.mxu0 %v97
    %117 = vmatpush.bf16.msra.mxu0 %v96
    %118 = vmatpush.bf16.msra.mxu0 %v95
    %119 = vmatmul.bf16.gmra.mxu0 %v61
    %v120 = vpop.f32.mrf.mxu0
    %v121 = vadd.f32 0.0, %v120
    %v122 = vpop.f32.mrf.mxu0
    %v123 = vadd.f32 0.0, %v122
    %124 = vdwg.mxu0
    %v125 = vadd.f32 %v37, %v121
    %v126 = vadd.f32 %v38, %v123
    %127 = vst [vmem:[#allocation2] sm:$0xff] %v125
    %128 = vst [vmem:[#allocation2 + $0x8] sm:$0xff] %v126
    // Predicated region
    $region22: #{recurrent_model_forward.9} parent=1 // pred_check
      %p129 = pneg %p31
    $region23: #{recurrent_model_forward.9} parent=1 // pred_check_branch
      %131 = sbr.rel (%p129) target = $region25
    $region24: #{recurrent_model_forward.9} parent=1 // pred_region
      %v132 = vld [vmem:[#allocation2] sm:$0xff]
      %v133 = vld [vmem:[#allocation2 + $0x8] sm:$0xff]
      %v134 = vld [vmem:[%s2] sm:$0x1]
      %v136 = vperm.slane %v134, 0
      %v138 = vadd.f32 %v132, %v136
      %v139 = vadd.f32 %v133, %v136
      %140 = vst [vmem:[#allocation6] sm:$0xff] %v138
      %141 = vst [vmem:[#allocation6 + $0x8] sm:$0xff] %v139
    $region25: #{recurrent_model_forward.9} parent=1 // pred_fallthru
      _
    // Predicated region
    $region26: #{recurrent_model_forward.9} parent=1 // pred_check
      _
    $region27: #{recurrent_model_forward.9} parent=1 // pred_check_branch
      %143 = sbr.rel (0) target = $region29
    $region28: #{recurrent_model_forward.9} parent=1 // pred_region
      %145 = vsyncadd [#allocation5], 0
      %s146 = sshll.u32 [#allocation6], 4
      %s147 = int_to_ptr.vmem [resolvable:$true] %s146
      %s148 = sshll.u32 %s3, 4
      %s149 = int_to_ptr.hbm [resolvable:$true] %s148
      %154 = dma.vmem_to_hbm [thread:$0]  %s147, 256, %s149, [#allocation5], 128, 128, 8
    $region29: #{recurrent_model_forward.9} parent=1 // pred_fallthru
      _
    // Predicated region
    $region30: #{recurrent_model_forward.9} parent=1 // pred_check
      _
    $region31: #{recurrent_model_forward.9} parent=1 // pred_check_branch
      %156 = sbr.rel (0) target = $region33
    $region32: #{recurrent_model_forward.9} parent=1 // pred_region
      %158 = dma.done [#allocation5], 256
    $region33: #{recurrent_model_forward.9} parent=1 // pred_fallthru
      _
    %159 = vsyncpa [#allocation4], 1
    %160 = vsyncpa [#allocation5], 1

// kernel: recurrent_model_forward.5
$region0: #{recurrent_model_forward.5}
  #allocation0 [shape = 'u32[]', space=smem, size = 0x4, offset = 0x4, fixed_abs, tag = 'smem constant byte address 0x4 - core index']
  #allocation1 [shape = 'u32[72,128]{1,0:T(1,128)}', space=vmem, size = 0x9000, scoped, tag = 'internal scratch']
  #allocation2 [shape = 'f32[16,384]{1,0:T(8,128)}', space=vmem, size = 0x6000, scoped, tag = 'scratch operand']
  %s0 = inlined_call_operand.vmem [shape: bf16[16,128], index: 0, kind: input, shape index: {}]
  %s1 = inlined_call_operand.hbm [shape: bf16[128,384], index: 1, kind: input, shape index: {}]
  %s2 = inlined_call_operand.vmem [shape: f32[1,384], index: 2, kind: input, shape index: {}]
  %s3 = inlined_call_operand.vmem [shape: bf16[16,384], index: 3, kind: output, shape index: {}]
  %s4 = sld [smem:[#allocation0]]
  $region34: #{recurrent_model_forward.5} parent=0
    _
  %s6 = ssub.s32 1, %s4
  %s7 = scalar_select 0, %s6, %s4
  $region1: #{recurrent_model_forward.5} parent=0
    #allocation3 [shape = 'u8[98304]{0}', space=vmem, size = 0x18000, scoped, tag = 'input window, operand 1, single buffered']
    #allocation4 [shape = 's32[1]{0}', space=sflag, size = 0x4, scoped, tag = 'scoped memory for recurrent_model_forward.5']
    %8 = vsyncpa [#allocation4], 0
    // Predicated region
    $region2: #{recurrent_model_forward.5} parent=1 // pred_check
      _
    $region3: #{recurrent_model_forward.5} parent=1 // pred_check_branch
      %10 = sbr.rel (0) target = $region5
    $region4: #{recurrent_model_forward.5} parent=1 // pred_region
      _
    $region5: #{recurrent_model_forward.5} parent=1 // pred_fallthru
      _
    // Predicated region
    $region6: #{recurrent_model_forward.5} parent=1 // pred_check
      _
    $region7: #{recurrent_model_forward.5} parent=1 // pred_check_branch
      %12 = sbr.rel (0) target = $region9
    $region8: #{recurrent_model_forward.5} parent=1 // pred_region
      %14 = vsyncadd [#allocation4], 0
      %s15 = sshll.u32 %s1, 4
      %s16 = int_to_ptr.hbm [resolvable:$true] %s15
      %s17 = sshll.u32 [#allocation3], 4
      %s18 = int_to_ptr.vmem [resolvable:$true] %s17
      %23 = dma.hbm_to_vmem [thread:$0]  %s16, 3072, %s18, [#allocation4], 192, 192, 12
    $region9: #{recurrent_model_forward.5} parent=1 // pred_fallthru
      _
    // Predicated region
    $region10: #{recurrent_model_forward.5} parent=1 // pred_check
      _
    $region11: #{recurrent_model_forward.5} parent=1 // pred_check_branch
      %25 = sbr.rel (0) target = $region13
    $region12: #{recurrent_model_forward.5} parent=1 // pred_region
      _
    $region13: #{recurrent_model_forward.5} parent=1 // pred_fallthru
      _
    // Predicated region
    $region14: #{recurrent_model_forward.5} parent=1 // pred_check
      _
    $region15: #{recurrent_model_forward.5} parent=1 // pred_check_branch
      %27 = sbr.rel (0) target = $region17
    $region16: #{recurrent_model_forward.5} parent=1 // pred_region
      %29 = dma.done [#allocation4], 3072
    $region17: #{recurrent_model_forward.5} parent=1 // pred_fallthru
      _
    %p30 = scmp.eq.s32.totalorder 0, 0
    // Predicated region
    $region18: #{recurrent_model_forward.5} parent=1 // pred_check
      %p31 = pneg %p30
    $region19: #{recurrent_model_forward.5} parent=1 // pred_check_branch
      %33 = sbr.rel (%p31) target = $region21
    $region20: #{recurrent_model_forward.5} parent=1 // pred_region
      %34 = vst [vmem:[#allocation2] sm:$0xff] 0.0
      %35 = vst [vmem:[#allocation2 + $0x8] sm:$0xff] 0.0
      %36 = vst [vmem:[#allocation2 + $0x10] sm:$0xff] 0.0
      %37 = vst [vmem:[#allocation2 + $0x18] sm:$0xff] 0.0
      %38 = vst [vmem:[#allocation2 + $0x20] sm:$0xff] 0.0
      %39 = vst [vmem:[#allocation2 + $0x28] sm:$0xff] 0.0
    $region21: #{recurrent_model_forward.5} parent=1 // pred_fallthru
      _
    %v40 = vld [vmem:[#allocation2] sm:$0xff]
    %v41 = vld [vmem:[#allocation2 + $0x8] sm:$0xff]
    %v42 = vld [vmem:[#allocation2 + $0x10] sm:$0xff]
    %v43 = vld [vmem:[#allocation2 + $0x18] sm:$0xff]
    %v44 = vld [vmem:[#allocation2 + $0x20] sm:$0xff]
    %v45 = vld [vmem:[#allocation2 + $0x28] sm:$0xff]
    %v46 = vld [vmem:[%s0] sm:$0xf]
    %v47 = vld [vmem:[%s0 + $0x4] sm:$0xf]
    %v48 = vld [vmem:[#allocation3] sm:$0xff]
    %v49 = vld [vmem:[#allocation3 + $0x8] sm:$0xf]
    %v50 = vld [vmem:[#allocation3 + $0xc] sm:$0xff]
    %v51 = vld [vmem:[#allocation3 + $0x14] sm:$0xf]
    %v52 = vld [vmem:[#allocation3 + $0x18] sm:$0xff]
    %v53 = vld [vmem:[#allocation3 + $0x20] sm:$0xf]
    %v54 = vld [vmem:[#allocation3 + $0x24] sm:$0xff]
    %v55 = vld [vmem:[#allocation3 + $0x2c] sm:$0xf]
    %v56 = vld [vmem:[#allocation3 + $0x30] sm:$0xff]
    %v57 = vld [vmem:[#allocation3 + $0x38] sm:$0xf]
    %v58 = vld [vmem:[#allocation3 + $0x3c] sm:$0xff]
    %v59 = vld [vmem:[#allocation3 + $0x44] sm:$0xf]
    %v60 = vld [vmem:[#allocation3 + $0x48] sm:$0xff]
    %v61 = vld [vmem:[#allocation3 + $0x50] sm:$0xf]
    %v62 = vld [vmem:[#allocation3 + $0x54] sm:$0xff]
    %v63 = vld [vmem:[#allocation3 + $0x5c] sm:$0xf]
    %v64 = vld [vmem:[#allocation3 + $0x60] sm:$0xff]
    %v65 = vld [vmem:[#allocation3 + $0x68] sm:$0xf]
    %v66 = vld [vmem:[#allocation3 + $0x6c] sm:$0xff]
    %v67 = vld [vmem:[#allocation3 + $0x74] sm:$0xf]
    %v68 = vld [vmem:[#allocation3 + $0x78] sm:$0xff]
    %v69 = vld [vmem:[#allocation3 + $0x80] sm:$0xf]
    %v70 = vld [vmem:[#allocation3 + $0x84] sm:$0xff]
    %v71 = vld [vmem:[#allocation3 + $0x8c] sm:$0xf]
    %v72 = vld [vmem:[#allocation3 + $0x90] sm:$0xff]
    %v73 = vld [vmem:[#allocation3 + $0x98] sm:$0xf]
    %v74 = vld [vmem:[#allocation3 + $0x9c] sm:$0xff]
    %v75 = vld [vmem:[#allocation3 + $0xa4] sm:$0xf]
    %v76 = vld [vmem:[#allocation3 + $0xa8] sm:$0xff]
    %v77 = vld [vmem:[#allocation3 + $0xb0] sm:$0xf]
    %v78 = vld [vmem:[#allocation3 + $0xb4] sm:$0xff]
    %v79 = vld [vmem:[#allocation3 + $0xbc] sm:$0xf]
    %v82 = vunpack.c.l.b16 %v46
    %v83 = vunpack.c.l.b16 %v47
    %v84 = vpack.c.b16 %v83, %v82
    %v118 = vunpack.c.l.b16 %v48
    %v119 = vunpack.c.h.b16 %v48
    %v120 = vunpack.c.l.b16 %v49
    %v121 = vunpack.c.l.b16 %v50
    %v122 = vunpack.c.h.b16 %v50
    %v123 = vunpack.c.l.b16 %v51
    %v124 = vunpack.c.l.b16 %v52
    %v125 = vunpack.c.h.b16 %v52
    %v126 = vunpack.c.l.b16 %v53
    %v127 = vunpack.c.l.b16 %v54
    %v128 = vunpack.c.h.b16 %v54
    %v129 = vunpack.c.l.b16 %v55
    %v130 = vunpack.c.l.b16 %v56
    %v131 = vunpack.c.h.b16 %v56
    %v132 = vunpack.c.l.b16 %v57
    %v133 = vunpack.c.l.b16 %v58
    %v134 = vunpack.c.h.b16 %v58
    %v135 = vunpack.c.l.b16 %v59
    %v136 = vunpack.c.l.b16 %v60
    %v137 = vunpack.c.h.b16 %v60
    %v138 = vunpack.c.l.b16 %v61
    %v139 = vunpack.c.l.b16 %v62
    %v140 = vunpack.c.h.b16 %v62
    %v141 = vunpack.c.l.b16 %v63
    %v142 = vunpack.c.l.b16 %v64
    %v143 = vunpack.c.h.b16 %v64
    %v144 = vunpack.c.l.b16 %v65
    %v145 = vunpack.c.l.b16 %v66
    %v146 = vunpack.c.h.b16 %v66
    %v147 = vunpack.c.l.b16 %v67
    %v148 = vunpack.c.l.b16 %v68
    %v149 = vunpack.c.h.b16 %v68
    %v150 = vunpack.c.l.b16 %v69
    %v151 = vunpack.c.l.b16 %v70
    %v152 = vunpack.c.h.b16 %v70
    %v153 = vunpack.c.l.b16 %v71
    %v154 = vunpack.c.l.b16 %v72
    %v155 = vunpack.c.h.b16 %v72
    %v156 = vunpack.c.l.b16 %v73
    %v157 = vunpack.c.l.b16 %v74
    %v158 = vunpack.c.h.b16 %v74
    %v159 = vunpack.c.l.b16 %v75
    %v160 = vunpack.c.l.b16 %v76
    %v161 = vunpack.c.h.b16 %v76
    %v162 = vunpack.c.l.b16 %v77
    %v163 = vunpack.c.l.b16 %v78
    %v164 = vunpack.c.h.b16 %v78
    %v165 = vunpack.c.l.b16 %v79
    %v166 = vpack.c.b16 %v121, %v118
    %v167 = vpack.c.b16 %v122, %v119
    %v168 = vpack.c.b16 %v123, %v120
    %v169 = vpack.c.b16 %v127, %v124
    %v170 = vpack.c.b16 %v128, %v125
    %v171 = vpack.c.b16 %v129, %v126
    %v172 = vpack.c.b16 %v133, %v130
    %v173 = vpack.c.b16 %v134, %v131
    %v174 = vpack.c.b16 %v135, %v132
    %v175 = vpack.c.b16 %v139, %v136
    %v176 = vpack.c.b16 %v140, %v137
    %v177 = vpack.c.b16 %v141, %v138
    %v178 = vpack.c.b16 %v145, %v142
    %v179 = vpack.c.b16 %v146, %v143
    %v180 = vpack.c.b16 %v147, %v144
    %v181 = vpack.c.b16 %v151, %v148
    %v182 = vpack.c.b16 %v152, %v149
    %v183 = vpack.c.b16 %v153, %v150
    %v184 = vpack.c.b16 %v157, %v154
    %v185 = vpack.c.b16 %v158, %v155
    %v186 = vpack.c.b16 %v159, %v156
    %v187 = vpack.c.b16 %v163, %v160
    %v188 = vpack.c.b16 %v164, %v161
    %v189 = vpack.c.b16 %v165, %v162
    %214 = vmatpush.bf16.msra.mxu0 %v187
    %215 = vmatpush.bf16.msra.mxu0 %v184
    %216 = vmatpush.bf16.msra.mxu0 %v181
    %217 = vmatpush.bf16.msra.mxu0 %v178
    %218 = vmatpush.bf16.msra.mxu0 %v175
    %219 = vmatpush.bf16.msra.mxu0 %v172
    %220 = vmatpush.bf16.msra.mxu0 %v169
    %221 = vmatpush.bf16.msra.mxu0 %v166
    %222 = vmatmul.bf16.gmra.mxu0 %v84
    %v223 = vpop.f32.mrf.mxu0
    %v224 = vadd.f32 0.0, %v223
    %v225 = vpop.f32.mrf.mxu0
    %v226 = vadd.f32 0.0, %v225
    %227 = vdwg.mxu0
    %228 = vmatpush.bf16.msra.mxu0 %v188
    %229 = vmatpush.bf16.msra.mxu0 %v185
    %230 = vmatpush.bf16.msra.mxu0 %v182
    %231 = vmatpush.bf16.msra.mxu0 %v179
    %232 = vmatpush.bf16.msra.mxu0 %v176
    %233 = vmatpush.bf16.msra.mxu0 %v173
    %234 = vmatpush.bf16.msra.mxu0 %v170
    %235 = vmatpush.bf16.msra.mxu0 %v167
    %236 = vmatmul.bf16.gmra.mxu0 %v84
    %v237 = vpop.f32.mrf.mxu0
    %v238 = vadd.f32 0.0, %v237
    %v239 = vpop.f32.mrf.mxu0
    %v240 = vadd.f32 0.0, %v239
    %241 = vdwg.mxu0
    %242 = vmatpush.bf16.msra.mxu0 %v189
    %243 = vmatpush.bf16.msra.mxu0 %v186
    %244 = vmatpush.bf16.msra.mxu0 %v183
    %245 = vmatpush.bf16.msra.mxu0 %v180
    %246 = vmatpush.bf16.msra.mxu0 %v177
    %247 = vmatpush.bf16.msra.mxu0 %v174
    %248 = vmatpush.bf16.msra.mxu0 %v171
    %249 = vmatpush.bf16.msra.mxu0 %v168
    %250 = vmatmul.bf16.gmra.mxu0 %v84
    %v251 = vpop.f32.mrf.mxu0
    %v252 = vadd.f32 0.0, %v251
    %v253 = vpop.f32.mrf.mxu0
    %v254 = vadd.f32 0.0, %v253
    %255 = vdwg.mxu0
    %v256 = vadd.f32 %v40, %v224
    %v257 = vadd.f32 %v41, %v238
    %v258 = vadd.f32 %v42, %v252
    %v259 = vadd.f32 %v43, %v226
    %v260 = vadd.f32 %v44, %v240
    %v261 = vadd.f32 %v45, %v254
    %262 = vst [vmem:[#allocation2] sm:$0xff] %v256
    %263 = vst [vmem:[#allocation2 + $0x8] sm:$0xff] %v257
    %264 = vst [vmem:[#allocation2 + $0x10] sm:$0xff] %v258
    %265 = vst [vmem:[#allocation2 + $0x18] sm:$0xff] %v259
    %266 = vst [vmem:[#allocation2 + $0x20] sm:$0xff] %v260
    %267 = vst [vmem:[#allocation2 + $0x28] sm:$0xff] %v261
    // Predicated region
    $region22: #{recurrent_model_forward.5} parent=1 // pred_check
      %p268 = pneg %p30
    $region23: #{recurrent_model_forward.5} parent=1 // pred_check_branch
      %270 = sbr.rel (%p268) target = $region25
    $region24: #{recurrent_model_forward.5} parent=1 // pred_region
      %v271 = vld [vmem:[#allocation2] sm:$0xff]
      %v272 = vld [vmem:[#allocation2 + $0x8] sm:$0xff]
      %v273 = vld [vmem:[#allocation2 + $0x10] sm:$0xff]
      %v274 = vld [vmem:[#allocation2 + $0x18] sm:$0xff]
      %v275 = vld [vmem:[#allocation2 + $0x20] sm:$0xff]
      %v276 = vld [vmem:[#allocation2 + $0x28] sm:$0xff]
      %v277 = vld [vmem:[%s2] sm:$0x7]
      %v279 = vperm.slane %v277, 0
      %v280 = vperm.slane %v277, 1
      %v281 = vperm.slane %v277, 2
      %v285 = vadd.f32 %v271, %v279
      %v286 = vadd.f32 %v272, %v280
      %v287 = vadd.f32 %v273, %v281
      %v288 = vadd.f32 %v274, %v279
      %v289 = vadd.f32 %v275, %v280
      %v290 = vadd.f32 %v276, %v281
      %v291 = vpack.c.bf16 %v286, %v285
      %v292 = vpack.c.bf16 %v287, %v287
      %v293 = vpack.c.bf16 %v289, %v288
      %v294 = vpack.c.bf16 %v290, %v290
      %295 = vst [vmem:[%s3] sm:$0xff] %v291
      %296 = vst [vmem:[%s3 + $0x8] sm:$0xf] %v292
      %297 = vst [vmem:[%s3 + $0xc] sm:$0xff] %v293
      %298 = vst [vmem:[%s3 + $0x14] sm:$0xf] %v294
    $region25: #{recurrent_model_forward.5} parent=1 // pred_fallthru
      _
    // Predicated region
    $region26: #{recurrent_model_forward.5} parent=1 // pred_check
      _
    $region27: #{recurrent_model_forward.5} parent=1 // pred_check_branch
      %300 = sbr.rel (0) target = $region29
    $region28: #{recurrent_model_forward.5} parent=1 // pred_region
      _
    $region29: #{recurrent_model_forward.5} parent=1 // pred_fallthru
      _
    // Predicated region
    $region30: #{recurrent_model_forward.5} parent=1 // pred_check
      _
    $region31: #{recurrent_model_forward.5} parent=1 // pred_check_branch
      %302 = sbr.rel (0) target = $region33
    $region32: #{recurrent_model_forward.5} parent=1 // pred_region
      _
    $region33: #{recurrent_model_forward.5} parent=1 // pred_fallthru
      _
    %303 = vsyncpa [#allocation4], 1

// kernel: recurrent_model_forward.8
$region0: #{recurrent_model_forward.8}
  #allocation0 [shape = 'u32[]', space=smem, size = 0x4, offset = 0x4, fixed_abs, tag = 'smem constant byte address 0x4 - core index']
  #allocation1 [shape = 'u32[72,128]{1,0:T(1,128)}', space=vmem, size = 0x9000, scoped, tag = 'internal scratch']
  #allocation2 [shape = 'f32[2,128]{1,0:T(2,128)}', space=vmem, size = 0x400, scoped, tag = 'scratch operand']
  %s0 = inlined_call_operand.vmem [shape: bf16[8,2,384], index: 0, kind: input, shape index: {}]
  %s1 = inlined_call_operand.vmem [shape: f32[2,128], index: 1, kind: input, shape index: {}]
  %s2 = inlined_call_operand.vmem [shape: bf16[128,384], index: 2, kind: input, shape index: {}]
  %s3 = inlined_call_operand.vmem [shape: f32[1,128], index: 3, kind: input, shape index: {}]
  %s4 = inlined_call_operand.vmem [shape: bf16[8,2,128], index: 4, kind: output, shape index: {0}]
  %s5 = inlined_call_operand.vmem [shape: f32[2,128], index: 5, kind: output, shape index: {1}]
  %6 = xla_tuple %s4, %s5
  %s7 = sld [smem:[#allocation0]]
  $region42: #{recurrent_model_forward.8} parent=0
    _
  %s9 = ssub.s32 1, %s7
  %s10 = scalar_select 0, %s9, %s7
  // Predicated region
  $region2: #{recurrent_model_forward.8} parent=0 // pred_check
    _
  $region3: #{recurrent_model_forward.8} parent=0 // pred_check_branch
    %12 = sbr.rel (0) target = $region5
  $region4: #{recurrent_model_forward.8} parent=0 // pred_region
    _
  $region5: #{recurrent_model_forward.8} parent=0 // pred_fallthru
    _
  // Predicated region
  $region6: #{recurrent_model_forward.8} parent=0 // pred_check
    _
  $region7: #{recurrent_model_forward.8} parent=0 // pred_check_branch
    %14 = sbr.rel (0) target = $region9
  $region8: #{recurrent_model_forward.8} parent=0 // pred_region
    _
  $region9: #{recurrent_model_forward.8} parent=0 // pred_fallthru
    _
  // Predicated region
  $region10: #{recurrent_model_forward.8} parent=0 // pred_check
    _
  $region11: #{recurrent_model_forward.8} parent=0 // pred_check_branch
    %16 = sbr.rel (0) target = $region13
  $region12: #{recurrent_model_forward.8} parent=0 // pred_region
    _
  $region13: #{recurrent_model_forward.8} parent=0 // pred_fallthru
    _
  // Predicated region
  $region14: #{recurrent_model_forward.8} parent=0 // pred_check
    _
  $region15: #{recurrent_model_forward.8} parent=0 // pred_check_branch
    %18 = sbr.rel (0) target = $region17
  $region16: #{recurrent_model_forward.8} parent=0 // pred_region
    _
  $region17: #{recurrent_model_forward.8} parent=0 // pred_fallthru
    _
  %p19 = scmp.eq.s32.totalorder 0, 0
  // Predicated region
  $region18: #{recurrent_model_forward.8} parent=0 // pred_check
    %p20 = pneg %p19
  $region19: #{recurrent_model_forward.8} parent=0 // pred_check_branch
    %22 = sbr.rel (%p20) target = $region21
  $region20: #{recurrent_model_forward.8} parent=0 // pred_region
    %v23 = vld [vmem:[%s1] sm:$0x3]
    %24 = vst [vmem:[#allocation2] sm:$0x3] %v23
  $region21: #{recurrent_model_forward.8} parent=0 // pred_fallthru
    _
  %v25 = vld [vmem:[#allocation2] sm:$0x3]
  %v26 = vld [vmem:[%s0] sm:$0x7]
  %v27 = vpack.c.bf16 %v25, %v25
  %v28 = vld [vmem:[%s2] sm:$0xff]
  %v29 = vld [vmem:[%s2 + $0x8] sm:$0xf]
  %v30 = vld [vmem:[%s2 + $0xc] sm:$0xff]
  %v31 = vld [vmem:[%s2 + $0x14] sm:$0xf]
  %v32 = vld [vmem:[%s2 + $0x18] sm:$0xff]
  %v33 = vld [vmem:[%s2 + $0x20] sm:$0xf]
  %v34 = vld [vmem:[%s2 + $0x24] sm:$0xff]
  %v35 = vld [vmem:[%s2 + $0x2c] sm:$0xf]
  %v36 = vld [vmem:[%s2 + $0x30] sm:$0xff]
  %v37 = vld [vmem:[%s2 + $0x38] sm:$0xf]
  %v38 = vld [vmem:[%s2 + $0x3c] sm:$0xff]
  %v39 = vld [vmem:[%s2 + $0x44] sm:$0xf]
  %v40 = vld [vmem:[%s2 + $0x48] sm:$0xff]
  %v41 = vld [vmem:[%s2 + $0x50] sm:$0xf]
  %v42 = vld [vmem:[%s2 + $0x54] sm:$0xff]
  %v43 = vld [vmem:[%s2 + $0x5c] sm:$0xf]
  %v44 = vld [vmem:[%s2 + $0x60] sm:$0xff]
  %v45 = vld [vmem:[%s2 + $0x68] sm:$0xf]
  %v46 = vld [vmem:[%s2 + $0x6c] sm:$0xff]
  %v47 = vld [vmem:[%s2 + $0x74] sm:$0xf]
  %v48 = vld [vmem:[%s2 + $0x78] sm:$0xff]
  %v49 = vld [vmem:[%s2 + $0x80] sm:$0xf]
  %v50 = vld [vmem:[%s2 + $0x84] sm:$0xff]
  %v51 = vld [vmem:[%s2 + $0x8c] sm:$0xf]
  %v52 = vld [vmem:[%s2 + $0x90] sm:$0xff]
  %v53 = vld [vmem:[%s2 + $0x98] sm:$0xf]
  %v54 = vld [vmem:[%s2 + $0x9c] sm:$0xff]
  %v55 = vld [vmem:[%s2 + $0xa4] sm:$0xf]
  %v56 = vld [vmem:[%s2 + $0xa8] sm:$0xff]
  %v57 = vld [vmem:[%s2 + $0xb0] sm:$0xf]
  %v58 = vld [vmem:[%s2 + $0xb4] sm:$0xff]
  %v59 = vld [vmem:[%s2 + $0xbc] sm:$0xf]
  %v92 = vunpack.c.l.b16 %v28
  %v93 = vunpack.c.h.b16 %v28
  %v94 = vunpack.c.l.b16 %v29
  %v95 = vunpack.c.l.b16 %v30
  %v96 = vunpack.c.h.b16 %v30
  %v97 = vunpack.c.l.b16 %v31
  %v98 = vunpack.c.l.b16 %v32
  %v99 = vunpack.c.h.b16 %v32
  %v100 = vunpack.c.l.b16 %v33
  %v101 = vunpack.c.l.b16 %v34
  %v102 = vunpack.c.h.b16 %v34
  %v103 = vunpack.c.l.b16 %v35
  %v104 = vunpack.c.l.b16 %v36
  %v105 = vunpack.c.h.b16 %v36
  %v106 = vunpack.c.l.b16 %v37
  %v107 = vunpack.c.l.b16 %v38
  %v108 = vunpack.c.h.b16 %v38
  %v109 = vunpack.c.l.b16 %v39
  %v110 = vunpack.c.l.b16 %v40
  %v111 = vunpack.c.h.b16 %v40
  %v112 = vunpack.c.l.b16 %v41
  %v113 = vunpack.c.l.b16 %v42
  %v114 = vunpack.c.h.b16 %v42
  %v115 = vunpack.c.l.b16 %v43
  %v116 = vunpack.c.l.b16 %v44
  %v117 = vunpack.c.h.b16 %v44
  %v118 = vunpack.c.l.b16 %v45
  %v119 = vunpack.c.l.b16 %v46
  %v120 = vunpack.c.h.b16 %v46
  %v121 = vunpack.c.l.b16 %v47
  %v122 = vunpack.c.l.b16 %v48
  %v123 = vunpack.c.h.b16 %v48
  %v124 = vunpack.c.l.b16 %v49
  %v125 = vunpack.c.l.b16 %v50
  %v126 = vunpack.c.h.b16 %v50
  %v127 = vunpack.c.l.b16 %v51
  %v128 = vunpack.c.l.b16 %v52
  %v129 = vunpack.c.h.b16 %v52
  %v130 = vunpack.c.l.b16 %v53
  %v131 = vunpack.c.l.b16 %v54
  %v132 = vunpack.c.h.b16 %v54
  %v133 = vunpack.c.l.b16 %v55
  %v134 = vunpack.c.l.b16 %v56
  %v135 = vunpack.c.h.b16 %v56
  %v136 = vunpack.c.l.b16 %v57
  %v137 = vunpack.c.l.b16 %v58
  %v138 = vunpack.c.h.b16 %v58
  %v139 = vunpack.c.l.b16 %v59
  %v140 = vpack.c.b16 %v95, %v92
  %v141 = vpack.c.b16 %v96, %v93
  %v142 = vpack.c.b16 %v97, %v94
  %v143 = vpack.c.b16 %v101, %v98
  %v144 = vpack.c.b16 %v102, %v99
  %v145 = vpack.c.b16 %v103, %v100
  %v146 = vpack.c.b16 %v107, %v104
  %v147 = vpack.c.b16 %v108, %v105
  %v148 = vpack.c.b16 %v109, %v106
  %v149 = vpack.c.b16 %v113, %v110
  %v150 = vpack.c.b16 %v114, %v111
  %v151 = vpack.c.b16 %v115, %v112
  %v152 = vpack.c.b16 %v119, %v116
  %v153 = vpack.c.b16 %v120, %v117
  %v154 = vpack.c.b16 %v121, %v118
  %v155 = vpack.c.b16 %v125, %v122
  %v156 = vpack.c.b16 %v126, %v123
  %v157 = vpack.c.b16 %v127, %v124
  %v158 = vpack.c.b16 %v131, %v128
  %v159 = vpack.c.b16 %v132, %v129
  %v160 = vpack.c.b16 %v133, %v130
  %v161 = vpack.c.b16 %v137, %v134
  %v162 = vpack.c.b16 %v138, %v135
  %v163 = vpack.c.b16 %v139, %v136
  %188 = vmatpush.bf16.msra.mxu0 %v161
  %189 = vmatpush.bf16.msra.mxu0 %v158
  %190 = vmatpush.bf16.msra.mxu0 %v155
  %191 = vmatpush.bf16.msra.mxu0 %v152
  %192 = vmatpush.bf16.msra.mxu0 %v149
  %193 = vmatpush.bf16.msra.mxu0 %v146
  %194 = vmatpush.bf16.msra.mxu0 %v143
  %195 = vmatpush.bf16.msra.mxu0 %v140
  %196 = vmatmul.bf16.gmra.mxu0 %v27
  %v197 = vpop.f32.mrf.mxu0
  %v198 = vadd.f32 0.0, %v197
  %v199 = vpop.f32.mrf.mxu0
  %200 = vdwg.mxu0
  %201 = vmatpush.bf16.msra.mxu0 %v162
  %202 = vmatpush.bf16.msra.mxu0 %v159
  %203 = vmatpush.bf16.msra.mxu0 %v156
  %204 = vmatpush.bf16.msra.mxu0 %v153
  %205 = vmatpush.bf16.msra.mxu0 %v150
  %206 = vmatpush.bf16.msra.mxu0 %v147
  %207 = vmatpush.bf16.msra.mxu0 %v144
  %208 = vmatpush.bf16.msra.mxu0 %v141
  %209 = vmatmul.bf16.gmra.mxu0 %v27
  %v210 = vpop.f32.mrf.mxu0
  %v211 = vadd.f32 0.0, %v210
  %v212 = vpop.f32.mrf.mxu0
  %213 = vdwg.mxu0
  %214 = vmatpush.bf16.msra.mxu0 %v163
  %215 = vmatpush.bf16.msra.mxu0 %v160
  %216 = vmatpush.bf16.msra.mxu0 %v157
  %217 = vmatpush.bf16.msra.mxu0 %v154
  %218 = vmatpush.bf16.msra.mxu0 %v151
  %219 = vmatpush.bf16.msra.mxu0 %v148
  %220 = vmatpush.bf16.msra.mxu0 %v145
  %221 = vmatpush.bf16.msra.mxu0 %v142
  %222 = vmatmul.bf16.gmra.mxu0 %v27
  %v223 = vpop.f32.mrf.mxu0
  %v224 = vadd.f32 0.0, %v223
  %v225 = vpop.f32.mrf.mxu0
  %226 = vdwg.mxu0
  %v227 = vunpack.c.l.bf16 %v26
  %v228 = vadd.f32 %v227, %v198
  %v229 = vmul.f32 %v228, 0.5
  %v230 = vtanh.pop %v229
  %v231 = vmul.f32 %v230, 0.5
  %v232 = vadd.f32 %v231, 0.5
  %v234 = vrot.slane %v26, 1
  %v236 = vunpack.c.l.bf16 %v234
  %v237 = vadd.f32 %v236, %v211
  %v238 = vmul.f32 %v237, 0.5
  %v239 = vtanh.pop %v238
  %v240 = vmul.f32 %v239, 0.5
  %v241 = vadd.f32 %v240, 0.5
  %v242 = vld [vmem:[%s3] sm:$0x1]
  %v244 = vperm.slane %v242, 0
  %v246 = vadd.f32 %v224, %v244
  %v247 = vmul.f32 %v232, %v246
  %v248 = vrot.slane %v26, 2
  %v250 = vunpack.c.l.bf16 %v248
  %v251 = vadd.f32 %v250, %v247
  %v252 = vtanh.pop %v251
  %v253 = vsub.f32 1.0, %v241
  %v254 = vmul.f32 %v253, %v252
  %v255 = vmul.f32 %v241, %v25
  %v256 = vadd.f32 %v254, %v255
  %v257 = vpack.c.bf16 %v256, %v256
  %258 = vst [vmem:[%s4] sm:$0x1] %v257
  %s259 = scalar_lea.vmem %s0, 3
  %v260 = vld [vmem:[%s259] sm:$0x7]
  %v261 = vld [vmem:[%s2] sm:$0xff]
  %v262 = vld [vmem:[%s2 + $0x8] sm:$0xf]
  %v263 = vld [vmem:[%s2 + $0xc] sm:$0xff]
  %v264 = vld [vmem:[%s2 + $0x14] sm:$0xf]
  %v265 = vld [vmem:[%s2 + $0x18] sm:$0xff]
  %v266 = vld [vmem:[%s2 + $0x20] sm:$0xf]
  %v267 = vld [vmem:[%s2 + $0x24] sm:$0xff]
  %v268 = vld [vmem:[%s2 + $0x2c] sm:$0xf]
  %v269 = vld [vmem:[%s2 + $0x30] sm:$0xff]
  %v270 = vld [vmem:[%s2 + $0x38] sm:$0xf]
  %v271 = vld [vmem:[%s2 + $0x3c] sm:$0xff]
  %v272 = vld [vmem:[%s2 + $0x44] sm:$0xf]
  %v273 = vld [vmem:[%s2 + $0x48] sm:$0xff]
  %v274 = vld [vmem:[%s2 + $0x50] sm:$0xf]
  %v275 = vld [vmem:[%s2 + $0x54] sm:$0xff]
  %v276 = vld [vmem:[%s2 + $0x5c] sm:$0xf]
  %v277 = vld [vmem:[%s2 + $0x60] sm:$0xff]
  %v278 = vld [vmem:[%s2 + $0x68] sm:$0xf]
  %v279 = vld [vmem:[%s2 + $0x6c] sm:$0xff]
  %v280 = vld [vmem:[%s2 + $0x74] sm:$0xf]
  %v281 = vld [vmem:[%s2 + $0x78] sm:$0xff]
  %v282 = vld [vmem:[%s2 + $0x80] sm:$0xf]
  %v283 = vld [vmem:[%s2 + $0x84] sm:$0xff]
  %v284 = vld [vmem:[%s2 + $0x8c] sm:$0xf]
  %v285 = vld [vmem:[%s2 + $0x90] sm:$0xff]
  %v286 = vld [vmem:[%s2 + $0x98] sm:$0xf]
  %v287 = vld [vmem:[%s2 + $0x9c] sm:$0xff]
  %v288 = vld [vmem:[%s2 + $0xa4] sm:$0xf]
  %v289 = vld [vmem:[%s2 + $0xa8] sm:$0xff]
  %v290 = vld [vmem:[%s2 + $0xb0] sm:$0xf]
  %v291 = vld [vmem:[%s2 + $0xb4] sm:$0xff]
  %v292 = vld [vmem:[%s2 + $0xbc] sm:$0xf]
  %v325 = vunpack.c.l.b16 %v261
  %v326 = vunpack.c.h.b16 %v261
  %v327 = vunpack.c.l.b16 %v262
  %v328 = vunpack.c.l.b16 %v263
  %v329 = vunpack.c.h.b16 %v263
  %v330 = vunpack.c.l.b16 %v264
  %v331 = vunpack.c.l.b16 %v265
  %v332 = vunpack.c.h.b16 %v265
  %v333 = vunpack.c.l.b16 %v266
  %v334 = vunpack.c.l.b16 %v267
  %v335 = vunpack.c.h.b16 %v267
  %v336 = vunpack.c.l.b16 %v268
  %v337 = vunpack.c.l.b16 %v269
  %v338 = vunpack.c.h.b16 %v269
  %v339 = vunpack.c.l.b16 %v270
  %v340 = vunpack.c.l.b16 %v271
  %v341 = vunpack.c.h.b16 %v271
  %v342 = vunpack.c.l.b16 %v272
  %v343 = vunpack.c.l.b16 %v273
  %v344 = vunpack.c.h.b16 %v273
  %v345 = vunpack.c.l.b16 %v274
  %v346 = vunpack.c.l.b16 %v275
  %v347 = vunpack.c.h.b16 %v275
  %v348 = vunpack.c.l.b16 %v276
  %v349 = vunpack.c.l.b16 %v277
  %v350 = vunpack.c.h.b16 %v277
  %v351 = vunpack.c.l.b16 %v278
  %v352 = vunpack.c.l.b16 %v279
  %v353 = vunpack.c.h.b16 %v279
  %v354 = vunpack.c.l.b16 %v280
  %v355 = vunpack.c.l.b16 %v281
  %v356 = vunpack.c.h.b16 %v281
  %v357 = vunpack.c.l.b16 %v282
  %v358 = vunpack.c.l.b16 %v283
  %v359 = vunpack.c.h.b16 %v283
  %v360 = vunpack.c.l.b16 %v284
  %v361 = vunpack.c.l.b16 %v285
  %v362 = vunpack.c.h.b16 %v285
  %v363 = vunpack.c.l.b16 %v286
  %v364 = vunpack.c.l.b16 %v287
  %v365 = vunpack.c.h.b16 %v287
  %v366 = vunpack.c.l.b16 %v288
  %v367 = vunpack.c.l.b16 %v289
  %v368 = vunpack.c.h.b16 %v289
  %v369 = vunpack.c.l.b16 %v290
  %v370 = vunpack.c.l.b16 %v291
  %v371 = vunpack.c.h.b16 %v291
  %v372 = vunpack.c.l.b16 %v292
  %v373 = vpack.c.b16 %v328, %v325
  %v374 = vpack.c.b16 %v329, %v326
  %v375 = vpack.c.b16 %v330, %v327
  %v376 = vpack.c.b16 %v334, %v331
  %v377 = vpack.c.b16 %v335, %v332
  %v378 = vpack.c.b16 %v336, %v333
  %v379 = vpack.c.b16 %v340, %v337
  %v380 = vpack.c.b16 %v341, %v338
  %v381 = vpack.c.b16 %v342, %v339
  %v382 = vpack.c.b16 %v346, %v343
  %v383 = vpack.c.b16 %v347, %v344
  %v384 = vpack.c.b16 %v348, %v345
  %v385 = vpack.c.b16 %v352, %v349
  %v386 = vpack.c.b16 %v353, %v350
  %v387 = vpack.c.b16 %v354, %v351
  %v388 = vpack.c.b16 %v358, %v355
  %v389 = vpack.c.b16 %v359, %v356
  %v390 = vpack.c.b16 %v360, %v357
  %v391 = vpack.c.b16 %v364, %v361
  %v392 = vpack.c.b16 %v365, %v362
  %v393 = vpack.c.b16 %v366, %v363
  %v394 = vpack.c.b16 %v370, %v367
  %v395 = vpack.c.b16 %v371, %v368
  %v396 = vpack.c.b16 %v372, %v369
  %421 = vmatpush.bf16.msra.mxu0 %v394
  %422 = vmatpush.bf16.msra.mxu0 %v391
  %423 = vmatpush.bf16.msra.mxu0 %v388
  %424 = vmatpush.bf16.msra.mxu0 %v385
  %425 = vmatpush.bf16.msra.mxu0 %v382
  %426 = vmatpush.bf16.msra.mxu0 %v379
  %427 = vmatpush.bf16.msra.mxu0 %v376
  %428 = vmatpush.bf16.msra.mxu0 %v373
  %429 = vmatmul.bf16.gmra.mxu0 %v257
  %v430 = vpop.f32.mrf.mxu0
  %v431 = vadd.f32 0.0, %v430
  %v432 = vpop.f32.mrf.mxu0
  %433 = vdwg.mxu0
  %434 = vmatpush.bf16.msra.mxu0 %v395
  %435 = vmatpush.bf16.msra.mxu0 %v392
  %436 = vmatpush.bf16.msra.mxu0 %v389
  %437 = vmatpush.bf16.msra.mxu0 %v386
  %438 = vmatpush.bf16.msra.mxu0 %v383
  %439 = vmatpush.bf16.msra.mxu0 %v380
  %440 = vmatpush.bf16.msra.mxu0 %v377
  %441 = vmatpush.bf16.msra.mxu0 %v374
  %442 = vmatmul.bf16.gmra.mxu0 %v257
  %v443 = vpop.f32.mrf.mxu0
  %v444 = vadd.f32 0.0, %v443
  %v445 = vpop.f32.mrf.mxu0
  %446 = vdwg.mxu0
  %447 = vmatpush.bf16.msra.mxu0 %v396
  %448 = vmatpush.bf16.msra.mxu0 %v393
  %449 = vmatpush.bf16.msra.mxu0 %v390
  %450 = vmatpush.bf16.msra.mxu0 %v387
  %451 = vmatpush.bf16.msra.mxu0 %v384
  %452 = vmatpush.bf16.msra.mxu0 %v381
  %453 = vmatpush.bf16.msra.mxu0 %v378
  %454 = vmatpush.bf16.msra.mxu0 %v375
  %455 = vmatmul.bf16.gmra.mxu0 %v257
  %v456 = vpop.f32.mrf.mxu0
  %v457 = vadd.f32 0.0, %v456
  %v458 = vpop.f32.mrf.mxu0
  %459 = vdwg.mxu0
  %v460 = vunpack.c.l.bf16 %v260
  %v461 = vadd.f32 %v460, %v431
  %v462 = vmul.f32 %v461, 0.5
  %v463 = vtanh.pop %v462
  %v464 = vmul.f32 %v463, 0.5
  %v465 = vadd.f32 %v464, 0.5
  %v467 = vrot.slane %v260, 1
  %v469 = vunpack.c.l.bf16 %v467
  %v470 = vadd.f32 %v469, %v444
  %v471 = vmul.f32 %v470, 0.5
  %v472 = vtanh.pop %v471
  %v473 = vmul.f32 %v472, 0.5
  %v474 = vadd.f32 %v473, 0.5
  %v475 = vld [vmem:[%s3] sm:$0x1]
  %v477 = vperm.slane %v475, 0
  %v479 = vadd.f32 %v457, %v477
  %v480 = vmul.f32 %v465, %v479
  %v481 = vrot.slane %v260, 2
  %v483 = vunpack.c.l.bf16 %v481
  %v484 = vadd.f32 %v483, %v480
  %v485 = vtanh.pop %v484
  %v486 = vsub.f32 1.0, %v474
  %v487 = vmul.f32 %v486, %v485
  %v488 = vmul.f32 %v474, %v256
  %v489 = vadd.f32 %v487, %v488
  %v490 = vpack.c.bf16 %v489, %v489
  %s491 = scalar_lea.vmem %s4, 1
  %492 = vst [vmem:[%s491] sm:$0x1] %v490
  %s493 = scalar_lea.vmem %s0, 6
  %v494 = vld [vmem:[%s493] sm:$0x7]
  %v495 = vld [vmem:[%s2] sm:$0xff]
  %v496 = vld [vmem:[%s2 + $0x8] sm:$0xf]
  %v497 = vld [vmem:[%s2 + $0xc] sm:$0xff]
  %v498 = vld [vmem:[%s2 + $0x14] sm:$0xf]
  %v499 = vld [vmem:[%s2 + $0x18] sm:$0xff]
  %v500 = vld [vmem:[%s2 + $0x20] sm:$0xf]
  %v501 = vld [vmem:[%s2 + $0x24] sm:$0xff]
  %v502 = vld [vmem:[%s2 + $0x2c] sm:$0xf]
  %v503 = vld [vmem:[%s2 + $0x30] sm:$0xff]
  %v504 = vld [vmem:[%s2 + $0x38] sm:$0xf]
  %v505 = vld [vmem:[%s2 + $0x3c] sm:$0xff]
  %v506 = vld [vmem:[%s2 + $0x44] sm:$0xf]
  %v507 = vld [vmem:[%s2 + $0x48] sm:$0xff]
  %v508 = vld [vmem:[%s2 + $0x50] sm:$0xf]
  %v509 = vld [vmem:[%s2 + $0x54] sm:$0xff]
  %v510 = vld [vmem:[%s2 + $0x5c] sm:$0xf]
  %v511 = vld [vmem:[%s2 + $0x60] sm:$0xff]
  %v512 = vld [vmem:[%s2 + $0x68] sm:$0xf]
  %v513 = vld [vmem:[%s2 + $0x6c] sm:$0xff]
  %v514 = vld [vmem:[%s2 + $0x74] sm:$0xf]
  %v515 = vld [vmem:[%s2 + $0x78] sm:$0xff]
  %v516 = vld [vmem:[%s2 + $0x80] sm:$0xf]
  %v517 = vld [vmem:[%s2 + $0x84] sm:$0xff]
  %v518 = vld [vmem:[%s2 + $0x8c] sm:$0xf]
  %v519 = vld [vmem:[%s2 + $0x90] sm:$0xff]
  %v520 = vld [vmem:[%s2 + $0x98] sm:$0xf]
  %v521 = vld [vmem:[%s2 + $0x9c] sm:$0xff]
  %v522 = vld [vmem:[%s2 + $0xa4] sm:$0xf]
  %v523 = vld [vmem:[%s2 + $0xa8] sm:$0xff]
  %v524 = vld [vmem:[%s2 + $0xb0] sm:$0xf]
  %v525 = vld [vmem:[%s2 + $0xb4] sm:$0xff]
  %v526 = vld [vmem:[%s2 + $0xbc] sm:$0xf]
  %v559 = vunpack.c.l.b16 %v495
  %v560 = vunpack.c.h.b16 %v495
  %v561 = vunpack.c.l.b16 %v496
  %v562 = vunpack.c.l.b16 %v497
  %v563 = vunpack.c.h.b16 %v497
  %v564 = vunpack.c.l.b16 %v498
  %v565 = vunpack.c.l.b16 %v499
  %v566 = vunpack.c.h.b16 %v499
  %v567 = vunpack.c.l.b16 %v500
  %v568 = vunpack.c.l.b16 %v501
  %v569 = vunpack.c.h.b16 %v501
  %v570 = vunpack.c.l.b16 %v502
  %v571 = vunpack.c.l.b16 %v503
  %v572 = vunpack.c.h.b16 %v503
  %v573 = vunpack.c.l.b16 %v504
  %v574 = vunpack.c.l.b16 %v505
  %v575 = vunpack.c.h.b16 %v505
  %v576 = vunpack.c.l.b16 %v506
  %v577 = vunpack.c.l.b16 %v507
  %v578 = vunpack.c.h.b16 %v507
  %v579 = vunpack.c.l.b16 %v508
  %v580 = vunpack.c.l.b16 %v509
  %v581 = vunpack.c.h.b16 %v509
  %v582 = vunpack.c.l.b16 %v510
  %v583 = vunpack.c.l.b16 %v511
  %v584 = vunpack.c.h.b16 %v511
  %v585 = vunpack.c.l.b16 %v512
  %v586 = vunpack.c.l.b16 %v513
  %v587 = vunpack.c.h.b16 %v513
  %v588 = vunpack.c.l.b16 %v514
  %v589 = vunpack.c.l.b16 %v515
  %v590 = vunpack.c.h.b16 %v515
  %v591 = vunpack.c.l.b16 %v516
  %v592 = vunpack.c.l.b16 %v517
  %v593 = vunpack.c.h.b16 %v517
  %v594 = vunpack.c.l.b16 %v518
  %v595 = vunpack.c.l.b16 %v519
  %v596 = vunpack.c.h.b16 %v519
  %v597 = vunpack.c.l.b16 %v520
  %v598 = vunpack.c.l.b16 %v521
  %v599 = vunpack.c.h.b16 %v521
  %v600 = vunpack.c.l.b16 %v522
  %v601 = vunpack.c.l.b16 %v523
  %v602 = vunpack.c.h.b16 %v523
  %v603 = vunpack.c.l.b16 %v524
  %v604 = vunpack.c.l.b16 %v525
  %v605 = vunpack.c.h.b16 %v525
  %v606 = vunpack.c.l.b16 %v526
  %v607 = vpack.c.b16 %v562, %v559
  %v608 = vpack.c.b16 %v563, %v560
  %v609 = vpack.c.b16 %v564, %v561
  %v610 = vpack.c.b16 %v568, %v565
  %v611 = vpack.c.b16 %v569, %v566
  %v612 = vpack.c.b16 %v570, %v567
  %v613 = vpack.c.b16 %v574, %v571
  %v614 = vpack.c.b16 %v575, %v572
  %v615 = vpack.c.b16 %v576, %v573
  %v616 = vpack.c.b16 %v580, %v577
  %v617 = vpack.c.b16 %v581, %v578
  %v618 = vpack.c.b16 %v582, %v579
  %v619 = vpack.c.b16 %v586, %v583
  %v620 = vpack.c.b16 %v587, %v584
  %v621 = vpack.c.b16 %v588, %v585
  %v622 = vpack.c.b16 %v592, %v589
  %v623 = vpack.c.b16 %v593, %v590
  %v624 = vpack.c.b16 %v594, %v591
  %v625 = vpack.c.b16 %v598, %v595
  %v626 = vpack.c.b16 %v599, %v596
  %v627 = vpack.c.b16 %v600, %v597
  %v628 = vpack.c.b16 %v604, %v601
  %v629 = vpack.c.b16 %v605, %v602
  %v630 = vpack.c.b16 %v606, %v603
  %655 = vmatpush.bf16.msra.mxu0 %v628
  %656 = vmatpush.bf16.msra.mxu0 %v625
  %657 = vmatpush.bf16.msra.mxu0 %v622
  %658 = vmatpush.bf16.msra.mxu0 %v619
  %659 = vmatpush.bf16.msra.mxu0 %v616
  %660 = vmatpush.bf16.msra.mxu0 %v613
  %661 = vmatpush.bf16.msra.mxu0 %v610
  %662 = vmatpush.bf16.msra.mxu0 %v607
  %663 = vmatmul.bf16.gmra.mxu0 %v490
  %v664 = vpop.f32.mrf.mxu0
  %v665 = vadd.f32 0.0, %v664
  %v666 = vpop.f32.mrf.mxu0
  %667 = vdwg.mxu0
  %668 = vmatpush.bf16.msra.mxu0 %v629
  %669 = vmatpush.bf16.msra.mxu0 %v626
  %670 = vmatpush.bf16.msra.mxu0 %v623
  %671 = vmatpush.bf16.msra.mxu0 %v620
  %672 = vmatpush.bf16.msra.mxu0 %v617
  %673 = vmatpush.bf16.msra.mxu0 %v614
  %674 = vmatpush.bf16.msra.mxu0 %v611
  %675 = vmatpush.bf16.msra.mxu0 %v608
  %676 = vmatmul.bf16.gmra.mxu0 %v490
  %v677 = vpop.f32.mrf.mxu0
  %v678 = vadd.f32 0.0, %v677
  %v679 = vpop.f32.mrf.mxu0
  %680 = vdwg.mxu0
  %681 = vmatpush.bf16.msra.mxu0 %v630
  %682 = vmatpush.bf16.msra.mxu0 %v627
  %683 = vmatpush.bf16.msra.mxu0 %v624
  %684 = vmatpush.bf16.msra.mxu0 %v621
  %685 = vmatpush.bf16.msra.mxu0 %v618
  %686 = vmatpush.bf16.msra.mxu0 %v615
  %687 = vmatpush.bf16.msra.mxu0 %v612
  %688 = vmatpush.bf16.msra.mxu0 %v609
  %689 = vmatmul.bf16.gmra.mxu0 %v490
  %v690 = vpop.f32.mrf.mxu0
  %v691 = vadd.f32 0.0, %v690
  %v692 = vpop.f32.mrf.mxu0
  %693 = vdwg.mxu0
  %v694 = vunpack.c.l.bf16 %v494
  %v695 = vadd.f32 %v694, %v665
  %v696 = vmul.f32 %v695, 0.5
  %v697 = vtanh.pop %v696
  %v698 = vmul.f32 %v697, 0.5
  %v699 = vadd.f32 %v698, 0.5
  %v701 = vrot.slane %v494, 1
  %v703 = vunpack.c.l.bf16 %v701
  %v704 = vadd.f32 %v703, %v678
  %v705 = vmul.f32 %v704, 0.5
  %v706 = vtanh.pop %v705
  %v707 = vmul.f32 %v706, 0.5
  %v708 = vadd.f32 %v707, 0.5
  %v709 = vld [vmem:[%s3] sm:$0x1]
  %v711 = vperm.slane %v709, 0
  %v713 = vadd.f32 %v691, %v711
  %v714 = vmul.f32 %v699, %v713
  %v715 = vrot.slane %v494, 2
  %v717 = vunpack.c.l.bf16 %v715
  %v718 = vadd.f32 %v717, %v714
  %v719 = vtanh.pop %v718
  %v720 = vsub.f32 1.0, %v708
  %v721 = vmul.f32 %v720, %v719
  %v722 = vmul.f32 %v708, %v489
  %v723 = vadd.f32 %v721, %v722
  %v724 = vpack.c.bf16 %v723, %v723
  %s725 = scalar_lea.vmem %s4, 2
  %726 = vst [vmem:[%s725] sm:$0x1] %v724
  %s727 = scalar_lea.vmem %s0, 9
  %v728 = vld [vmem:[%s727] sm:$0x7]
  %v729 = vld [vmem:[%s2] sm:$0xff]
  %v730 = vld [vmem:[%s2 + $0x8] sm:$0xf]
  %v731 = vld [vmem:[%s2 + $0xc] sm:$0xff]
  %v732 = vld [vmem:[%s2 + $0x14] sm:$0xf]
  %v733 = vld [vmem:[%s2 + $0x18] sm:$0xff]
  %v734 = vld [vmem:[%s2 + $0x20] sm:$0xf]
  %v735 = vld [vmem:[%s2 + $0x24] sm:$0xff]
  %v736 = vld [vmem:[%s2 + $0x2c] sm:$0xf]
  %v737 = vld [vmem:[%s2 + $0x30] sm:$0xff]
  %v738 = vld [vmem:[%s2 + $0x38] sm:$0xf]
  %v739 = vld [vmem:[%s2 + $0x3c] sm:$0xff]
  %v740 = vld [vmem:[%s2 + $0x44] sm:$0xf]
  %v741 = vld [vmem:[%s2 + $0x48] sm:$0xff]
  %v742 = vld [vmem:[%s2 + $0x50] sm:$0xf]
  %v743 = vld [vmem:[%s2 + $0x54] sm:$0xff]
  %v744 = vld [vmem:[%s2 + $0x5c] sm:$0xf]
  %v745 = vld [vmem:[%s2 + $0x60] sm:$0xff]
  %v746 = vld [vmem:[%s2 + $0x68] sm:$0xf]
  %v747 = vld [vmem:[%s2 + $0x6c] sm:$0xff]
  %v748 = vld [vmem:[%s2 + $0x74] sm:$0xf]
  %v749 = vld [vmem:[%s2 + $0x78] sm:$0xff]
  %v750 = vld [vmem:[%s2 + $0x80] sm:$0xf]
  %v751 = vld [vmem:[%s2 + $0x84] sm:$0xff]
  %v752 = vld [vmem:[%s2 + $0x8c] sm:$0xf]
  %v753 = vld [vmem:[%s2 + $0x90] sm:$0xff]
  %v754 = vld [vmem:[%s2 + $0x98] sm:$0xf]
  %v755 = vld [vmem:[%s2 + $0x9c] sm:$0xff]
  %v756 = vld [vmem:[%s2 + $0xa4] sm:$0xf]
  %v757 = vld [vmem:[%s2 + $0xa8] sm:$0xff]
  %v758 = vld [vmem:[%s2 + $0xb0] sm:$0xf]
  %v759 = vld [vmem:[%s2 + $0xb4] sm:$0xff]
  %v760 = vld [vmem:[%s2 + $0xbc] sm:$0xf]
  %v793 = vunpack.c.l.b16 %v729
  %v794 = vunpack.c.h.b16 %v729
  %v795 = vunpack.c.l.b16 %v730
  %v796 = vunpack.c.l.b16 %v731
  %v797 = vunpack.c.h.b16 %v731
  %v798 = vunpack.c.l.b16 %v732
  %v799 = vunpack.c.l.b16 %v733
  %v800 = vunpack.c.h.b16 %v733
  %v801 = vunpack.c.l.b16 %v734
  %v802 = vunpack.c.l.b16 %v735
  %v803 = vunpack.c.h.b16 %v735
  %v804 = vunpack.c.l.b16 %v736
  %v805 = vunpack.c.l.b16 %v737
  %v806 = vunpack.c.h.b16 %v737
  %v807 = vunpack.c.l.b16 %v738
  %v808 = vunpack.c.l.b16 %v739
  %v809 = vunpack.c.h.b16 %v739
  %v810 = vunpack.c.l.b16 %v740
  %v811 = vunpack.c.l.b16 %v741
  %v812 = vunpack.c.h.b16 %v741
  %v813 = vunpack.c.l.b16 %v742
  %v814 = vunpack.c.l.b16 %v743
  %v815 = vunpack.c.h.b16 %v743
  %v816 = vunpack.c.l.b16 %v744
  %v817 = vunpack.c.l.b16 %v745
  %v818 = vunpack.c.h.b16 %v745
  %v819 = vunpack.c.l.b16 %v746
  %v820 = vunpack.c.l.b16 %v747
  %v821 = vunpack.c.h.b16 %v747
  %v822 = vunpack.c.l.b16 %v748
  %v823 = vunpack.c.l.b16 %v749
  %v824 = vunpack.c.h.b16 %v749
  %v825 = vunpack.c.l.b16 %v750
  %v826 = vunpack.c.l.b16 %v751
  %v827 = vunpack.c.h.b16 %v751
  %v828 = vunpack.c.l.b16 %v752
  %v829 = vunpack.c.l.b16 %v753
  %v830 = vunpack.c.h.b16 %v753
  %v831 = vunpack.c.l.b16 %v754
  %v832 = vunpack.c.l.b16 %v755
  %v833 = vunpack.c.h.b16 %v755
  %v834 = vunpack.c.l.b16 %v756
  %v835 = vunpack.c.l.b16 %v757
  %v836 = vunpack.c.h.b16 %v757
  %v837 = vunpack.c.l.b16 %v758
  %v838 = vunpack.c.l.b16 %v759
  %v839 = vunpack.c.h.b16 %v759
  %v840 = vunpack.c.l.b16 %v760
  %v841 = vpack.c.b16 %v796, %v793
  %v842 = vpack.c.b16 %v797, %v794
  %v843 = vpack.c.b16 %v798, %v795
  %v844 = vpack.c.b16 %v802, %v799
  %v845 = vpack.c.b16 %v803, %v800
  %v846 = vpack.c.b16 %v804, %v801
  %v847 = vpack.c.b16 %v808, %v805
  %v848 = vpack.c.b16 %v809, %v806
  %v849 = vpack.c.b16 %v810, %v807
  %v850 = vpack.c.b16 %v814, %v811
  %v851 = vpack.c.b16 %v815, %v812
  %v852 = vpack.c.b16 %v816, %v813
  %v853 = vpack.c.b16 %v820, %v817
  %v854 = vpack.c.b16 %v821, %v818
  %v855 = vpack.c.b16 %v822, %v819
  %v856 = vpack.c.b16 %v826, %v823
  %v857 = vpack.c.b16 %v827, %v824
  %v858 = vpack.c.b16 %v828, %v825
  %v859 = vpack.c.b16 %v832, %v829
  %v860 = vpack.c.b16 %v833, %v830
  %v861 = vpack.c.b16 %v834, %v831
  %v862 = vpack.c.b16 %v838, %v835
  %v863 = vpack.c.b16 %v839, %v836
  %v864 = vpack.c.b16 %v840, %v837
  %889 = vmatpush.bf16.msra.mxu0 %v862
  %890 = vmatpush.bf16.msra.mxu0 %v859
  %891 = vmatpush.bf16.msra.mxu0 %v856
  %892 = vmatpush.bf16.msra.mxu0 %v853
  %893 = vmatpush.bf16.msra.mxu0 %v850
  %894 = vmatpush.bf16.msra.mxu0 %v847
  %895 = vmatpush.bf16.msra.mxu0 %v844
  %896 = vmatpush.bf16.msra.mxu0 %v841
  %897 = vmatmul.bf16.gmra.mxu0 %v724
  %v898 = vpop.f32.mrf.mxu0
  %v899 = vadd.f32 0.0, %v898
  %v900 = vpop.f32.mrf.mxu0
  %901 = vdwg.mxu0
  %902 = vmatpush.bf16.msra.mxu0 %v863
  %903 = vmatpush.bf16.msra.mxu0 %v860
  %904 = vmatpush.bf16.msra.mxu0 %v857
  %905 = vmatpush.bf16.msra.mxu0 %v854
  %906 = vmatpush.bf16.msra.mxu0 %v851
  %907 = vmatpush.bf16.msra.mxu0 %v848
  %908 = vmatpush.bf16.msra.mxu0 %v845
  %909 = vmatpush.bf16.msra.mxu0 %v842
  %910 = vmatmul.bf16.gmra.mxu0 %v724
  %v911 = vpop.f32.mrf.mxu0
  %v912 = vadd.f32 0.0, %v911
  %v913 = vpop.f32.mrf.mxu0
  %914 = vdwg.mxu0
  %915 = vmatpush.bf16.msra.mxu0 %v864
  %916 = vmatpush.bf16.msra.mxu0 %v861
  %917 = vmatpush.bf16.msra.mxu0 %v858
  %918 = vmatpush.bf16.msra.mxu0 %v855
  %919 = vmatpush.bf16.msra.mxu0 %v852
  %920 = vmatpush.bf16.msra.mxu0 %v849
  %921 = vmatpush.bf16.msra.mxu0 %v846
  %922 = vmatpush.bf16.msra.mxu0 %v843
  %923 = vmatmul.bf16.gmra.mxu0 %v724
  %v924 = vpop.f32.mrf.mxu0
  %v925 = vadd.f32 0.0, %v924
  %v926 = vpop.f32.mrf.mxu0
  %927 = vdwg.mxu0
  %v928 = vunpack.c.l.bf16 %v728
  %v929 = vadd.f32 %v928, %v899
  %v930 = vmul.f32 %v929, 0.5
  %v931 = vtanh.pop %v930
  %v932 = vmul.f32 %v931, 0.5
  %v933 = vadd.f32 %v932, 0.5
  %v935 = vrot.slane %v728, 1
  %v937 = vunpack.c.l.bf16 %v935
  %v938 = vadd.f32 %v937, %v912
  %v939 = vmul.f32 %v938, 0.5
  %v940 = vtanh.pop %v939
  %v941 = vmul.f32 %v940, 0.5
  %v942 = vadd.f32 %v941, 0.5
  %v943 = vld [vmem:[%s3] sm:$0x1]
  %v945 = vperm.slane %v943, 0
  %v947 = vadd.f32 %v925, %v945
  %v948 = vmul.f32 %v933, %v947
  %v949 = vrot.slane %v728, 2
  %v951 = vunpack.c.l.bf16 %v949
  %v952 = vadd.f32 %v951, %v948
  %v953 = vtanh.pop %v952
  %v954 = vsub.f32 1.0, %v942
  %v955 = vmul.f32 %v954, %v953
  %v956 = vmul.f32 %v942, %v723
  %v957 = vadd.f32 %v955, %v956
  %v958 = vpack.c.bf16 %v957, %v957
  %s959 = scalar_lea.vmem %s4, 3
  %960 = vst [vmem:[%s959] sm:$0x1] %v958
  %s961 = scalar_lea.vmem %s0, 12
  %v962 = vld [vmem:[%s961] sm:$0x7]
  %v963 = vld [vmem:[%s2] sm:$0xff]
  %v964 = vld [vmem:[%s2 + $0x8] sm:$0xf]
  %v965 = vld [vmem:[%s2 + $0xc] sm:$0xff]
  %v966 = vld [vmem:[%s2 + $0x14] sm:$0xf]
  %v967 = vld [vmem:[%s2 + $0x18] sm:$0xff]
  %v968 = vld [vmem:[%s2 + $0x20] sm:$0xf]
  %v969 = vld [vmem:[%s2 + $0x24] sm:$0xff]
  %v970 = vld [vmem:[%s2 + $0x2c] sm:$0xf]
  %v971 = vld [vmem:[%s2 + $0x30] sm:$0xff]
  %v972 = vld [vmem:[%s2 + $0x38] sm:$0xf]
  %v973 = vld [vmem:[%s2 + $0x3c] sm:$0xff]
  %v974 = vld [vmem:[%s2 + $0x44] sm:$0xf]
  %v975 = vld [vmem:[%s2 + $0x48] sm:$0xff]
  %v976 = vld [vmem:[%s2 + $0x50] sm:$0xf]
  %v977 = vld [vmem:[%s2 + $0x54] sm:$0xff]
  %v978 = vld [vmem:[%s2 + $0x5c] sm:$0xf]
  %v979 = vld [vmem:[%s2 + $0x60] sm:$0xff]
  %v980 = vld [vmem:[%s2 + $0x68] sm:$0xf]
  %v981 = vld [vmem:[%s2 + $0x6c] sm:$0xff]
  %v982 = vld [vmem:[%s2 + $0x74] sm:$0xf]
  %v983 = vld [vmem:[%s2 + $0x78] sm:$0xff]
  %v984 = vld [vmem:[%s2 + $0x80] sm:$0xf]
  %v985 = vld [vmem:[%s2 + $0x84] sm:$0xff]
  %v986 = vld [vmem:[%s2 + $0x8c] sm:$0xf]
  %v987 = vld [vmem:[%s2 + $0x90] sm:$0xff]
  %v988 = vld [vmem:[%s2 + $0x98] sm:$0xf]
  %v989 = vld [vmem:[%s2 + $0x9c] sm:$0xff]
  %v990 = vld [vmem:[%s2 + $0xa4] sm:$0xf]
  %v991 = vld [vmem:[%s2 + $0xa8] sm:$0xff]
  %v992 = vld [vmem:[%s2 + $0xb0] sm:$0xf]
  %v993 = vld [vmem:[%s2 + $0xb4] sm:$0xff]
  %v994 = vld [vmem:[%s2 + $0xbc] sm:$0xf]
  %v1027 = vunpack.c.l.b16 %v963
  %v1028 = vunpack.c.h.b16 %v963
  %v1029 = vunpack.c.l.b16 %v964
  %v1030 = vunpack.c.l.b16 %v965
  %v1031 = vunpack.c.h.b16 %v965
  %v1032 = vunpack.c.l.b16 %v966
  %v1033 = vunpack.c.l.b16 %v967
  %v1034 = vunpack.c.h.b16 %v967
  %v1035 = vunpack.c.l.b16 %v968
  %v1036 = vunpack.c.l.b16 %v969
  %v1037 = vunpack.c.h.b16 %v969
  %v1038 = vunpack.c.l.b16 %v970
  %v1039 = vunpack.c.l.b16 %v971
  %v1040 = vunpack.c.h.b16 %v971
  %v1041 = vunpack.c.l.b16 %v972
  %v1042 = vunpack.c.l.b16 %v973
  %v1043 = vunpack.c.h.b16 %v973
  %v1044 = vunpack.c.l.b16 %v974
  %v1045 = vunpack.c.l.b16 %v975
  %v1046 = vunpack.c.h.b16 %v975
  %v1047 = vunpack.c.l.b16 %v976
  %v1048 = vunpack.c.l.b16 %v977
  %v1049 = vunpack.c.h.b16 %v977
  %v1050 = vunpack.c.l.b16 %v978
  %v1051 = vunpack.c.l.b16 %v979
  %v1052 = vunpack.c.h.b16 %v979
  %v1053 = vunpack.c.l.b16 %v980
  %v1054 = vunpack.c.l.b16 %v981
  %v1055 = vunpack.c.h.b16 %v981
  %v1056 = vunpack.c.l.b16 %v982
  %v1057 = vunpack.c.l.b16 %v983
  %v1058 = vunpack.c.h.b16 %v983
  %v1059 = vunpack.c.l.b16 %v984
  %v1060 = vunpack.c.l.b16 %v985
  %v1061 = vunpack.c.h.b16 %v985
  %v1062 = vunpack.c.l.b16 %v986
  %v1063 = vunpack.c.l.b16 %v987
  %v1064 = vunpack.c.h.b16 %v987
  %v1065 = vunpack.c.l.b16 %v988
  %v1066 = vunpack.c.l.b16 %v989
  %v1067 = vunpack.c.h.b16 %v989
  %v1068 = vunpack.c.l.b16 %v990
  %v1069 = vunpack.c.l.b16 %v991
  %v1070 = vunpack.c.h.b16 %v991
  %v1071 = vunpack.c.l.b16 %v992
  %v1072 = vunpack.c.l.b16 %v993
  %v1073 = vunpack.c.h.b16 %v993
  %v1074 = vunpack.c.l.b16 %v994
  %v1075 = vpack.c.b16 %v1030, %v1027
  %v1076 = vpack.c.b16 %v1031, %v1028
  %v1077 = vpack.c.b16 %v1032, %v1029
  %v1078 = vpack.c.b16 %v1036, %v1033
  %v1079 = vpack.c.b16 %v1037, %v1034
  %v1080 = vpack.c.b16 %v1038, %v1035
  %v1081 = vpack.c.b16 %v1042, %v1039
  %v1082 = vpack.c.b16 %v1043, %v1040
  %v1083 = vpack.c.b16 %v1044, %v1041
  %v1084 = vpack.c.b16 %v1048, %v1045
  %v1085 = vpack.c.b16 %v1049, %v1046
  %v1086 = vpack.c.b16 %v1050, %v1047
  %v1087 = vpack.c.b16 %v1054, %v1051
  %v1088 = vpack.c.b16 %v1055, %v1052
  %v1089 = vpack.c.b16 %v1056, %v1053
  %v1090 = vpack.c.b16 %v1060, %v1057
  %v1091 = vpack.c.b16 %v1061, %v1058
  %v1092 = vpack.c.b16 %v1062, %v1059
  %v1093 = vpack.c.b16 %v1066, %v1063
  %v1094 = vpack.c.b16 %v1067, %v1064
  %v1095 = vpack.c.b16 %v1068, %v1065
  %v1096 = vpack.c.b16 %v1072, %v1069
  %v1097 = vpack.c.b16 %v1073, %v1070
  %v1098 = vpack.c.b16 %v1074, %v1071
  %1123 = vmatpush.bf16.msra.mxu0 %v1096
  %1124 = vmatpush.bf16.msra.mxu0 %v1093
  %1125 = vmatpush.bf16.msra.mxu0 %v1090
  %1126 = vmatpush.bf16.msra.mxu0 %v1087
  %1127 = vmatpush.bf16.msra.mxu0 %v1084
  %1128 = vmatpush.bf16.msra.mxu0 %v1081
  %1129 = vmatpush.bf16.msra.mxu0 %v1078
  %1130 = vmatpush.bf16.msra.mxu0 %v1075
  %1131 = vmatmul.bf16.gmra.mxu0 %v958
  %v1132 = vpop.f32.mrf.mxu0
  %v1133 = vadd.f32 0.0, %v1132
  %v1134 = vpop.f32.mrf.mxu0
  %1135 = vdwg.mxu0
  %1136 = vmatpush.bf16.msra.mxu0 %v1097
  %1137 = vmatpush.bf16.msra.mxu0 %v1094
  %1138 = vmatpush.bf16.msra.mxu0 %v1091
  %1139 = vmatpush.bf16.msra.mxu0 %v1088
  %1140 = vmatpush.bf16.msra.mxu0 %v1085
  %1141 = vmatpush.bf16.msra.mxu0 %v1082
  %1142 = vmatpush.bf16.msra.mxu0 %v1079
  %1143 = vmatpush.bf16.msra.mxu0 %v1076
  %1144 = vmatmul.bf16.gmra.mxu0 %v958
  %v1145 = vpop.f32.mrf.mxu0
  %v1146 = vadd.f32 0.0, %v1145
  %v1147 = vpop.f32.mrf.mxu0
  %1148 = vdwg.mxu0
  %1149 = vmatpush.bf16.msra.mxu0 %v1098
  %1150 = vmatpush.bf16.msra.mxu0 %v1095
  %1151 = vmatpush.bf16.msra.mxu0 %v1092
  %1152 = vmatpush.bf16.msra.mxu0 %v1089
  %1153 = vmatpush.bf16.msra.mxu0 %v1086
  %1154 = vmatpush.bf16.msra.mxu0 %v1083
  %1155 = vmatpush.bf16.msra.mxu0 %v1080
  %1156 = vmatpush.bf16.msra.mxu0 %v1077
  %1157 = vmatmul.bf16.gmra.mxu0 %v958
  %v1158 = vpop.f32.mrf.mxu0
  %v1159 = vadd.f32 0.0, %v1158
  %v1160 = vpop.f32.mrf.mxu0
  %1161 = vdwg.mxu0
  %v1162 = vunpack.c.l.bf16 %v962
  %v1163 = vadd.f32 %v1162, %v1133
  %v1164 = vmul.f32 %v1163, 0.5
  %v1165 = vtanh.pop %v1164
  %v1166 = vmul.f32 %v1165, 0.5
  %v1167 = vadd.f32 %v1166, 0.5
  %v1169 = vrot.slane %v962, 1
  %v1171 = vunpack.c.l.bf16 %v1169
  %v1172 = vadd.f32 %v1171, %v1146
  %v1173 = vmul.f32 %v1172, 0.5
  %v1174 = vtanh.pop %v1173
  %v1175 = vmul.f32 %v1174, 0.5
  %v1176 = vadd.f32 %v1175, 0.5
  %v1177 = vld [vmem:[%s3] sm:$0x1]
  %v1179 = vperm.slane %v1177, 0
  %v1181 = vadd.f32 %v1159, %v1179
  %v1182 = vmul.f32 %v1167, %v1181
  %v1183 = vrot.slane %v962, 2
  %v1185 = vunpack.c.l.bf16 %v1183
  %v1186 = vadd.f32 %v1185, %v1182
  %v1187 = vtanh.pop %v1186
  %v1188 = vsub.f32 1.0, %v1176
  %v1189 = vmul.f32 %v1188, %v1187
  %v1190 = vmul.f32 %v1176, %v957
  %v1191 = vadd.f32 %v1189, %v1190
  %v1192 = vpack.c.bf16 %v1191, %v1191
  %s1193 = scalar_lea.vmem %s4, 4
  %1194 = vst [vmem:[%s1193] sm:$0x1] %v1192
  %s1195 = scalar_lea.vmem %s0, 15
  %v1196 = vld [vmem:[%s1195] sm:$0x7]
  %v1197 = vld [vmem:[%s2] sm:$0xff]
  %v1198 = vld [vmem:[%s2 + $0x8] sm:$0xf]
  %v1199 = vld [vmem:[%s2 + $0xc] sm:$0xff]
  %v1200 = vld [vmem:[%s2 + $0x14] sm:$0xf]
  %v1201 = vld [vmem:[%s2 + $0x18] sm:$0xff]
  %v1202 = vld [vmem:[%s2 + $0x20] sm:$0xf]
  %v1203 = vld [vmem:[%s2 + $0x24] sm:$0xff]
  %v1204 = vld [vmem:[%s2 + $0x2c] sm:$0xf]
  %v1205 = vld [vmem:[%s2 + $0x30] sm:$0xff]
  %v1206 = vld [vmem:[%s2 + $0x38] sm:$0xf]
  %v1207 = vld [vmem:[%s2 + $0x3c] sm:$0xff]
  %v1208 = vld [vmem:[%s2 + $0x44] sm:$0xf]
  %v1209 = vld [vmem:[%s2 + $0x48] sm:$0xff]
  %v1210 = vld [vmem:[%s2 + $0x50] sm:$0xf]
  %v1211 = vld [vmem:[%s2 + $0x54] sm:$0xff]
  %v1212 = vld [vmem:[%s2 + $0x5c] sm:$0xf]
  %v1213 = vld [vmem:[%s2 + $0x60] sm:$0xff]
  %v1214 = vld [vmem:[%s2 + $0x68] sm:$0xf]
  %v1215 = vld [vmem:[%s2 + $0x6c] sm:$0xff]
  %v1216 = vld [vmem:[%s2 + $0x74] sm:$0xf]
  %v1217 = vld [vmem:[%s2 + $0x78] sm:$0xff]
  %v1218 = vld [vmem:[%s2 + $0x80] sm:$0xf]
  %v1219 = vld [vmem:[%s2 + $0x84] sm:$0xff]
  %v1220 = vld [vmem:[%s2 + $0x8c] sm:$0xf]
  %v1221 = vld [vmem:[%s2 + $0x90] sm:$0xff]
  %v1222 = vld [vmem:[%s2 + $0x98] sm:$0xf]
  %v1223 = vld [vmem:[%s2 + $0x9c] sm:$0xff]
  %v1224 = vld [vmem:[%s2 + $0xa4] sm:$0xf]
  %v1225 = vld [vmem:[%s2 + $0xa8] sm:$0xff]
  %v1226 = vld [vmem:[%s2 + $0xb0] sm:$0xf]
  %v1227 = vld [vmem:[%s2 + $0xb4] sm:$0xff]
  %v1228 = vld [vmem:[%s2 + $0xbc] sm:$0xf]
  %v1261 = vunpack.c.l.b16 %v1197
  %v1262 = vunpack.c.h.b16 %v1197
  %v1263 = vunpack.c.l.b16 %v1198
  %v1264 = vunpack.c.l.b16 %v1199
  %v1265 = vunpack.c.h.b16 %v1199
  %v1266 = vunpack.c.l.b16 %v1200
  %v1267 = vunpack.c.l.b16 %v1201
  %v1268 = vunpack.c.h.b16 %v1201
  %v1269 = vunpack.c.l.b16 %v1202
  %v1270 = vunpack.c.l.b16 %v1203
  %v1271 = vunpack.c.h.b16 %v1203
  %v1272 = vunpack.c.l.b16 %v1204
  %v1273 = vunpack.c.l.b16 %v1205
  %v1274 = vunpack.c.h.b16 %v1205
  %v1275 = vunpack.c.l.b16 %v1206
  %v1276 = vunpack.c.l.b16 %v1207
  %v1277 = vunpack.c.h.b16 %v1207
  %v1278 = vunpack.c.l.b16 %v1208
  %v1279 = vunpack.c.l.b16 %v1209
  %v1280 = vunpack.c.h.b16 %v1209
  %v1281 = vunpack.c.l.b16 %v1210
  %v1282 = vunpack.c.l.b16 %v1211
  %v1283 = vunpack.c.h.b16 %v1211
  %v1284 = vunpack.c.l.b16 %v1212
  %v1285 = vunpack.c.l.b16 %v1213
  %v1286 = vunpack.c.h.b16 %v1213
  %v1287 = vunpack.c.l.b16 %v1214
  %v1288 = vunpack.c.l.b16 %v1215
  %v1289 = vunpack.c.h.b16 %v1215
  %v1290 = vunpack.c.l.b16 %v1216
  %v1291 = vunpack.c.l.b16 %v1217
  %v1292 = vunpack.c.h.b16 %v1217
  %v1293 = vunpack.c.l.b16 %v1218
  %v1294 = vunpack.c.l.b16 %v1219
  %v1295 = vunpack.c.h.b16 %v1219
  %v1296 = vunpack.c.l.b16 %v1220
  %v1297 = vunpack.c.l.b16 %v1221
  %v1298 = vunpack.c.h.b16 %v1221
  %v1299 = vunpack.c.l.b16 %v1222
  %v1300 = vunpack.c.l.b16 %v1223
  %v1301 = vunpack.c.h.b16 %v1223
  %v1302 = vunpack.c.l.b16 %v1224
  %v1303 = vunpack.c.l.b16 %v1225
  %v1304 = vunpack.c.h.b16 %v1225
  %v1305 = vunpack.c.l.b16 %v1226
  %v1306 = vunpack.c.l.b16 %v1227
  %v1307 = vunpack.c.h.b16 %v1227
  %v1308 = vunpack.c.l.b16 %v1228
  %v1309 = vpack.c.b16 %v1264, %v1261
  %v1310 = vpack.c.b16 %v1265, %v1262
  %v1311 = vpack.c.b16 %v1266, %v1263
  %v1312 = vpack.c.b16 %v1270, %v1267
  %v1313 = vpack.c.b16 %v1271, %v1268
  %v1314 = vpack.c.b16 %v1272, %v1269
  %v1315 = vpack.c.b16 %v1276, %v1273
  %v1316 = vpack.c.b16 %v1277, %v1274
  %v1317 = vpack.c.b16 %v1278, %v1275
  %v1318 = vpack.c.b16 %v1282, %v1279
  %v1319 = vpack.c.b16 %v1283, %v1280
  %v1320 = vpack.c.b16 %v1284, %v1281
  %v1321 = vpack.c.b16 %v1288, %v1285
  %v1322 = vpack.c.b16 %v1289, %v1286
  %v1323 = vpack.c.b16 %v1290, %v1287
  %v1324 = vpack.c.b16 %v1294, %v1291
  %v1325 = vpack.c.b16 %v1295, %v1292
  %v1326 = vpack.c.b16 %v1296, %v1293
  %v1327 = vpack.c.b16 %v1300, %v1297
  %v1328 = vpack.c.b16 %v1301, %v1298
  %v1329 = vpack.c.b16 %v1302, %v1299
  %v1330 = vpack.c.b16 %v1306, %v1303
  %v1331 = vpack.c.b16 %v1307, %v1304
  %v1332 = vpack.c.b16 %v1308, %v1305
  %1357 = vmatpush.bf16.msra.mxu0 %v1330
  %1358 = vmatpush.bf16.msra.mxu0 %v1327
  %1359 = vmatpush.bf16.msra.mxu0 %v1324
  %1360 = vmatpush.bf16.msra.mxu0 %v1321
  %1361 = vmatpush.bf16.msra.mxu0 %v1318
  %1362 = vmatpush.bf16.msra.mxu0 %v1315
  %1363 = vmatpush.bf16.msra.mxu0 %v1312
  %1364 = vmatpush.bf16.msra.mxu0 %v1309
  %1365 = vmatmul.bf16.gmra.mxu0 %v1192
  %v1366 = vpop.f32.mrf.mxu0
  %v1367 = vadd.f32 0.0, %v1366
  %v1368 = vpop.f32.mrf.mxu0
  %1369 = vdwg.mxu0
  %1370 = vmatpush.bf16.msra.mxu0 %v1331
  %1371 = vmatpush.bf16.msra.mxu0 %v1328
  %1372 = vmatpush.bf16.msra.mxu0 %v1325
  %1373 = vmatpush.bf16.msra.mxu0 %v1322
  %1374 = vmatpush.bf16.msra.mxu0 %v1319
  %1375 = vmatpush.bf16.msra.mxu0 %v1316
  %1376 = vmatpush.bf16.msra.mxu0 %v1313
  %1377 = vmatpush.bf16.msra.mxu0 %v1310
  %1378 = vmatmul.bf16.gmra.mxu0 %v1192
  %v1379 = vpop.f32.mrf.mxu0
  %v1380 = vadd.f32 0.0, %v1379
  %v1381 = vpop.f32.mrf.mxu0
  %1382 = vdwg.mxu0
  %1383 = vmatpush.bf16.msra.mxu0 %v1332
  %1384 = vmatpush.bf16.msra.mxu0 %v1329
  %1385 = vmatpush.bf16.msra.mxu0 %v1326
  %1386 = vmatpush.bf16.msra.mxu0 %v1323
  %1387 = vmatpush.bf16.msra.mxu0 %v1320
  %1388 = vmatpush.bf16.msra.mxu0 %v1317
  %1389 = vmatpush.bf16.msra.mxu0 %v1314
  %1390 = vmatpush.bf16.msra.mxu0 %v1311
  %1391 = vmatmul.bf16.gmra.mxu0 %v1192
  %v1392 = vpop.f32.mrf.mxu0
  %v1393 = vadd.f32 0.0, %v1392
  %v1394 = vpop.f32.mrf.mxu0
  %1395 = vdwg.mxu0
  %v1396 = vunpack.c.l.bf16 %v1196
  %v1397 = vadd.f32 %v1396, %v1367
  %v1398 = vmul.f32 %v1397, 0.5
  %v1399 = vtanh.pop %v1398
  %v1400 = vmul.f32 %v1399, 0.5
  %v1401 = vadd.f32 %v1400, 0.5
  %v1403 = vrot.slane %v1196, 1
  %v1405 = vunpack.c.l.bf16 %v1403
  %v1406 = vadd.f32 %v1405, %v1380
  %v1407 = vmul.f32 %v1406, 0.5
  %v1408 = vtanh.pop %v1407
  %v1409 = vmul.f32 %v1408, 0.5
  %v1410 = vadd.f32 %v1409, 0.5
  %v1411 = vld [vmem:[%s3] sm:$0x1]
  %v1413 = vperm.slane %v1411, 0
  %v1415 = vadd.f32 %v1393, %v1413
  %v1416 = vmul.f32 %v1401, %v1415
  %v1417 = vrot.slane %v1196, 2
  %v1419 = vunpack.c.l.bf16 %v1417
  %v1420 = vadd.f32 %v1419, %v1416
  %v1421 = vtanh.pop %v1420
  %v1422 = vsub.f32 1.0, %v1410
  %v1423 = vmul.f32 %v1422, %v1421
  %v1424 = vmul.f32 %v1410, %v1191
  %v1425 = vadd.f32 %v1423, %v1424
  %v1426 = vpack.c.bf16 %v1425, %v1425
  %s1427 = scalar_lea.vmem %s4, 5
  %1428 = vst [vmem:[%s1427] sm:$0x1] %v1426
  %s1429 = scalar_lea.vmem %s0, 18
  %v1430 = vld [vmem:[%s1429] sm:$0x7]
  %v1431 = vld [vmem:[%s2] sm:$0xff]
  %v1432 = vld [vmem:[%s2 + $0x8] sm:$0xf]
  %v1433 = vld [vmem:[%s2 + $0xc] sm:$0xff]
  %v1434 = vld [vmem:[%s2 + $0x14] sm:$0xf]
  %v1435 = vld [vmem:[%s2 + $0x18] sm:$0xff]
  %v1436 = vld [vmem:[%s2 + $0x20] sm:$0xf]
  %v1437 = vld [vmem:[%s2 + $0x24] sm:$0xff]
  %v1438 = vld [vmem:[%s2 + $0x2c] sm:$0xf]
  %v1439 = vld [vmem:[%s2 + $0x30] sm:$0xff]
  %v1440 = vld [vmem:[%s2 + $0x38] sm:$0xf]
  %v1441 = vld [vmem:[%s2 + $0x3c] sm:$0xff]
  %v1442 = vld [vmem:[%s2 + $0x44] sm:$0xf]
  %v1443 = vld [vmem:[%s2 + $0x48] sm:$0xff]
  %v1444 = vld [vmem:[%s2 + $0x50] sm:$0xf]
  %v1445 = vld [vmem:[%s2 + $0x54] sm:$0xff]
  %v1446 = vld [vmem:[%s2 + $0x5c] sm:$0xf]
  %v1447 = vld [vmem:[%s2 + $0x60] sm:$0xff]
  %v1448 = vld [vmem:[%s2 + $0x68] sm:$0xf]
  %v1449 = vld [vmem:[%s2 + $0x6c] sm:$0xff]
  %v1450 = vld [vmem:[%s2 + $0x74] sm:$0xf]
  %v1451 = vld [vmem:[%s2 + $0x78] sm:$0xff]
  %v1452 = vld [vmem:[%s2 + $0x80] sm:$0xf]
  %v1453 = vld [vmem:[%s2 + $0x84] sm:$0xff]
  %v1454 = vld [vmem:[%s2 + $0x8c] sm:$0xf]
  %v1455 = vld [vmem:[%s2 + $0x90] sm:$0xff]
  %v1456 = vld [vmem:[%s2 + $0x98] sm:$0xf]
  %v1457 = vld [vmem:[%s2 + $0x9c] sm:$0xff]
  %v1458 = vld [vmem:[%s2 + $0xa4] sm:$0xf]
  %v1459 = vld [vmem:[%s2 + $0xa8] sm:$0xff]
  %v1460 = vld [vmem:[%s2 + $0xb0] sm:$0xf]
  %v1461 = vld [vmem:[%s2 + $0xb4] sm:$0xff]
  %v1462 = vld [vmem:[%s2 + $0xbc] sm:$0xf]
  %v1495 = vunpack.c.l.b16 %v1431
  %v1496 = vunpack.c.h.b16 %v1431
  %v1497 = vunpack.c.l.b16 %v1432
  %v1498 = vunpack.c.l.b16 %v1433
  %v1499 = vunpack.c.h.b16 %v1433
  %v1500 = vunpack.c.l.b16 %v1434
  %v1501 = vunpack.c.l.b16 %v1435
  %v1502 = vunpack.c.h.b16 %v1435
  %v1503 = vunpack.c.l.b16 %v1436
  %v1504 = vunpack.c.l.b16 %v1437
  %v1505 = vunpack.c.h.b16 %v1437
  %v1506 = vunpack.c.l.b16 %v1438
  %v1507 = vunpack.c.l.b16 %v1439
  %v1508 = vunpack.c.h.b16 %v1439
  %v1509 = vunpack.c.l.b16 %v1440
  %v1510 = vunpack.c.l.b16 %v1441
  %v1511 = vunpack.c.h.b16 %v1441
  %v1512 = vunpack.c.l.b16 %v1442
  %v1513 = vunpack.c.l.b16 %v1443
  %v1514 = vunpack.c.h.b16 %v1443
  %v1515 = vunpack.c.l.b16 %v1444
  %v1516 = vunpack.c.l.b16 %v1445
  %v1517 = vunpack.c.h.b16 %v1445
  %v1518 = vunpack.c.l.b16 %v1446
  %v1519 = vunpack.c.l.b16 %v1447
  %v1520 = vunpack.c.h.b16 %v1447
  %v1521 = vunpack.c.l.b16 %v1448
  %v1522 = vunpack.c.l.b16 %v1449
  %v1523 = vunpack.c.h.b16 %v1449
  %v1524 = vunpack.c.l.b16 %v1450
  %v1525 = vunpack.c.l.b16 %v1451
  %v1526 = vunpack.c.h.b16 %v1451
  %v1527 = vunpack.c.l.b16 %v1452
  %v1528 = vunpack.c.l.b16 %v1453
  %v1529 = vunpack.c.h.b16 %v1453
  %v1530 = vunpack.c.l.b16 %v1454
  %v1531 = vunpack.c.l.b16 %v1455
  %v1532 = vunpack.c.h.b16 %v1455
  %v1533 = vunpack.c.l.b16 %v1456
  %v1534 = vunpack.c.l.b16 %v1457
  %v1535 = vunpack.c.h.b16 %v1457
  %v1536 = vunpack.c.l.b16 %v1458
  %v1537 = vunpack.c.l.b16 %v1459
  %v1538 = vunpack.c.h.b16 %v1459
  %v1539 = vunpack.c.l.b16 %v1460
  %v1540 = vunpack.c.l.b16 %v1461
  %v1541 = vunpack.c.h.b16 %v1461
  %v1542 = vunpack.c.l.b16 %v1462
  %v1543 = vpack.c.b16 %v1498, %v1495
  %v1544 = vpack.c.b16 %v1499, %v1496
  %v1545 = vpack.c.b16 %v1500, %v1497
  %v1546 = vpack.c.b16 %v1504, %v1501
  %v1547 = vpack.c.b16 %v1505, %v1502
  %v1548 = vpack.c.b16 %v1506, %v1503
  %v1549 = vpack.c.b16 %v1510, %v1507
  %v1550 = vpack.c.b16 %v1511, %v1508
  %v1551 = vpack.c.b16 %v1512, %v1509
  %v1552 = vpack.c.b16 %v1516, %v1513
  %v1553 = vpack.c.b16 %v1517, %v1514
  %v1554 = vpack.c.b16 %v1518, %v1515
  %v1555 = vpack.c.b16 %v1522, %v1519
  %v1556 = vpack.c.b16 %v1523, %v1520
  %v1557 = vpack.c.b16 %v1524, %v1521
  %v1558 = vpack.c.b16 %v1528, %v1525
  %v1559 = vpack.c.b16 %v1529, %v1526
  %v1560 = vpack.c.b16 %v1530, %v1527
  %v1561 = vpack.c.b16 %v1534, %v1531
  %v1562 = vpack.c.b16 %v1535, %v1532
  %v1563 = vpack.c.b16 %v1536, %v1533
  %v1564 = vpack.c.b16 %v1540, %v1537
  %v1565 = vpack.c.b16 %v1541, %v1538
  %v1566 = vpack.c.b16 %v1542, %v1539
  %1591 = vmatpush.bf16.msra.mxu0 %v1564
  %1592 = vmatpush.bf16.msra.mxu0 %v1561
  %1593 = vmatpush.bf16.msra.mxu0 %v1558
  %1594 = vmatpush.bf16.msra.mxu0 %v1555
  %1595 = vmatpush.bf16.msra.mxu0 %v1552
  %1596 = vmatpush.bf16.msra.mxu0 %v1549
  %1597 = vmatpush.bf16.msra.mxu0 %v1546
  %1598 = vmatpush.bf16.msra.mxu0 %v1543
  %1599 = vmatmul.bf16.gmra.mxu0 %v1426
  %v1600 = vpop.f32.mrf.mxu0
  %v1601 = vadd.f32 0.0, %v1600
  %v1602 = vpop.f32.mrf.mxu0
  %1603 = vdwg.mxu0
  %1604 = vmatpush.bf16.msra.mxu0 %v1565
  %1605 = vmatpush.bf16.msra.mxu0 %v1562
  %1606 = vmatpush.bf16.msra.mxu0 %v1559
  %1607 = vmatpush.bf16.msra.mxu0 %v1556
  %1608 = vmatpush.bf16.msra.mxu0 %v1553
  %1609 = vmatpush.bf16.msra.mxu0 %v1550
  %1610 = vmatpush.bf16.msra.mxu0 %v1547
  %1611 = vmatpush.bf16.msra.mxu0 %v1544
  %1612 = vmatmul.bf16.gmra.mxu0 %v1426
  %v1613 = vpop.f32.mrf.mxu0
  %v1614 = vadd.f32 0.0, %v1613
  %v1615 = vpop.f32.mrf.mxu0
  %1616 = vdwg.mxu0
  %1617 = vmatpush.bf16.msra.mxu0 %v1566
  %1618 = vmatpush.bf16.msra.mxu0 %v1563
  %1619 = vmatpush.bf16.msra.mxu0 %v1560
  %1620 = vmatpush.bf16.msra.mxu0 %v1557
  %1621 = vmatpush.bf16.msra.mxu0 %v1554
  %1622 = vmatpush.bf16.msra.mxu0 %v1551
  %1623 = vmatpush.bf16.msra.mxu0 %v1548
  %1624 = vmatpush.bf16.msra.mxu0 %v1545
  %1625 = vmatmul.bf16.gmra.mxu0 %v1426
  %v1626 = vpop.f32.mrf.mxu0
  %v1627 = vadd.f32 0.0, %v1626
  %v1628 = vpop.f32.mrf.mxu0
  %1629 = vdwg.mxu0
  %v1630 = vunpack.c.l.bf16 %v1430
  %v1631 = vadd.f32 %v1630, %v1601
  %v1632 = vmul.f32 %v1631, 0.5
  %v1633 = vtanh.pop %v1632
  %v1634 = vmul.f32 %v1633, 0.5
  %v1635 = vadd.f32 %v1634, 0.5
  %v1637 = vrot.slane %v1430, 1
  %v1639 = vunpack.c.l.bf16 %v1637
  %v1640 = vadd.f32 %v1639, %v1614
  %v1641 = vmul.f32 %v1640, 0.5
  %v1642 = vtanh.pop %v1641
  %v1643 = vmul.f32 %v1642, 0.5
  %v1644 = vadd.f32 %v1643, 0.5
  %v1645 = vld [vmem:[%s3] sm:$0x1]
  %v1647 = vperm.slane %v1645, 0
  %v1649 = vadd.f32 %v1627, %v1647
  %v1650 = vmul.f32 %v1635, %v1649
  %v1651 = vrot.slane %v1430, 2
  %v1653 = vunpack.c.l.bf16 %v1651
  %v1654 = vadd.f32 %v1653, %v1650
  %v1655 = vtanh.pop %v1654
  %v1656 = vsub.f32 1.0, %v1644
  %v1657 = vmul.f32 %v1656, %v1655
  %v1658 = vmul.f32 %v1644, %v1425
  %v1659 = vadd.f32 %v1657, %v1658
  %v1660 = vpack.c.bf16 %v1659, %v1659
  %s1661 = scalar_lea.vmem %s4, 6
  %1662 = vst [vmem:[%s1661] sm:$0x1] %v1660
  %s1663 = scalar_lea.vmem %s0, 21
  %v1664 = vld [vmem:[%s1663] sm:$0x7]
  %v1665 = vld [vmem:[%s2] sm:$0xff]
  %v1666 = vld [vmem:[%s2 + $0x8] sm:$0xf]
  %v1667 = vld [vmem:[%s2 + $0xc] sm:$0xff]
  %v1668 = vld [vmem:[%s2 + $0x14] sm:$0xf]
  %v1669 = vld [vmem:[%s2 + $0x18] sm:$0xff]
  %v1670 = vld [vmem:[%s2 + $0x20] sm:$0xf]
  %v1671 = vld [vmem:[%s2 + $0x24] sm:$0xff]
  %v1672 = vld [vmem:[%s2 + $0x2c] sm:$0xf]
  %v1673 = vld [vmem:[%s2 + $0x30] sm:$0xff]
  %v1674 = vld [vmem:[%s2 + $0x38] sm:$0xf]
  %v1675 = vld [vmem:[%s2 + $0x3c] sm:$0xff]
  %v1676 = vld [vmem:[%s2 + $0x44] sm:$0xf]
  %v1677 = vld [vmem:[%s2 + $0x48] sm:$0xff]
  %v1678 = vld [vmem:[%s2 + $0x50] sm:$0xf]
  %v1679 = vld [vmem:[%s2 + $0x54] sm:$0xff]
  %v1680 = vld [vmem:[%s2 + $0x5c] sm:$0xf]
  %v1681 = vld [vmem:[%s2 + $0x60] sm:$0xff]
  %v1682 = vld [vmem:[%s2 + $0x68] sm:$0xf]
  %v1683 = vld [vmem:[%s2 + $0x6c] sm:$0xff]
  %v1684 = vld [vmem:[%s2 + $0x74] sm:$0xf]
  %v1685 = vld [vmem:[%s2 + $0x78] sm:$0xff]
  %v1686 = vld [vmem:[%s2 + $0x80] sm:$0xf]
  %v1687 = vld [vmem:[%s2 + $0x84] sm:$0xff]
  %v1688 = vld [vmem:[%s2 + $0x8c] sm:$0xf]
  %v1689 = vld [vmem:[%s2 + $0x90] sm:$0xff]
  %v1690 = vld [vmem:[%s2 + $0x98] sm:$0xf]
  %v1691 = vld [vmem:[%s2 + $0x9c] sm:$0xff]
  %v1692 = vld [vmem:[%s2 + $0xa4] sm:$0xf]
  %v1693 = vld [vmem:[%s2 + $0xa8] sm:$0xff]
  %v1694 = vld [vmem:[%s2 + $0xb0] sm:$0xf]
  %v1695 = vld [vmem:[%s2 + $0xb4] sm:$0xff]
  %v1696 = vld [vmem:[%s2 + $0xbc] sm:$0xf]
  %v1729 = vunpack.c.l.b16 %v1665
  %v1730 = vunpack.c.h.b16 %v1665
  %v1731 = vunpack.c.l.b16 %v1666
  %v1732 = vunpack.c.l.b16 %v1667
  %v1733 = vunpack.c.h.b16 %v1667
  %v1734 = vunpack.c.l.b16 %v1668
  %v1735 = vunpack.c.l.b16 %v1669
  %v1736 = vunpack.c.h.b16 %v1669
  %v1737 = vunpack.c.l.b16 %v1670
  %v1738 = vunpack.c.l.b16 %v1671
  %v1739 = vunpack.c.h.b16 %v1671
  %v1740 = vunpack.c.l.b16 %v1672
  %v1741 = vunpack.c.l.b16 %v1673
  %v1742 = vunpack.c.h.b16 %v1673
  %v1743 = vunpack.c.l.b16 %v1674
  %v1744 = vunpack.c.l.b16 %v1675
  %v1745 = vunpack.c.h.b16 %v1675
  %v1746 = vunpack.c.l.b16 %v1676
  %v1747 = vunpack.c.l.b16 %v1677
  %v1748 = vunpack.c.h.b16 %v1677
  %v1749 = vunpack.c.l.b16 %v1678
  %v1750 = vunpack.c.l.b16 %v1679
  %v1751 = vunpack.c.h.b16 %v1679
  %v1752 = vunpack.c.l.b16 %v1680
  %v1753 = vunpack.c.l.b16 %v1681
  %v1754 = vunpack.c.h.b16 %v1681
  %v1755 = vunpack.c.l.b16 %v1682
  %v1756 = vunpack.c.l.b16 %v1683
  %v1757 = vunpack.c.h.b16 %v1683
  %v1758 = vunpack.c.l.b16 %v1684
  %v1759 = vunpack.c.l.b16 %v1685
  %v1760 = vunpack.c.h.b16 %v1685
  %v1761 = vunpack.c.l.b16 %v1686
  %v1762 = vunpack.c.l.b16 %v1687
  %v1763 = vunpack.c.h.b16 %v1687
  %v1764 = vunpack.c.l.b16 %v1688
  %v1765 = vunpack.c.l.b16 %v1689
  %v1766 = vunpack.c.h.b16 %v1689
  %v1767 = vunpack.c.l.b16 %v1690
  %v1768 = vunpack.c.l.b16 %v1691
  %v1769 = vunpack.c.h.b16 %v1691
  %v1770 = vunpack.c.l.b16 %v1692
  %v1771 = vunpack.c.l.b16 %v1693
  %v1772 = vunpack.c.h.b16 %v1693
  %v1773 = vunpack.c.l.b16 %v1694
  %v1774 = vunpack.c.l.b16 %v1695
  %v1775 = vunpack.c.h.b16 %v1695
  %v1776 = vunpack.c.l.b16 %v1696
  %v1777 = vpack.c.b16 %v1732, %v1729
  %v1778 = vpack.c.b16 %v1733, %v1730
  %v1779 = vpack.c.b16 %v1734, %v1731
  %v1780 = vpack.c.b16 %v1738, %v1735
  %v1781 = vpack.c.b16 %v1739, %v1736
  %v1782 = vpack.c.b16 %v1740, %v1737
  %v1783 = vpack.c.b16 %v1744, %v1741
  %v1784 = vpack.c.b16 %v1745, %v1742
  %v1785 = vpack.c.b16 %v1746, %v1743
  %v1786 = vpack.c.b16 %v1750, %v1747
  %v1787 = vpack.c.b16 %v1751, %v1748
  %v1788 = vpack.c.b16 %v1752, %v1749
  %v1789 = vpack.c.b16 %v1756, %v1753
  %v1790 = vpack.c.b16 %v1757, %v1754
  %v1791 = vpack.c.b16 %v1758, %v1755
  %v1792 = vpack.c.b16 %v1762, %v1759
  %v1793 = vpack.c.b16 %v1763, %v1760
  %v1794 = vpack.c.b16 %v1764, %v1761
  %v1795 = vpack.c.b16 %v1768, %v1765
  %v1796 = vpack.c.b16 %v1769, %v1766
  %v1797 = vpack.c.b16 %v1770, %v1767
  %v1798 = vpack.c.b16 %v1774, %v1771
  %v1799 = vpack.c.b16 %v1775, %v1772
  %v1800 = vpack.c.b16 %v1776, %v1773
  %1825 = vmatpush.bf16.msra.mxu0 %v1798
  %1826 = vmatpush.bf16.msra.mxu0 %v1795
  %1827 = vmatpush.bf16.msra.mxu0 %v1792
  %1828 = vmatpush.bf16.msra.mxu0 %v1789
  %1829 = vmatpush.bf16.msra.mxu0 %v1786
  %1830 = vmatpush.bf16.msra.mxu0 %v1783
  %1831 = vmatpush.bf16.msra.mxu0 %v1780
  %1832 = vmatpush.bf16.msra.mxu0 %v1777
  %1833 = vmatmul.bf16.gmra.mxu0 %v1660
  %v1834 = vpop.f32.mrf.mxu0
  %v1835 = vadd.f32 0.0, %v1834
  %v1836 = vpop.f32.mrf.mxu0
  %1837 = vdwg.mxu0
  %1838 = vmatpush.bf16.msra.mxu0 %v1799
  %1839 = vmatpush.bf16.msra.mxu0 %v1796
  %1840 = vmatpush.bf16.msra.mxu0 %v1793
  %1841 = vmatpush.bf16.msra.mxu0 %v1790
  %1842 = vmatpush.bf16.msra.mxu0 %v1787
  %1843 = vmatpush.bf16.msra.mxu0 %v1784
  %1844 = vmatpush.bf16.msra.mxu0 %v1781
  %1845 = vmatpush.bf16.msra.mxu0 %v1778
  %1846 = vmatmul.bf16.gmra.mxu0 %v1660
  %v1847 = vpop.f32.mrf.mxu0
  %v1848 = vadd.f32 0.0, %v1847
  %v1849 = vpop.f32.mrf.mxu0
  %1850 = vdwg.mxu0
  %1851 = vmatpush.bf16.msra.mxu0 %v1800
  %1852 = vmatpush.bf16.msra.mxu0 %v1797
  %1853 = vmatpush.bf16.msra.mxu0 %v1794
  %1854 = vmatpush.bf16.msra.mxu0 %v1791
  %1855 = vmatpush.bf16.msra.mxu0 %v1788
  %1856 = vmatpush.bf16.msra.mxu0 %v1785
  %1857 = vmatpush.bf16.msra.mxu0 %v1782
  %1858 = vmatpush.bf16.msra.mxu0 %v1779
  %1859 = vmatmul.bf16.gmra.mxu0 %v1660
  %v1860 = vpop.f32.mrf.mxu0
  %v1861 = vadd.f32 0.0, %v1860
  %v1862 = vpop.f32.mrf.mxu0
  %1863 = vdwg.mxu0
  %v1864 = vunpack.c.l.bf16 %v1664
  %v1865 = vadd.f32 %v1864, %v1835
  %v1866 = vmul.f32 %v1865, 0.5
  %v1867 = vtanh.pop %v1866
  %v1868 = vmul.f32 %v1867, 0.5
  %v1869 = vadd.f32 %v1868, 0.5
  %v1871 = vrot.slane %v1664, 1
  %v1873 = vunpack.c.l.bf16 %v1871
  %v1874 = vadd.f32 %v1873, %v1848
  %v1875 = vmul.f32 %v1874, 0.5
  %v1876 = vtanh.pop %v1875
  %v1877 = vmul.f32 %v1876, 0.5
  %v1878 = vadd.f32 %v1877, 0.5
  %v1879 = vld [vmem:[%s3] sm:$0x1]
  %v1881 = vperm.slane %v1879, 0
  %v1883 = vadd.f32 %v1861, %v1881
  %v1884 = vmul.f32 %v1869, %v1883
  %v1885 = vrot.slane %v1664, 2
  %v1887 = vunpack.c.l.bf16 %v1885
  %v1888 = vadd.f32 %v1887, %v1884
  %v1889 = vtanh.pop %v1888
  %v1890 = vsub.f32 1.0, %v1878
  %v1891 = vmul.f32 %v1890, %v1889
  %v1892 = vmul.f32 %v1878, %v1659
  %v1893 = vadd.f32 %v1891, %v1892
  %v1894 = vpack.c.bf16 %v1893, %v1893
  %s1895 = scalar_lea.vmem %s4, 7
  %1896 = vst [vmem:[%s1895] sm:$0x1] %v1894
  %1897 = vst [vmem:[#allocation2] sm:$0x3] %v1893
  // Predicated region
  $region22: #{recurrent_model_forward.8} parent=0 // pred_check
    %p1898 = pneg %p19
  $region23: #{recurrent_model_forward.8} parent=0 // pred_check_branch
    %1900 = sbr.rel (%p1898) target = $region25
  $region24: #{recurrent_model_forward.8} parent=0 // pred_region
    %1901 = vst [vmem:[%s5] sm:$0x3] %v1893
  $region25: #{recurrent_model_forward.8} parent=0 // pred_fallthru
    _
  // Predicated region
  $region26: #{recurrent_model_forward.8} parent=0 // pred_check
    _
  $region27: #{recurrent_model_forward.8} parent=0 // pred_check_branch
    %1903 = sbr.rel (0) target = $region29
  $region28: #{recurrent_model_forward.8} parent=0 // pred_region
    _
  $region29: #{recurrent_model_forward.8} parent=0 // pred_fallthru
    _
  // Predicated region
  $region30: #{recurrent_model_forward.8} parent=0 // pred_check
    _
  $region31: #{recurrent_model_forward.8} parent=0 // pred_check_branch
    %1905 = sbr.rel (0) target = $region33
  $region32: #{recurrent_model_forward.8} parent=0 // pred_region
    _
  $region33: #{recurrent_model_forward.8} parent=0 // pred_fallthru
    _
  // Predicated region
  $region34: #{recurrent_model_forward.8} parent=0 // pred_check
    _
  $region35: #{recurrent_model_forward.8} parent=0 // pred_check_branch
    %1907 = sbr.rel (0) target = $region37
  $region36: #{recurrent_model_forward.8} parent=0 // pred_region
    _
  $region37: #{recurrent_model_forward.8} parent=0 // pred_fallthru
    _
  // Predicated region
  $region38: #{recurrent_model_forward.8} parent=0 // pred_check
    _
  $region39: #{recurrent_model_forward.8} parent=0 // pred_check_branch
    %1909 = sbr.rel (0) target = $region41
  $region40: #{recurrent_model_forward.8} parent=0 // pred_region
    _
  $region41: #{recurrent_model_forward.8} parent=0 // pred_fallthru
    _

// kernel: recurrent_model_forward.6
$region0: #{recurrent_model_forward.6}
  #allocation0 [shape = 'u32[]', space=smem, size = 0x4, offset = 0x4, fixed_abs, tag = 'smem constant byte address 0x4 - core index']
  #allocation1 [shape = 'u32[72,128]{1,0:T(1,128)}', space=vmem, size = 0x9000, scoped, tag = 'internal scratch']
  #allocation2 [shape = 'f32[2,128]{1,0:T(2,128)}', space=vmem, size = 0x400, scoped, tag = 'scratch operand']
  %s0 = inlined_call_operand.vmem [shape: bf16[8,2,384], index: 0, kind: input, shape index: {}]
  %s1 = inlined_call_operand.vmem [shape: f32[2,128], index: 1, kind: input, shape index: {}]
  %s2 = inlined_call_operand.hbm [shape: bf16[128,384], index: 2, kind: input, shape index: {}]
  %s3 = inlined_call_operand.vmem [shape: f32[1,128], index: 3, kind: input, shape index: {}]
  %s4 = inlined_call_operand.vmem [shape: bf16[8,2,128], index: 4, kind: output, shape index: {0}]
  %s5 = inlined_call_operand.vmem [shape: f32[2,128], index: 5, kind: output, shape index: {1}]
  %6 = xla_tuple %s4, %s5
  %s7 = sld [smem:[#allocation0]]
  $region46: #{recurrent_model_forward.6} parent=0
    _
  %s9 = ssub.s32 1, %s7
  %s10 = scalar_select 0, %s9, %s7
  $region1: #{recurrent_model_forward.6} parent=0
    #allocation3 [shape = 'u8[98304]{0}', space=vmem, size = 0x18000, scoped, tag = 'input window, operand 2, single buffered']
    #allocation4 [shape = 's32[1]{0}', space=sflag, size = 0x4, scoped, tag = 'scoped memory for recurrent_model_forward.6']
    %11 = vsyncpa [#allocation4], 0
    // Predicated region
    $region2: #{recurrent_model_forward.6} parent=1 // pred_check
      _
    $region3: #{recurrent_model_forward.6} parent=1 // pred_check_branch
      %13 = sbr.rel (0) target = $region5
    $region4: #{recurrent_model_forward.6} parent=1 // pred_region
      _
    $region5: #{recurrent_model_forward.6} parent=1 // pred_fallthru
      _
    // Predicated region
    $region6: #{recurrent_model_forward.6} parent=1 // pred_check
      _
    $region7: #{recurrent_model_forward.6} parent=1 // pred_check_branch
      %15 = sbr.rel (0) target = $region9
    $region8: #{recurrent_model_forward.6} parent=1 // pred_region
      _
    $region9: #{recurrent_model_forward.6} parent=1 // pred_fallthru
      _
    // Predicated region
    $region10: #{recurrent_model_forward.6} parent=1 // pred_check
      _
    $region11: #{recurrent_model_forward.6} parent=1 // pred_check_branch
      %17 = sbr.rel (0) target = $region13
    $region12: #{recurrent_model_forward.6} parent=1 // pred_region
      %19 = vsyncadd [#allocation4], 0
      %s20 = sshll.u32 %s2, 4
      %s21 = int_to_ptr.hbm [resolvable:$true] %s20
      %s22 = sshll.u32 [#allocation3], 4
      %s23 = int_to_ptr.vmem [resolvable:$true] %s22
      %28 = dma.hbm_to_vmem [thread:$0]  %s21, 3072, %s23, [#allocation4], 192, 192, 12
    $region13: #{recurrent_model_forward.6} parent=1 // pred_fallthru
      _
    // Predicated region
    $region14: #{recurrent_model_forward.6} parent=1 // pred_check
      _
    $region15: #{recurrent_model_forward.6} parent=1 // pred_check_branch
      %30 = sbr.rel (0) target = $region17
    $region16: #{recurrent_model_forward.6} parent=1 // pred_region
      _
    $region17: #{recurrent_model_forward.6} parent=1 // pred_fallthru
      _
    // Predicated region
    $region18: #{recurrent_model_forward.6} parent=1 // pred_check
      _
    $region19: #{recurrent_model_forward.6} parent=1 // pred_check_branch
      %32 = sbr.rel (0) target = $region21
    $region20: #{recurrent_model_forward.6} parent=1 // pred_region
      %34 = dma.done [#allocation4], 3072
    $region21: #{recurrent_model_forward.6} parent=1 // pred_fallthru
      _
    %p35 = scmp.eq.s32.totalorder 0, 0
    // Predicated region
    $region22: #{recurrent_model_forward.6} parent=1 // pred_check
      %p36 = pneg %p35
    $region23: #{recurrent_model_forward.6} parent=1 // pred_check_branch
      %38 = sbr.rel (%p36) target = $region25
    $region24: #{recurrent_model_forward.6} parent=1 // pred_region
      %v39 = vld [vmem:[%s1] sm:$0x3]
      %40 = vst [vmem:[#allocation2] sm:$0x3] %v39
    $region25: #{recurrent_model_forward.6} parent=1 // pred_fallthru
      _
    %v41 = vld [vmem:[#allocation2] sm:$0x3]
    %v42 = vld [vmem:[%s0] sm:$0x7]
    %v43 = vpack.c.bf16 %v41, %v41
    %v44 = vld [vmem:[#allocation3] sm:$0xff]
    %v45 = vld [vmem:[#allocation3 + $0x8] sm:$0xf]
    %v46 = vld [vmem:[#allocation3 + $0xc] sm:$0xff]
    %v47 = vld [vmem:[#allocation3 + $0x14] sm:$0xf]
    %v48 = vld [vmem:[#allocation3 + $0x18] sm:$0xff]
    %v49 = vld [vmem:[#allocation3 + $0x20] sm:$0xf]
    %v50 = vld [vmem:[#allocation3 + $0x24] sm:$0xff]
    %v51 = vld [vmem:[#allocation3 + $0x2c] sm:$0xf]
    %v52 = vld [vmem:[#allocation3 + $0x30] sm:$0xff]
    %v53 = vld [vmem:[#allocation3 + $0x38] sm:$0xf]
    %v54 = vld [vmem:[#allocation3 + $0x3c] sm:$0xff]
    %v55 = vld [vmem:[#allocation3 + $0x44] sm:$0xf]
    %v56 = vld [vmem:[#allocation3 + $0x48] sm:$0xff]
    %v57 = vld [vmem:[#allocation3 + $0x50] sm:$0xf]
    %v58 = vld [vmem:[#allocation3 + $0x54] sm:$0xff]
    %v59 = vld [vmem:[#allocation3 + $0x5c] sm:$0xf]
    %v60 = vld [vmem:[#allocation3 + $0x60] sm:$0xff]
    %v61 = vld [vmem:[#allocation3 + $0x68] sm:$0xf]
    %v62 = vld [vmem:[#allocation3 + $0x6c] sm:$0xff]
    %v63 = vld [vmem:[#allocation3 + $0x74] sm:$0xf]
    %v64 = vld [vmem:[#allocation3 + $0x78] sm:$0xff]
    %v65 = vld [vmem:[#allocation3 + $0x80] sm:$0xf]
    %v66 = vld [vmem:[#allocation3 + $0x84] sm:$0xff]
    %v67 = vld [vmem:[#allocation3 + $0x8c] sm:$0xf]
    %v68 = vld [vmem:[#allocation3 + $0x90] sm:$0xff]
    %v69 = vld [vmem:[#allocation3 + $0x98] sm:$0xf]
    %v70 = vld [vmem:[#allocation3 + $0x9c] sm:$0xff]
    %v71 = vld [vmem:[#allocation3 + $0xa4] sm:$0xf]
    %v72 = vld [vmem:[#allocation3 + $0xa8] sm:$0xff]
    %v73 = vld [vmem:[#allocation3 + $0xb0] sm:$0xf]
    %v74 = vld [vmem:[#allocation3 + $0xb4] sm:$0xff]
    %v75 = vld [vmem:[#allocation3 + $0xbc] sm:$0xf]
    %v108 = vunpack.c.l.b16 %v44
    %v109 = vunpack.c.h.b16 %v44
    %v110 = vunpack.c.l.b16 %v45
    %v111 = vunpack.c.l.b16 %v46
    %v112 = vunpack.c.h.b16 %v46
    %v113 = vunpack.c.l.b16 %v47
    %v114 = vunpack.c.l.b16 %v48
    %v115 = vunpack.c.h.b16 %v48
    %v116 = vunpack.c.l.b16 %v49
    %v117 = vunpack.c.l.b16 %v50
    %v118 = vunpack.c.h.b16 %v50
    %v119 = vunpack.c.l.b16 %v51
    %v120 = vunpack.c.l.b16 %v52
    %v121 = vunpack.c.h.b16 %v52
    %v122 = vunpack.c.l.b16 %v53
    %v123 = vunpack.c.l.b16 %v54
    %v124 = vunpack.c.h.b16 %v54
    %v125 = vunpack.c.l.b16 %v55
    %v126 = vunpack.c.l.b16 %v56
    %v127 = vunpack.c.h.b16 %v56
    %v128 = vunpack.c.l.b16 %v57
    %v129 = vunpack.c.l.b16 %v58
    %v130 = vunpack.c.h.b16 %v58
    %v131 = vunpack.c.l.b16 %v59
    %v132 = vunpack.c.l.b16 %v60
    %v133 = vunpack.c.h.b16 %v60
    %v134 = vunpack.c.l.b16 %v61
    %v135 = vunpack.c.l.b16 %v62
    %v136 = vunpack.c.h.b16 %v62
    %v137 = vunpack.c.l.b16 %v63
    %v138 = vunpack.c.l.b16 %v64
    %v139 = vunpack.c.h.b16 %v64
    %v140 = vunpack.c.l.b16 %v65
    %v141 = vunpack.c.l.b16 %v66
    %v142 = vunpack.c.h.b16 %v66
    %v143 = vunpack.c.l.b16 %v67
    %v144 = vunpack.c.l.b16 %v68
    %v145 = vunpack.c.h.b16 %v68
    %v146 = vunpack.c.l.b16 %v69
    %v147 = vunpack.c.l.b16 %v70
    %v148 = vunpack.c.h.b16 %v70
    %v149 = vunpack.c.l.b16 %v71
    %v150 = vunpack.c.l.b16 %v72
    %v151 = vunpack.c.h.b16 %v72
    %v152 = vunpack.c.l.b16 %v73
    %v153 = vunpack.c.l.b16 %v74
    %v154 = vunpack.c.h.b16 %v74
    %v155 = vunpack.c.l.b16 %v75
    %v156 = vpack.c.b16 %v111, %v108
    %v157 = vpack.c.b16 %v112, %v109
    %v158 = vpack.c.b16 %v113, %v110
    %v159 = vpack.c.b16 %v117, %v114
    %v160 = vpack.c.b16 %v118, %v115
    %v161 = vpack.c.b16 %v119, %v116
    %v162 = vpack.c.b16 %v123, %v120
    %v163 = vpack.c.b16 %v124, %v121
    %v164 = vpack.c.b16 %v125, %v122
    %v165 = vpack.c.b16 %v129, %v126
    %v166 = vpack.c.b16 %v130, %v127
    %v167 = vpack.c.b16 %v131, %v128
    %v168 = vpack.c.b16 %v135, %v132
    %v169 = vpack.c.b16 %v136, %v133
    %v170 = vpack.c.b16 %v137, %v134
    %v171 = vpack.c.b16 %v141, %v138
    %v172 = vpack.c.b16 %v142, %v139
    %v173 = vpack.c.b16 %v143, %v140
    %v174 = vpack.c.b16 %v147, %v144
    %v175 = vpack.c.b16 %v148, %v145
    %v176 = vpack.c.b16 %v149, %v146
    %v177 = vpack.c.b16 %v153, %v150
    %v178 = vpack.c.b16 %v154, %v151
    %v179 = vpack.c.b16 %v155, %v152
    %204 = vmatpush.bf16.msra.mxu0 %v177
    %205 = vmatpush.bf16.msra.mxu0 %v174
    %206 = vmatpush.bf16.msra.mxu0 %v171
    %207 = vmatpush.bf16.msra.mxu0 %v168
    %208 = vmatpush.bf16.msra.mxu0 %v165
    %209 = vmatpush.bf16.msra.mxu0 %v162
    %210 = vmatpush.bf16.msra.mxu0 %v159
    %211 = vmatpush.bf16.msra.mxu0 %v156
    %212 = vmatmul.bf16.gmra.mxu0 %v43
    %v213 = vpop.f32.mrf.mxu0
    %v214 = vadd.f32 0.0, %v213
    %v215 = vpop.f32.mrf.mxu0
    %216 = vdwg.mxu0
    %217 = vmatpush.bf16.msra.mxu0 %v178
    %218 = vmatpush.bf16.msra.mxu0 %v175
    %219 = vmatpush.bf16.msra.mxu0 %v172
    %220 = vmatpush.bf16.msra.mxu0 %v169
    %221 = vmatpush.bf16.msra.mxu0 %v166
    %222 = vmatpush.bf16.msra.mxu0 %v163
    %223 = vmatpush.bf16.msra.mxu0 %v160
    %224 = vmatpush.bf16.msra.mxu0 %v157
    %225 = vmatmul.bf16.gmra.mxu0 %v43
    %v226 = vpop.f32.mrf.mxu0
    %v227 = vadd.f32 0.0, %v226
    %v228 = vpop.f32.mrf.mxu0
    %229 = vdwg.mxu0
    %230 = vmatpush.bf16.msra.mxu0 %v179
    %231 = vmatpush.bf16.msra.mxu0 %v176
    %232 = vmatpush.bf16.msra.mxu0 %v173
    %233 = vmatpush.bf16.msra.mxu0 %v170
    %234 = vmatpush.bf16.msra.mxu0 %v167
    %235 = vmatpush.bf16.msra.mxu0 %v164
    %236 = vmatpush.bf16.msra.mxu0 %v161
    %237 = vmatpush.bf16.msra.mxu0 %v158
    %238 = vmatmul.bf16.gmra.mxu0 %v43
    %v239 = vpop.f32.mrf.mxu0
    %v240 = vadd.f32 0.0, %v239
    %v241 = vpop.f32.mrf.mxu0
    %242 = vdwg.mxu0
    %v243 = vunpack.c.l.bf16 %v42
    %v244 = vadd.f32 %v243, %v214
    %v245 = vmul.f32 %v244, 0.5
    %v246 = vtanh.pop %v245
    %v247 = vmul.f32 %v246, 0.5
    %v248 = vadd.f32 %v247, 0.5
    %v250 = vrot.slane %v42, 1
    %v252 = vunpack.c.l.bf16 %v250
    %v253 = vadd.f32 %v252, %v227
    %v254 = vmul.f32 %v253, 0.5
    %v255 = vtanh.pop %v254
    %v256 = vmul.f32 %v255, 0.5
    %v257 = vadd.f32 %v256, 0.5
    %v258 = vld [vmem:[%s3] sm:$0x1]
    %v260 = vperm.slane %v258, 0
    %v262 = vadd.f32 %v240, %v260
    %v263 = vmul.f32 %v248, %v262
    %v264 = vrot.slane %v42, 2
    %v266 = vunpack.c.l.bf16 %v264
    %v267 = vadd.f32 %v266, %v263
    %v268 = vtanh.pop %v267
    %v269 = vsub.f32 1.0, %v257
    %v270 = vmul.f32 %v269, %v268
    %v271 = vmul.f32 %v257, %v41
    %v272 = vadd.f32 %v270, %v271
    %v273 = vpack.c.bf16 %v272, %v272
    %274 = vst [vmem:[%s4] sm:$0x1] %v273
    %s275 = scalar_lea.vmem %s0, 3
    %v276 = vld [vmem:[%s275] sm:$0x7]
    %v277 = vld [vmem:[#allocation3] sm:$0xff]
    %v278 = vld [vmem:[#allocation3 + $0x8] sm:$0xf]
    %v279 = vld [vmem:[#allocation3 + $0xc] sm:$0xff]
    %v280 = vld [vmem:[#allocation3 + $0x14] sm:$0xf]
    %v281 = vld [vmem:[#allocation3 + $0x18] sm:$0xff]
    %v282 = vld [vmem:[#allocation3 + $0x20] sm:$0xf]
    %v283 = vld [vmem:[#allocation3 + $0x24] sm:$0xff]
    %v284 = vld [vmem:[#allocation3 + $0x2c] sm:$0xf]
    %v285 = vld [vmem:[#allocation3 + $0x30] sm:$0xff]
    %v286 = vld [vmem:[#allocation3 + $0x38] sm:$0xf]
    %v287 = vld [vmem:[#allocation3 + $0x3c] sm:$0xff]
    %v288 = vld [vmem:[#allocation3 + $0x44] sm:$0xf]
    %v289 = vld [vmem:[#allocation3 + $0x48] sm:$0xff]
    %v290 = vld [vmem:[#allocation3 + $0x50] sm:$0xf]
    %v291 = vld [vmem:[#allocation3 + $0x54] sm:$0xff]
    %v292 = vld [vmem:[#allocation3 + $0x5c] sm:$0xf]
    %v293 = vld [vmem:[#allocation3 + $0x60] sm:$0xff]
    %v294 = vld [vmem:[#allocation3 + $0x68] sm:$0xf]
    %v295 = vld [vmem:[#allocation3 + $0x6c] sm:$0xff]
    %v296 = vld [vmem:[#allocation3 + $0x74] sm:$0xf]
    %v297 = vld [vmem:[#allocation3 + $0x78] sm:$0xff]
    %v298 = vld [vmem:[#allocation3 + $0x80] sm:$0xf]
    %v299 = vld [vmem:[#allocation3 + $0x84] sm:$0xff]
    %v300 = vld [vmem:[#allocation3 + $0x8c] sm:$0xf]
    %v301 = vld [vmem:[#allocation3 + $0x90] sm:$0xff]
    %v302 = vld [vmem:[#allocation3 + $0x98] sm:$0xf]
    %v303 = vld [vmem:[#allocation3 + $0x9c] sm:$0xff]
    %v304 = vld [vmem:[#allocation3 + $0xa4] sm:$0xf]
    %v305 = vld [vmem:[#allocation3 + $0xa8] sm:$0xff]
    %v306 = vld [vmem:[#allocation3 + $0xb0] sm:$0xf]
    %v307 = vld [vmem:[#allocation3 + $0xb4] sm:$0xff]
    %v308 = vld [vmem:[#allocation3 + $0xbc] sm:$0xf]
    %v341 = vunpack.c.l.b16 %v277
    %v342 = vunpack.c.h.b16 %v277
    %v343 = vunpack.c.l.b16 %v278
    %v344 = vunpack.c.l.b16 %v279
    %v345 = vunpack.c.h.b16 %v279
    %v346 = vunpack.c.l.b16 %v280
    %v347 = vunpack.c.l.b16 %v281
    %v348 = vunpack.c.h.b16 %v281
    %v349 = vunpack.c.l.b16 %v282
    %v350 = vunpack.c.l.b16 %v283
    %v351 = vunpack.c.h.b16 %v283
    %v352 = vunpack.c.l.b16 %v284
    %v353 = vunpack.c.l.b16 %v285
    %v354 = vunpack.c.h.b16 %v285
    %v355 = vunpack.c.l.b16 %v286
    %v356 = vunpack.c.l.b16 %v287
    %v357 = vunpack.c.h.b16 %v287
    %v358 = vunpack.c.l.b16 %v288
    %v359 = vunpack.c.l.b16 %v289
    %v360 = vunpack.c.h.b16 %v289
    %v361 = vunpack.c.l.b16 %v290
    %v362 = vunpack.c.l.b16 %v291
    %v363 = vunpack.c.h.b16 %v291
    %v364 = vunpack.c.l.b16 %v292
    %v365 = vunpack.c.l.b16 %v293
    %v366 = vunpack.c.h.b16 %v293
    %v367 = vunpack.c.l.b16 %v294
    %v368 = vunpack.c.l.b16 %v295
    %v369 = vunpack.c.h.b16 %v295
    %v370 = vunpack.c.l.b16 %v296
    %v371 = vunpack.c.l.b16 %v297
    %v372 = vunpack.c.h.b16 %v297
    %v373 = vunpack.c.l.b16 %v298
    %v374 = vunpack.c.l.b16 %v299
    %v375 = vunpack.c.h.b16 %v299
    %v376 = vunpack.c.l.b16 %v300
    %v377 = vunpack.c.l.b16 %v301
    %v378 = vunpack.c.h.b16 %v301
    %v379 = vunpack.c.l.b16 %v302
    %v380 = vunpack.c.l.b16 %v303
    %v381 = vunpack.c.h.b16 %v303
    %v382 = vunpack.c.l.b16 %v304
    %v383 = vunpack.c.l.b16 %v305
    %v384 = vunpack.c.h.b16 %v305
    %v385 = vunpack.c.l.b16 %v306
    %v386 = vunpack.c.l.b16 %v307
    %v387 = vunpack.c.h.b16 %v307
    %v388 = vunpack.c.l.b16 %v308
    %v389 = vpack.c.b16 %v344, %v341
    %v390 = vpack.c.b16 %v345, %v342
    %v391 = vpack.c.b16 %v346, %v343
    %v392 = vpack.c.b16 %v350, %v347
    %v393 = vpack.c.b16 %v351, %v348
    %v394 = vpack.c.b16 %v352, %v349
    %v395 = vpack.c.b16 %v356, %v353
    %v396 = vpack.c.b16 %v357, %v354
    %v397 = vpack.c.b16 %v358, %v355
    %v398 = vpack.c.b16 %v362, %v359
    %v399 = vpack.c.b16 %v363, %v360
    %v400 = vpack.c.b16 %v364, %v361
    %v401 = vpack.c.b16 %v368, %v365
    %v402 = vpack.c.b16 %v369, %v366
    %v403 = vpack.c.b16 %v370, %v367
    %v404 = vpack.c.b16 %v374, %v371
    %v405 = vpack.c.b16 %v375, %v372
    %v406 = vpack.c.b16 %v376, %v373
    %v407 = vpack.c.b16 %v380, %v377
    %v408 = vpack.c.b16 %v381, %v378
    %v409 = vpack.c.b16 %v382, %v379
    %v410 = vpack.c.b16 %v386, %v383
    %v411 = vpack.c.b16 %v387, %v384
    %v412 = vpack.c.b16 %v388, %v385
    %437 = vmatpush.bf16.msra.mxu0 %v410
    %438 = vmatpush.bf16.msra.mxu0 %v407
    %439 = vmatpush.bf16.msra.mxu0 %v404
    %440 = vmatpush.bf16.msra.mxu0 %v401
    %441 = vmatpush.bf16.msra.mxu0 %v398
    %442 = vmatpush.bf16.msra.mxu0 %v395
    %443 = vmatpush.bf16.msra.mxu0 %v392
    %444 = vmatpush.bf16.msra.mxu0 %v389
    %445 = vmatmul.bf16.gmra.mxu0 %v273
    %v446 = vpop.f32.mrf.mxu0
    %v447 = vadd.f32 0.0, %v446
    %v448 = vpop.f32.mrf.mxu0
    %449 = vdwg.mxu0
    %450 = vmatpush.bf16.msra.mxu0 %v411
    %451 = vmatpush.bf16.msra.mxu0 %v408
    %452 = vmatpush.bf16.msra.mxu0 %v405
    %453 = vmatpush.bf16.msra.mxu0 %v402
    %454 = vmatpush.bf16.msra.mxu0 %v399
    %455 = vmatpush.bf16.msra.mxu0 %v396
    %456 = vmatpush.bf16.msra.mxu0 %v393
    %457 = vmatpush.bf16.msra.mxu0 %v390
    %458 = vmatmul.bf16.gmra.mxu0 %v273
    %v459 = vpop.f32.mrf.mxu0
    %v460 = vadd.f32 0.0, %v459
    %v461 = vpop.f32.mrf.mxu0
    %462 = vdwg.mxu0
    %463 = vmatpush.bf16.msra.mxu0 %v412
    %464 = vmatpush.bf16.msra.mxu0 %v409
    %465 = vmatpush.bf16.msra.mxu0 %v406
    %466 = vmatpush.bf16.msra.mxu0 %v403
    %467 = vmatpush.bf16.msra.mxu0 %v400
    %468 = vmatpush.bf16.msra.mxu0 %v397
    %469 = vmatpush.bf16.msra.mxu0 %v394
    %470 = vmatpush.bf16.msra.mxu0 %v391
    %471 = vmatmul.bf16.gmra.mxu0 %v273
    %v472 = vpop.f32.mrf.mxu0
    %v473 = vadd.f32 0.0, %v472
    %v474 = vpop.f32.mrf.mxu0
    %475 = vdwg.mxu0
    %v476 = vunpack.c.l.bf16 %v276
    %v477 = vadd.f32 %v476, %v447
    %v478 = vmul.f32 %v477, 0.5
    %v479 = vtanh.pop %v478
    %v480 = vmul.f32 %v479, 0.5
    %v481 = vadd.f32 %v480, 0.5
    %v483 = vrot.slane %v276, 1
    %v485 = vunpack.c.l.bf16 %v483
    %v486 = vadd.f32 %v485, %v460
    %v487 = vmul.f32 %v486, 0.5
    %v488 = vtanh.pop %v487
    %v489 = vmul.f32 %v488, 0.5
    %v490 = vadd.f32 %v489, 0.5
    %v491 = vld [vmem:[%s3] sm:$0x1]
    %v493 = vperm.slane %v491, 0
    %v495 = vadd.f32 %v473, %v493
    %v496 = vmul.f32 %v481, %v495
    %v497 = vrot.slane %v276, 2
    %v499 = vunpack.c.l.bf16 %v497
    %v500 = vadd.f32 %v499, %v496
    %v501 = vtanh.pop %v500
    %v502 = vsub.f32 1.0, %v490
    %v503 = vmul.f32 %v502, %v501
    %v504 = vmul.f32 %v490, %v272
    %v505 = vadd.f32 %v503, %v504
    %v506 = vpack.c.bf16 %v505, %v505
    %s507 = scalar_lea.vmem %s4, 1
    %508 = vst [vmem:[%s507] sm:$0x1] %v506
    %s509 = scalar_lea.vmem %s0, 6
    %v510 = vld [vmem:[%s509] sm:$0x7]
    %v511 = vld [vmem:[#allocation3] sm:$0xff]
    %v512 = vld [vmem:[#allocation3 + $0x8] sm:$0xf]
    %v513 = vld [vmem:[#allocation3 + $0xc] sm:$0xff]
    %v514 = vld [vmem:[#allocation3 + $0x14] sm:$0xf]
    %v515 = vld [vmem:[#allocation3 + $0x18] sm:$0xff]
    %v516 = vld [vmem:[#allocation3 + $0x20] sm:$0xf]
    %v517 = vld [vmem:[#allocation3 + $0x24] sm:$0xff]
    %v518 = vld [vmem:[#allocation3 + $0x2c] sm:$0xf]
    %v519 = vld [vmem:[#allocation3 + $0x30] sm:$0xff]
    %v520 = vld [vmem:[#allocation3 + $0x38] sm:$0xf]
    %v521 = vld [vmem:[#allocation3 + $0x3c] sm:$0xff]
    %v522 = vld [vmem:[#allocation3 + $0x44] sm:$0xf]
    %v523 = vld [vmem:[#allocation3 + $0x48] sm:$0xff]
    %v524 = vld [vmem:[#allocation3 + $0x50] sm:$0xf]
    %v525 = vld [vmem:[#allocation3 + $0x54] sm:$0xff]
    %v526 = vld [vmem:[#allocation3 + $0x5c] sm:$0xf]
    %v527 = vld [vmem:[#allocation3 + $0x60] sm:$0xff]
    %v528 = vld [vmem:[#allocation3 + $0x68] sm:$0xf]
    %v529 = vld [vmem:[#allocation3 + $0x6c] sm:$0xff]
    %v530 = vld [vmem:[#allocation3 + $0x74] sm:$0xf]
    %v531 = vld [vmem:[#allocation3 + $0x78] sm:$0xff]
    %v532 = vld [vmem:[#allocation3 + $0x80] sm:$0xf]
    %v533 = vld [vmem:[#allocation3 + $0x84] sm:$0xff]
    %v534 = vld [vmem:[#allocation3 + $0x8c] sm:$0xf]
    %v535 = vld [vmem:[#allocation3 + $0x90] sm:$0xff]
    %v536 = vld [vmem:[#allocation3 + $0x98] sm:$0xf]
    %v537 = vld [vmem:[#allocation3 + $0x9c] sm:$0xff]
    %v538 = vld [vmem:[#allocation3 + $0xa4] sm:$0xf]
    %v539 = vld [vmem:[#allocation3 + $0xa8] sm:$0xff]
    %v540 = vld [vmem:[#allocation3 + $0xb0] sm:$0xf]
    %v541 = vld [vmem:[#allocation3 + $0xb4] sm:$0xff]
    %v542 = vld [vmem:[#allocation3 + $0xbc] sm:$0xf]
    %v575 = vunpack.c.l.b16 %v511
    %v576 = vunpack.c.h.b16 %v511
    %v577 = vunpack.c.l.b16 %v512
    %v578 = vunpack.c.l.b16 %v513
    %v579 = vunpack.c.h.b16 %v513
    %v580 = vunpack.c.l.b16 %v514
    %v581 = vunpack.c.l.b16 %v515
    %v582 = vunpack.c.h.b16 %v515
    %v583 = vunpack.c.l.b16 %v516
    %v584 = vunpack.c.l.b16 %v517
    %v585 = vunpack.c.h.b16 %v517
    %v586 = vunpack.c.l.b16 %v518
    %v587 = vunpack.c.l.b16 %v519
    %v588 = vunpack.c.h.b16 %v519
    %v589 = vunpack.c.l.b16 %v520
    %v590 = vunpack.c.l.b16 %v521
    %v591 = vunpack.c.h.b16 %v521
    %v592 = vunpack.c.l.b16 %v522
    %v593 = vunpack.c.l.b16 %v523
    %v594 = vunpack.c.h.b16 %v523
    %v595 = vunpack.c.l.b16 %v524
    %v596 = vunpack.c.l.b16 %v525
    %v597 = vunpack.c.h.b16 %v525
    %v598 = vunpack.c.l.b16 %v526
    %v599 = vunpack.c.l.b16 %v527
    %v600 = vunpack.c.h.b16 %v527
    %v601 = vunpack.c.l.b16 %v528
    %v602 = vunpack.c.l.b16 %v529
    %v603 = vunpack.c.h.b16 %v529
    %v604 = vunpack.c.l.b16 %v530
    %v605 = vunpack.c.l.b16 %v531
    %v606 = vunpack.c.h.b16 %v531
    %v607 = vunpack.c.l.b16 %v532
    %v608 = vunpack.c.l.b16 %v533
    %v609 = vunpack.c.h.b16 %v533
    %v610 = vunpack.c.l.b16 %v534
    %v611 = vunpack.c.l.b16 %v535
    %v612 = vunpack.c.h.b16 %v535
    %v613 = vunpack.c.l.b16 %v536
    %v614 = vunpack.c.l.b16 %v537
    %v615 = vunpack.c.h.b16 %v537
    %v616 = vunpack.c.l.b16 %v538
    %v617 = vunpack.c.l.b16 %v539
    %v618 = vunpack.c.h.b16 %v539
    %v619 = vunpack.c.l.b16 %v540
    %v620 = vunpack.c.l.b16 %v541
    %v621 = vunpack.c.h.b16 %v541
    %v622 = vunpack.c.l.b16 %v542
    %v623 = vpack.c.b16 %v578, %v575
    %v624 = vpack.c.b16 %v579, %v576
    %v625 = vpack.c.b16 %v580, %v577
    %v626 = vpack.c.b16 %v584, %v581
    %v627 = vpack.c.b16 %v585, %v582
    %v628 = vpack.c.b16 %v586, %v583
    %v629 = vpack.c.b16 %v590, %v587
    %v630 = vpack.c.b16 %v591, %v588
    %v631 = vpack.c.b16 %v592, %v589
    %v632 = vpack.c.b16 %v596, %v593
    %v633 = vpack.c.b16 %v597, %v594
    %v634 = vpack.c.b16 %v598, %v595
    %v635 = vpack.c.b16 %v602, %v599
    %v636 = vpack.c.b16 %v603, %v600
    %v637 = vpack.c.b16 %v604, %v601
    %v638 = vpack.c.b16 %v608, %v605
    %v639 = vpack.c.b16 %v609, %v606
    %v640 = vpack.c.b16 %v610, %v607
    %v641 = vpack.c.b16 %v614, %v611
    %v642 = vpack.c.b16 %v615, %v612
    %v643 = vpack.c.b16 %v616, %v613
    %v644 = vpack.c.b16 %v620, %v617
    %v645 = vpack.c.b16 %v621, %v618
    %v646 = vpack.c.b16 %v622, %v619
    %671 = vmatpush.bf16.msra.mxu0 %v644
    %672 = vmatpush.bf16.msra.mxu0 %v641
    %673 = vmatpush.bf16.msra.mxu0 %v638
    %674 = vmatpush.bf16.msra.mxu0 %v635
    %675 = vmatpush.bf16.msra.mxu0 %v632
    %676 = vmatpush.bf16.msra.mxu0 %v629
    %677 = vmatpush.bf16.msra.mxu0 %v626
    %678 = vmatpush.bf16.msra.mxu0 %v623
    %679 = vmatmul.bf16.gmra.mxu0 %v506
    %v680 = vpop.f32.mrf.mxu0
    %v681 = vadd.f32 0.0, %v680
    %v682 = vpop.f32.mrf.mxu0
    %683 = vdwg.mxu0
    %684 = vmatpush.bf16.msra.mxu0 %v645
    %685 = vmatpush.bf16.msra.mxu0 %v642
    %686 = vmatpush.bf16.msra.mxu0 %v639
    %687 = vmatpush.bf16.msra.mxu0 %v636
    %688 = vmatpush.bf16.msra.mxu0 %v633
    %689 = vmatpush.bf16.msra.mxu0 %v630
    %690 = vmatpush.bf16.msra.mxu0 %v627
    %691 = vmatpush.bf16.msra.mxu0 %v624
    %692 = vmatmul.bf16.gmra.mxu0 %v506
    %v693 = vpop.f32.mrf.mxu0
    %v694 = vadd.f32 0.0, %v693
    %v695 = vpop.f32.mrf.mxu0
    %696 = vdwg.mxu0
    %697 = vmatpush.bf16.msra.mxu0 %v646
    %698 = vmatpush.bf16.msra.mxu0 %v643
    %699 = vmatpush.bf16.msra.mxu0 %v640
    %700 = vmatpush.bf16.msra.mxu0 %v637
    %701 = vmatpush.bf16.msra.mxu0 %v634
    %702 = vmatpush.bf16.msra.mxu0 %v631
    %703 = vmatpush.bf16.msra.mxu0 %v628
    %704 = vmatpush.bf16.msra.mxu0 %v625
    %705 = vmatmul.bf16.gmra.mxu0 %v506
    %v706 = vpop.f32.mrf.mxu0
    %v707 = vadd.f32 0.0, %v706
    %v708 = vpop.f32.mrf.mxu0
    %709 = vdwg.mxu0
    %v710 = vunpack.c.l.bf16 %v510
    %v711 = vadd.f32 %v710, %v681
    %v712 = vmul.f32 %v711, 0.5
    %v713 = vtanh.pop %v712
    %v714 = vmul.f32 %v713, 0.5
    %v715 = vadd.f32 %v714, 0.5
    %v717 = vrot.slane %v510, 1
    %v719 = vunpack.c.l.bf16 %v717
    %v720 = vadd.f32 %v719, %v694
    %v721 = vmul.f32 %v720, 0.5
    %v722 = vtanh.pop %v721
    %v723 = vmul.f32 %v722, 0.5
    %v724 = vadd.f32 %v723, 0.5
    %v725 = vld [vmem:[%s3] sm:$0x1]
    %v727 = vperm.slane %v725, 0
    %v729 = vadd.f32 %v707, %v727
    %v730 = vmul.f32 %v715, %v729
    %v731 = vrot.slane %v510, 2
    %v733 = vunpack.c.l.bf16 %v731
    %v734 = vadd.f32 %v733, %v730
    %v735 = vtanh.pop %v734
    %v736 = vsub.f32 1.0, %v724
    %v737 = vmul.f32 %v736, %v735
    %v738 = vmul.f32 %v724, %v505
    %v739 = vadd.f32 %v737, %v738
    %v740 = vpack.c.bf16 %v739, %v739
    %s741 = scalar_lea.vmem %s4, 2
    %742 = vst [vmem:[%s741] sm:$0x1] %v740
    %s743 = scalar_lea.vmem %s0, 9
    %v744 = vld [vmem:[%s743] sm:$0x7]
    %v745 = vld [vmem:[#allocation3] sm:$0xff]
    %v746 = vld [vmem:[#allocation3 + $0x8] sm:$0xf]
    %v747 = vld [vmem:[#allocation3 + $0xc] sm:$0xff]
    %v748 = vld [vmem:[#allocation3 + $0x14] sm:$0xf]
    %v749 = vld [vmem:[#allocation3 + $0x18] sm:$0xff]
    %v750 = vld [vmem:[#allocation3 + $0x20] sm:$0xf]
    %v751 = vld [vmem:[#allocation3 + $0x24] sm:$0xff]
    %v752 = vld [vmem:[#allocation3 + $0x2c] sm:$0xf]
    %v753 = vld [vmem:[#allocation3 + $0x30] sm:$0xff]
    %v754 = vld [vmem:[#allocation3 + $0x38] sm:$0xf]
    %v755 = vld [vmem:[#allocation3 + $0x3c] sm:$0xff]
    %v756 = vld [vmem:[#allocation3 + $0x44] sm:$0xf]
    %v757 = vld [vmem:[#allocation3 + $0x48] sm:$0xff]
    %v758 = vld [vmem:[#allocation3 + $0x50] sm:$0xf]
    %v759 = vld [vmem:[#allocation3 + $0x54] sm:$0xff]
    %v760 = vld [vmem:[#allocation3 + $0x5c] sm:$0xf]
    %v761 = vld [vmem:[#allocation3 + $0x60] sm:$0xff]
    %v762 = vld [vmem:[#allocation3 + $0x68] sm:$0xf]
    %v763 = vld [vmem:[#allocation3 + $0x6c] sm:$0xff]
    %v764 = vld [vmem:[#allocation3 + $0x74] sm:$0xf]
    %v765 = vld [vmem:[#allocation3 + $0x78] sm:$0xff]
    %v766 = vld [vmem:[#allocation3 + $0x80] sm:$0xf]
    %v767 = vld [vmem:[#allocation3 + $0x84] sm:$0xff]
    %v768 = vld [vmem:[#allocation3 + $0x8c] sm:$0xf]
    %v769 = vld [vmem:[#allocation3 + $0x90] sm:$0xff]
    %v770 = vld [vmem:[#allocation3 + $0x98] sm:$0xf]
    %v771 = vld [vmem:[#allocation3 + $0x9c] sm:$0xff]
    %v772 = vld [vmem:[#allocation3 + $0xa4] sm:$0xf]
    %v773 = vld [vmem:[#allocation3 + $0xa8] sm:$0xff]
    %v774 = vld [vmem:[#allocation3 + $0xb0] sm:$0xf]
    %v775 = vld [vmem:[#allocation3 + $0xb4] sm:$0xff]
    %v776 = vld [vmem:[#allocation3 + $0xbc] sm:$0xf]
    %v809 = vunpack.c.l.b16 %v745
    %v810 = vunpack.c.h.b16 %v745
    %v811 = vunpack.c.l.b16 %v746
    %v812 = vunpack.c.l.b16 %v747
    %v813 = vunpack.c.h.b16 %v747
    %v814 = vunpack.c.l.b16 %v748
    %v815 = vunpack.c.l.b16 %v749
    %v816 = vunpack.c.h.b16 %v749
    %v817 = vunpack.c.l.b16 %v750
    %v818 = vunpack.c.l.b16 %v751
    %v819 = vunpack.c.h.b16 %v751
    %v820 = vunpack.c.l.b16 %v752
    %v821 = vunpack.c.l.b16 %v753
    %v822 = vunpack.c.h.b16 %v753
    %v823 = vunpack.c.l.b16 %v754
    %v824 = vunpack.c.l.b16 %v755
    %v825 = vunpack.c.h.b16 %v755
    %v826 = vunpack.c.l.b16 %v756
    %v827 = vunpack.c.l.b16 %v757
    %v828 = vunpack.c.h.b16 %v757
    %v829 = vunpack.c.l.b16 %v758
    %v830 = vunpack.c.l.b16 %v759
    %v831 = vunpack.c.h.b16 %v759
    %v832 = vunpack.c.l.b16 %v760
    %v833 = vunpack.c.l.b16 %v761
    %v834 = vunpack.c.h.b16 %v761
    %v835 = vunpack.c.l.b16 %v762
    %v836 = vunpack.c.l.b16 %v763
    %v837 = vunpack.c.h.b16 %v763
    %v838 = vunpack.c.l.b16 %v764
    %v839 = vunpack.c.l.b16 %v765
    %v840 = vunpack.c.h.b16 %v765
    %v841 = vunpack.c.l.b16 %v766
    %v842 = vunpack.c.l.b16 %v767
    %v843 = vunpack.c.h.b16 %v767
    %v844 = vunpack.c.l.b16 %v768
    %v845 = vunpack.c.l.b16 %v769
    %v846 = vunpack.c.h.b16 %v769
    %v847 = vunpack.c.l.b16 %v770
    %v848 = vunpack.c.l.b16 %v771
    %v849 = vunpack.c.h.b16 %v771
    %v850 = vunpack.c.l.b16 %v772
    %v851 = vunpack.c.l.b16 %v773
    %v852 = vunpack.c.h.b16 %v773
    %v853 = vunpack.c.l.b16 %v774
    %v854 = vunpack.c.l.b16 %v775
    %v855 = vunpack.c.h.b16 %v775
    %v856 = vunpack.c.l.b16 %v776
    %v857 = vpack.c.b16 %v812, %v809
    %v858 = vpack.c.b16 %v813, %v810
    %v859 = vpack.c.b16 %v814, %v811
    %v860 = vpack.c.b16 %v818, %v815
    %v861 = vpack.c.b16 %v819, %v816
    %v862 = vpack.c.b16 %v820, %v817
    %v863 = vpack.c.b16 %v824, %v821
    %v864 = vpack.c.b16 %v825, %v822
    %v865 = vpack.c.b16 %v826, %v823
    %v866 = vpack.c.b16 %v830, %v827
    %v867 = vpack.c.b16 %v831, %v828
    %v868 = vpack.c.b16 %v832, %v829
    %v869 = vpack.c.b16 %v836, %v833
    %v870 = vpack.c.b16 %v837, %v834
    %v871 = vpack.c.b16 %v838, %v835
    %v872 = vpack.c.b16 %v842, %v839
    %v873 = vpack.c.b16 %v843, %v840
    %v874 = vpack.c.b16 %v844, %v841
    %v875 = vpack.c.b16 %v848, %v845
    %v876 = vpack.c.b16 %v849, %v846
    %v877 = vpack.c.b16 %v850, %v847
    %v878 = vpack.c.b16 %v854, %v851
    %v879 = vpack.c.b16 %v855, %v852
    %v880 = vpack.c.b16 %v856, %v853
    %905 = vmatpush.bf16.msra.mxu0 %v878
    %906 = vmatpush.bf16.msra.mxu0 %v875
    %907 = vmatpush.bf16.msra.mxu0 %v872
    %908 = vmatpush.bf16.msra.mxu0 %v869
    %909 = vmatpush.bf16.msra.mxu0 %v866
    %910 = vmatpush.bf16.msra.mxu0 %v863
    %911 = vmatpush.bf16.msra.mxu0 %v860
    %912 = vmatpush.bf16.msra.mxu0 %v857
    %913 = vmatmul.bf16.gmra.mxu0 %v740
    %v914 = vpop.f32.mrf.mxu0
    %v915 = vadd.f32 0.0, %v914
    %v916 = vpop.f32.mrf.mxu0
    %917 = vdwg.mxu0
    %918 = vmatpush.bf16.msra.mxu0 %v879
    %919 = vmatpush.bf16.msra.mxu0 %v876
    %920 = vmatpush.bf16.msra.mxu0 %v873
    %921 = vmatpush.bf16.msra.mxu0 %v870
    %922 = vmatpush.bf16.msra.mxu0 %v867
    %923 = vmatpush.bf16.msra.mxu0 %v864
    %924 = vmatpush.bf16.msra.mxu0 %v861
    %925 = vmatpush.bf16.msra.mxu0 %v858
    %926 = vmatmul.bf16.gmra.mxu0 %v740
    %v927 = vpop.f32.mrf.mxu0
    %v928 = vadd.f32 0.0, %v927
    %v929 = vpop.f32.mrf.mxu0
    %930 = vdwg.mxu0
    %931 = vmatpush.bf16.msra.mxu0 %v880
    %932 = vmatpush.bf16.msra.mxu0 %v877
    %933 = vmatpush.bf16.msra.mxu0 %v874
    %934 = vmatpush.bf16.msra.mxu0 %v871
    %935 = vmatpush.bf16.msra.mxu0 %v868
    %936 = vmatpush.bf16.msra.mxu0 %v865
    %937 = vmatpush.bf16.msra.mxu0 %v862
    %938 = vmatpush.bf16.msra.mxu0 %v859
    %939 = vmatmul.bf16.gmra.mxu0 %v740
    %v940 = vpop.f32.mrf.mxu0
    %v941 = vadd.f32 0.0, %v940
    %v942 = vpop.f32.mrf.mxu0
    %943 = vdwg.mxu0
    %v944 = vunpack.c.l.bf16 %v744
    %v945 = vadd.f32 %v944, %v915
    %v946 = vmul.f32 %v945, 0.5
    %v947 = vtanh.pop %v946
    %v948 = vmul.f32 %v947, 0.5
    %v949 = vadd.f32 %v948, 0.5
    %v951 = vrot.slane %v744, 1
    %v953 = vunpack.c.l.bf16 %v951
    %v954 = vadd.f32 %v953, %v928
    %v955 = vmul.f32 %v954, 0.5
    %v956 = vtanh.pop %v955
    %v957 = vmul.f32 %v956, 0.5
    %v958 = vadd.f32 %v957, 0.5
    %v959 = vld [vmem:[%s3] sm:$0x1]
    %v961 = vperm.slane %v959, 0
    %v963 = vadd.f32 %v941, %v961
    %v964 = vmul.f32 %v949, %v963
    %v965 = vrot.slane %v744, 2
    %v967 = vunpack.c.l.bf16 %v965
    %v968 = vadd.f32 %v967, %v964
    %v969 = vtanh.pop %v968
    %v970 = vsub.f32 1.0, %v958
    %v971 = vmul.f32 %v970, %v969
    %v972 = vmul.f32 %v958, %v739
    %v973 = vadd.f32 %v971, %v972
    %v974 = vpack.c.bf16 %v973, %v973
    %s975 = scalar_lea.vmem %s4, 3
    %976 = vst [vmem:[%s975] sm:$0x1] %v974
    %s977 = scalar_lea.vmem %s0, 12
    %v978 = vld [vmem:[%s977] sm:$0x7]
    %v979 = vld [vmem:[#allocation3] sm:$0xff]
    %v980 = vld [vmem:[#allocation3 + $0x8] sm:$0xf]
    %v981 = vld [vmem:[#allocation3 + $0xc] sm:$0xff]
    %v982 = vld [vmem:[#allocation3 + $0x14] sm:$0xf]
    %v983 = vld [vmem:[#allocation3 + $0x18] sm:$0xff]
    %v984 = vld [vmem:[#allocation3 + $0x20] sm:$0xf]
    %v985 = vld [vmem:[#allocation3 + $0x24] sm:$0xff]
    %v986 = vld [vmem:[#allocation3 + $0x2c] sm:$0xf]
    %v987 = vld [vmem:[#allocation3 + $0x30] sm:$0xff]
    %v988 = vld [vmem:[#allocation3 + $0x38] sm:$0xf]
    %v989 = vld [vmem:[#allocation3 + $0x3c] sm:$0xff]
    %v990 = vld [vmem:[#allocation3 + $0x44] sm:$0xf]
    %v991 = vld [vmem:[#allocation3 + $0x48] sm:$0xff]
    %v992 = vld [vmem:[#allocation3 + $0x50] sm:$0xf]
    %v993 = vld [vmem:[#allocation3 + $0x54] sm:$0xff]
    %v994 = vld [vmem:[#allocation3 + $0x5c] sm:$0xf]
    %v995 = vld [vmem:[#allocation3 + $0x60] sm:$0xff]
    %v996 = vld [vmem:[#allocation3 + $0x68] sm:$0xf]
    %v997 = vld [vmem:[#allocation3 + $0x6c] sm:$0xff]
    %v998 = vld [vmem:[#allocation3 + $0x74] sm:$0xf]
    %v999 = vld [vmem:[#allocation3 + $0x78] sm:$0xff]
    %v1000 = vld [vmem:[#allocation3 + $0x80] sm:$0xf]
    %v1001 = vld [vmem:[#allocation3 + $0x84] sm:$0xff]
    %v1002 = vld [vmem:[#allocation3 + $0x8c] sm:$0xf]
    %v1003 = vld [vmem:[#allocation3 + $0x90] sm:$0xff]
    %v1004 = vld [vmem:[#allocation3 + $0x98] sm:$0xf]
    %v1005 = vld [vmem:[#allocation3 + $0x9c] sm:$0xff]
    %v1006 = vld [vmem:[#allocation3 + $0xa4] sm:$0xf]
    %v1007 = vld [vmem:[#allocation3 + $0xa8] sm:$0xff]
    %v1008 = vld [vmem:[#allocation3 + $0xb0] sm:$0xf]
    %v1009 = vld [vmem:[#allocation3 + $0xb4] sm:$0xff]
    %v1010 = vld [vmem:[#allocation3 + $0xbc] sm:$0xf]
    %v1043 = vunpack.c.l.b16 %v979
    %v1044 = vunpack.c.h.b16 %v979
    %v1045 = vunpack.c.l.b16 %v980
    %v1046 = vunpack.c.l.b16 %v981
    %v1047 = vunpack.c.h.b16 %v981
    %v1048 = vunpack.c.l.b16 %v982
    %v1049 = vunpack.c.l.b16 %v983
    %v1050 = vunpack.c.h.b16 %v983
    %v1051 = vunpack.c.l.b16 %v984
    %v1052 = vunpack.c.l.b16 %v985
    %v1053 = vunpack.c.h.b16 %v985
    %v1054 = vunpack.c.l.b16 %v986
    %v1055 = vunpack.c.l.b16 %v987
    %v1056 = vunpack.c.h.b16 %v987
    %v1057 = vunpack.c.l.b16 %v988
    %v1058 = vunpack.c.l.b16 %v989
    %v1059 = vunpack.c.h.b16 %v989
    %v1060 = vunpack.c.l.b16 %v990
    %v1061 = vunpack.c.l.b16 %v991
    %v1062 = vunpack.c.h.b16 %v991
    %v1063 = vunpack.c.l.b16 %v992
    %v1064 = vunpack.c.l.b16 %v993
    %v1065 = vunpack.c.h.b16 %v993
    %v1066 = vunpack.c.l.b16 %v994
    %v1067 = vunpack.c.l.b16 %v995
    %v1068 = vunpack.c.h.b16 %v995
    %v1069 = vunpack.c.l.b16 %v996
    %v1070 = vunpack.c.l.b16 %v997
    %v1071 = vunpack.c.h.b16 %v997
    %v1072 = vunpack.c.l.b16 %v998
    %v1073 = vunpack.c.l.b16 %v999
    %v1074 = vunpack.c.h.b16 %v999
    %v1075 = vunpack.c.l.b16 %v1000
    %v1076 = vunpack.c.l.b16 %v1001
    %v1077 = vunpack.c.h.b16 %v1001
    %v1078 = vunpack.c.l.b16 %v1002
    %v1079 = vunpack.c.l.b16 %v1003
    %v1080 = vunpack.c.h.b16 %v1003
    %v1081 = vunpack.c.l.b16 %v1004
    %v1082 = vunpack.c.l.b16 %v1005
    %v1083 = vunpack.c.h.b16 %v1005
    %v1084 = vunpack.c.l.b16 %v1006
    %v1085 = vunpack.c.l.b16 %v1007
    %v1086 = vunpack.c.h.b16 %v1007
    %v1087 = vunpack.c.l.b16 %v1008
    %v1088 = vunpack.c.l.b16 %v1009
    %v1089 = vunpack.c.h.b16 %v1009
    %v1090 = vunpack.c.l.b16 %v1010
    %v1091 = vpack.c.b16 %v1046, %v1043
    %v1092 = vpack.c.b16 %v1047, %v1044
    %v1093 = vpack.c.b16 %v1048, %v1045
    %v1094 = vpack.c.b16 %v1052, %v1049
    %v1095 = vpack.c.b16 %v1053, %v1050
    %v1096 = vpack.c.b16 %v1054, %v1051
    %v1097 = vpack.c.b16 %v1058, %v1055
    %v1098 = vpack.c.b16 %v1059, %v1056
    %v1099 = vpack.c.b16 %v1060, %v1057
    %v1100 = vpack.c.b16 %v1064, %v1061
    %v1101 = vpack.c.b16 %v1065, %v1062
    %v1102 = vpack.c.b16 %v1066, %v1063
    %v1103 = vpack.c.b16 %v1070, %v1067
    %v1104 = vpack.c.b16 %v1071, %v1068
    %v1105 = vpack.c.b16 %v1072, %v1069
    %v1106 = vpack.c.b16 %v1076, %v1073
    %v1107 = vpack.c.b16 %v1077, %v1074
    %v1108 = vpack.c.b16 %v1078, %v1075
    %v1109 = vpack.c.b16 %v1082, %v1079
    %v1110 = vpack.c.b16 %v1083, %v1080
    %v1111 = vpack.c.b16 %v1084, %v1081
    %v1112 = vpack.c.b16 %v1088, %v1085
    %v1113 = vpack.c.b16 %v1089, %v1086
    %v1114 = vpack.c.b16 %v1090, %v1087
    %1139 = vmatpush.bf16.msra.mxu0 %v1112
    %1140 = vmatpush.bf16.msra.mxu0 %v1109
    %1141 = vmatpush.bf16.msra.mxu0 %v1106
    %1142 = vmatpush.bf16.msra.mxu0 %v1103
    %1143 = vmatpush.bf16.msra.mxu0 %v1100
    %1144 = vmatpush.bf16.msra.mxu0 %v1097
    %1145 = vmatpush.bf16.msra.mxu0 %v1094
    %1146 = vmatpush.bf16.msra.mxu0 %v1091
    %1147 = vmatmul.bf16.gmra.mxu0 %v974
    %v1148 = vpop.f32.mrf.mxu0
    %v1149 = vadd.f32 0.0, %v1148
    %v1150 = vpop.f32.mrf.mxu0
    %1151 = vdwg.mxu0
    %1152 = vmatpush.bf16.msra.mxu0 %v1113
    %1153 = vmatpush.bf16.msra.mxu0 %v1110
    %1154 = vmatpush.bf16.msra.mxu0 %v1107
    %1155 = vmatpush.bf16.msra.mxu0 %v1104
    %1156 = vmatpush.bf16.msra.mxu0 %v1101
    %1157 = vmatpush.bf16.msra.mxu0 %v1098
    %1158 = vmatpush.bf16.msra.mxu0 %v1095
    %1159 = vmatpush.bf16.msra.mxu0 %v1092
    %1160 = vmatmul.bf16.gmra.mxu0 %v974
    %v1161 = vpop.f32.mrf.mxu0
    %v1162 = vadd.f32 0.0, %v1161
    %v1163 = vpop.f32.mrf.mxu0
    %1164 = vdwg.mxu0
    %1165 = vmatpush.bf16.msra.mxu0 %v1114
    %1166 = vmatpush.bf16.msra.mxu0 %v1111
    %1167 = vmatpush.bf16.msra.mxu0 %v1108
    %1168 = vmatpush.bf16.msra.mxu0 %v1105
    %1169 = vmatpush.bf16.msra.mxu0 %v1102
    %1170 = vmatpush.bf16.msra.mxu0 %v1099
    %1171 = vmatpush.bf16.msra.mxu0 %v1096
    %1172 = vmatpush.bf16.msra.mxu0 %v1093
    %1173 = vmatmul.bf16.gmra.mxu0 %v974
    %v1174 = vpop.f32.mrf.mxu0
    %v1175 = vadd.f32 0.0, %v1174
    %v1176 = vpop.f32.mrf.mxu0
    %1177 = vdwg.mxu0
    %v1178 = vunpack.c.l.bf16 %v978
    %v1179 = vadd.f32 %v1178, %v1149
    %v1180 = vmul.f32 %v1179, 0.5
    %v1181 = vtanh.pop %v1180
    %v1182 = vmul.f32 %v1181, 0.5
    %v1183 = vadd.f32 %v1182, 0.5
    %v1185 = vrot.slane %v978, 1
    %v1187 = vunpack.c.l.bf16 %v1185
    %v1188 = vadd.f32 %v1187, %v1162
    %v1189 = vmul.f32 %v1188, 0.5
    %v1190 = vtanh.pop %v1189
    %v1191 = vmul.f32 %v1190, 0.5
    %v1192 = vadd.f32 %v1191, 0.5
    %v1193 = vld [vmem:[%s3] sm:$0x1]
    %v1195 = vperm.slane %v1193, 0
    %v1197 = vadd.f32 %v1175, %v1195
    %v1198 = vmul.f32 %v1183, %v1197
    %v1199 = vrot.slane %v978, 2
    %v1201 = vunpack.c.l.bf16 %v1199
    %v1202 = vadd.f32 %v1201, %v1198
    %v1203 = vtanh.pop %v1202
    %v1204 = vsub.f32 1.0, %v1192
    %v1205 = vmul.f32 %v1204, %v1203
    %v1206 = vmul.f32 %v1192, %v973
    %v1207 = vadd.f32 %v1205, %v1206
    %v1208 = vpack.c.bf16 %v1207, %v1207
    %s1209 = scalar_lea.vmem %s4, 4
    %1210 = vst [vmem:[%s1209] sm:$0x1] %v1208
    %s1211 = scalar_lea.vmem %s0, 15
    %v1212 = vld [vmem:[%s1211] sm:$0x7]
    %v1213 = vld [vmem:[#allocation3] sm:$0xff]
    %v1214 = vld [vmem:[#allocation3 + $0x8] sm:$0xf]
    %v1215 = vld [vmem:[#allocation3 + $0xc] sm:$0xff]
    %v1216 = vld [vmem:[#allocation3 + $0x14] sm:$0xf]
    %v1217 = vld [vmem:[#allocation3 + $0x18] sm:$0xff]
    %v1218 = vld [vmem:[#allocation3 + $0x20] sm:$0xf]
    %v1219 = vld [vmem:[#allocation3 + $0x24] sm:$0xff]
    %v1220 = vld [vmem:[#allocation3 + $0x2c] sm:$0xf]
    %v1221 = vld [vmem:[#allocation3 + $0x30] sm:$0xff]
    %v1222 = vld [vmem:[#allocation3 + $0x38] sm:$0xf]
    %v1223 = vld [vmem:[#allocation3 + $0x3c] sm:$0xff]
    %v1224 = vld [vmem:[#allocation3 + $0x44] sm:$0xf]
    %v1225 = vld [vmem:[#allocation3 + $0x48] sm:$0xff]
    %v1226 = vld [vmem:[#allocation3 + $0x50] sm:$0xf]
    %v1227 = vld [vmem:[#allocation3 + $0x54] sm:$0xff]
    %v1228 = vld [vmem:[#allocation3 + $0x5c] sm:$0xf]
    %v1229 = vld [vmem:[#allocation3 + $0x60] sm:$0xff]
    %v1230 = vld [vmem:[#allocation3 + $0x68] sm:$0xf]
    %v1231 = vld [vmem:[#allocation3 + $0x6c] sm:$0xff]
    %v1232 = vld [vmem:[#allocation3 + $0x74] sm:$0xf]
    %v1233 = vld [vmem:[#allocation3 + $0x78] sm:$0xff]
    %v1234 = vld [vmem:[#allocation3 + $0x80] sm:$0xf]
    %v1235 = vld [vmem:[#allocation3 + $0x84] sm:$0xff]
    %v1236 = vld [vmem:[#allocation3 + $0x8c] sm:$0xf]
    %v1237 = vld [vmem:[#allocation3 + $0x90] sm:$0xff]
    %v1238 = vld [vmem:[#allocation3 + $0x98] sm:$0xf]
    %v1239 = vld [vmem:[#allocation3 + $0x9c] sm:$0xff]
    %v1240 = vld [vmem:[#allocation3 + $0xa4] sm:$0xf]
    %v1241 = vld [vmem:[#allocation3 + $0xa8] sm:$0xff]
    %v1242 = vld [vmem:[#allocation3 + $0xb0] sm:$0xf]
    %v1243 = vld [vmem:[#allocation3 + $0xb4] sm:$0xff]
    %v1244 = vld [vmem:[#allocation3 + $0xbc] sm:$0xf]
    %v1277 = vunpack.c.l.b16 %v1213
    %v1278 = vunpack.c.h.b16 %v1213
    %v1279 = vunpack.c.l.b16 %v1214
    %v1280 = vunpack.c.l.b16 %v1215
    %v1281 = vunpack.c.h.b16 %v1215
    %v1282 = vunpack.c.l.b16 %v1216
    %v1283 = vunpack.c.l.b16 %v1217
    %v1284 = vunpack.c.h.b16 %v1217
    %v1285 = vunpack.c.l.b16 %v1218
    %v1286 = vunpack.c.l.b16 %v1219
    %v1287 = vunpack.c.h.b16 %v1219
    %v1288 = vunpack.c.l.b16 %v1220
    %v1289 = vunpack.c.l.b16 %v1221
    %v1290 = vunpack.c.h.b16 %v1221
    %v1291 = vunpack.c.l.b16 %v1222
    %v1292 = vunpack.c.l.b16 %v1223
    %v1293 = vunpack.c.h.b16 %v1223
    %v1294 = vunpack.c.l.b16 %v1224
    %v1295 = vunpack.c.l.b16 %v1225
    %v1296 = vunpack.c.h.b16 %v1225
    %v1297 = vunpack.c.l.b16 %v1226
    %v1298 = vunpack.c.l.b16 %v1227
    %v1299 = vunpack.c.h.b16 %v1227
    %v1300 = vunpack.c.l.b16 %v1228
    %v1301 = vunpack.c.l.b16 %v1229
    %v1302 = vunpack.c.h.b16 %v1229
    %v1303 = vunpack.c.l.b16 %v1230
    %v1304 = vunpack.c.l.b16 %v1231
    %v1305 = vunpack.c.h.b16 %v1231
    %v1306 = vunpack.c.l.b16 %v1232
    %v1307 = vunpack.c.l.b16 %v1233
    %v1308 = vunpack.c.h.b16 %v1233
    %v1309 = vunpack.c.l.b16 %v1234
    %v1310 = vunpack.c.l.b16 %v1235
    %v1311 = vunpack.c.h.b16 %v1235
    %v1312 = vunpack.c.l.b16 %v1236
    %v1313 = vunpack.c.l.b16 %v1237
    %v1314 = vunpack.c.h.b16 %v1237
    %v1315 = vunpack.c.l.b16 %v1238
    %v1316 = vunpack.c.l.b16 %v1239
    %v1317 = vunpack.c.h.b16 %v1239
    %v1318 = vunpack.c.l.b16 %v1240
    %v1319 = vunpack.c.l.b16 %v1241
    %v1320 = vunpack.c.h.b16 %v1241
    %v1321 = vunpack.c.l.b16 %v1242
    %v1322 = vunpack.c.l.b16 %v1243
    %v1323 = vunpack.c.h.b16 %v1243
    %v1324 = vunpack.c.l.b16 %v1244
    %v1325 = vpack.c.b16 %v1280, %v1277
    %v1326 = vpack.c.b16 %v1281, %v1278
    %v1327 = vpack.c.b16 %v1282, %v1279
    %v1328 = vpack.c.b16 %v1286, %v1283
    %v1329 = vpack.c.b16 %v1287, %v1284
    %v1330 = vpack.c.b16 %v1288, %v1285
    %v1331 = vpack.c.b16 %v1292, %v1289
    %v1332 = vpack.c.b16 %v1293, %v1290
    %v1333 = vpack.c.b16 %v1294, %v1291
    %v1334 = vpack.c.b16 %v1298, %v1295
    %v1335 = vpack.c.b16 %v1299, %v1296
    %v1336 = vpack.c.b16 %v1300, %v1297
    %v1337 = vpack.c.b16 %v1304, %v1301
    %v1338 = vpack.c.b16 %v1305, %v1302
    %v1339 = vpack.c.b16 %v1306, %v1303
    %v1340 = vpack.c.b16 %v1310, %v1307
    %v1341 = vpack.c.b16 %v1311, %v1308
    %v1342 = vpack.c.b16 %v1312, %v1309
    %v1343 = vpack.c.b16 %v1316, %v1313
    %v1344 = vpack.c.b16 %v1317, %v1314
    %v1345 = vpack.c.b16 %v1318, %v1315
    %v1346 = vpack.c.b16 %v1322, %v1319
    %v1347 = vpack.c.b16 %v1323, %v1320
    %v1348 = vpack.c.b16 %v1324, %v1321
    %1373 = vmatpush.bf16.msra.mxu0 %v1346
    %1374 = vmatpush.bf16.msra.mxu0 %v1343
    %1375 = vmatpush.bf16.msra.mxu0 %v1340
    %1376 = vmatpush.bf16.msra.mxu0 %v1337
    %1377 = vmatpush.bf16.msra.mxu0 %v1334
    %1378 = vmatpush.bf16.msra.mxu0 %v1331
    %1379 = vmatpush.bf16.msra.mxu0 %v1328
    %1380 = vmatpush.bf16.msra.mxu0 %v1325
    %1381 = vmatmul.bf16.gmra.mxu0 %v1208
    %v1382 = vpop.f32.mrf.mxu0
    %v1383 = vadd.f32 0.0, %v1382
    %v1384 = vpop.f32.mrf.mxu0
    %1385 = vdwg.mxu0
    %1386 = vmatpush.bf16.msra.mxu0 %v1347
    %1387 = vmatpush.bf16.msra.mxu0 %v1344
    %1388 = vmatpush.bf16.msra.mxu0 %v1341
    %1389 = vmatpush.bf16.msra.mxu0 %v1338
    %1390 = vmatpush.bf16.msra.mxu0 %v1335
    %1391 = vmatpush.bf16.msra.mxu0 %v1332
    %1392 = vmatpush.bf16.msra.mxu0 %v1329
    %1393 = vmatpush.bf16.msra.mxu0 %v1326
    %1394 = vmatmul.bf16.gmra.mxu0 %v1208
    %v1395 = vpop.f32.mrf.mxu0
    %v1396 = vadd.f32 0.0, %v1395
    %v1397 = vpop.f32.mrf.mxu0
    %1398 = vdwg.mxu0
    %1399 = vmatpush.bf16.msra.mxu0 %v1348
    %1400 = vmatpush.bf16.msra.mxu0 %v1345
    %1401 = vmatpush.bf16.msra.mxu0 %v1342
    %1402 = vmatpush.bf16.msra.mxu0 %v1339
    %1403 = vmatpush.bf16.msra.mxu0 %v1336
    %1404 = vmatpush.bf16.msra.mxu0 %v1333
    %1405 = vmatpush.bf16.msra.mxu0 %v1330
    %1406 = vmatpush.bf16.msra.mxu0 %v1327
    %1407 = vmatmul.bf16.gmra.mxu0 %v1208
    %v1408 = vpop.f32.mrf.mxu0
    %v1409 = vadd.f32 0.0, %v1408
    %v1410 = vpop.f32.mrf.mxu0
    %1411 = vdwg.mxu0
    %v1412 = vunpack.c.l.bf16 %v1212
    %v1413 = vadd.f32 %v1412, %v1383
    %v1414 = vmul.f32 %v1413, 0.5
    %v1415 = vtanh.pop %v1414
    %v1416 = vmul.f32 %v1415, 0.5
    %v1417 = vadd.f32 %v1416, 0.5
    %v1419 = vrot.slane %v1212, 1
    %v1421 = vunpack.c.l.bf16 %v1419
    %v1422 = vadd.f32 %v1421, %v1396
    %v1423 = vmul.f32 %v1422, 0.5
    %v1424 = vtanh.pop %v1423
    %v1425 = vmul.f32 %v1424, 0.5
    %v1426 = vadd.f32 %v1425, 0.5
    %v1427 = vld [vmem:[%s3] sm:$0x1]
    %v1429 = vperm.slane %v1427, 0
    %v1431 = vadd.f32 %v1409, %v1429
    %v1432 = vmul.f32 %v1417, %v1431
    %v1433 = vrot.slane %v1212, 2
    %v1435 = vunpack.c.l.bf16 %v1433
    %v1436 = vadd.f32 %v1435, %v1432
    %v1437 = vtanh.pop %v1436
    %v1438 = vsub.f32 1.0, %v1426
    %v1439 = vmul.f32 %v1438, %v1437
    %v1440 = vmul.f32 %v1426, %v1207
    %v1441 = vadd.f32 %v1439, %v1440
    %v1442 = vpack.c.bf16 %v1441, %v1441
    %s1443 = scalar_lea.vmem %s4, 5
    %1444 = vst [vmem:[%s1443] sm:$0x1] %v1442
    %s1445 = scalar_lea.vmem %s0, 18
    %v1446 = vld [vmem:[%s1445] sm:$0x7]
    %v1447 = vld [vmem:[#allocation3] sm:$0xff]
    %v1448 = vld [vmem:[#allocation3 + $0x8] sm:$0xf]
    %v1449 = vld [vmem:[#allocation3 + $0xc] sm:$0xff]
    %v1450 = vld [vmem:[#allocation3 + $0x14] sm:$0xf]
    %v1451 = vld [vmem:[#allocation3 + $0x18] sm:$0xff]
    %v1452 = vld [vmem:[#allocation3 + $0x20] sm:$0xf]
    %v1453 = vld [vmem:[#allocation3 + $0x24] sm:$0xff]
    %v1454 = vld [vmem:[#allocation3 + $0x2c] sm:$0xf]
    %v1455 = vld [vmem:[#allocation3 + $0x30] sm:$0xff]
    %v1456 = vld [vmem:[#allocation3 + $0x38] sm:$0xf]
    %v1457 = vld [vmem:[#allocation3 + $0x3c] sm:$0xff]
    %v1458 = vld [vmem:[#allocation3 + $0x44] sm:$0xf]
    %v1459 = vld [vmem:[#allocation3 + $0x48] sm:$0xff]
    %v1460 = vld [vmem:[#allocation3 + $0x50] sm:$0xf]
    %v1461 = vld [vmem:[#allocation3 + $0x54] sm:$0xff]
    %v1462 = vld [vmem:[#allocation3 + $0x5c] sm:$0xf]
    %v1463 = vld [vmem:[#allocation3 + $0x60] sm:$0xff]
    %v1464 = vld [vmem:[#allocation3 + $0x68] sm:$0xf]
    %v1465 = vld [vmem:[#allocation3 + $0x6c] sm:$0xff]
    %v1466 = vld [vmem:[#allocation3 + $0x74] sm:$0xf]
    %v1467 = vld [vmem:[#allocation3 + $0x78] sm:$0xff]
    %v1468 = vld [vmem:[#allocation3 + $0x80] sm:$0xf]
    %v1469 = vld [vmem:[#allocation3 + $0x84] sm:$0xff]
    %v1470 = vld [vmem:[#allocation3 + $0x8c] sm:$0xf]
    %v1471 = vld [vmem:[#allocation3 + $0x90] sm:$0xff]
    %v1472 = vld [vmem:[#allocation3 + $0x98] sm:$0xf]
    %v1473 = vld [vmem:[#allocation3 + $0x9c] sm:$0xff]
    %v1474 = vld [vmem:[#allocation3 + $0xa4] sm:$0xf]
    %v1475 = vld [vmem:[#allocation3 + $0xa8] sm:$0xff]
    %v1476 = vld [vmem:[#allocation3 + $0xb0] sm:$0xf]
    %v1477 = vld [vmem:[#allocation3 + $0xb4] sm:$0xff]
    %v1478 = vld [vmem:[#allocation3 + $0xbc] sm:$0xf]
    %v1511 = vunpack.c.l.b16 %v1447
    %v1512 = vunpack.c.h.b16 %v1447
    %v1513 = vunpack.c.l.b16 %v1448
    %v1514 = vunpack.c.l.b16 %v1449
    %v1515 = vunpack.c.h.b16 %v1449
    %v1516 = vunpack.c.l.b16 %v1450
    %v1517 = vunpack.c.l.b16 %v1451
    %v1518 = vunpack.c.h.b16 %v1451
    %v1519 = vunpack.c.l.b16 %v1452
    %v1520 = vunpack.c.l.b16 %v1453
    %v1521 = vunpack.c.h.b16 %v1453
    %v1522 = vunpack.c.l.b16 %v1454
    %v1523 = vunpack.c.l.b16 %v1455
    %v1524 = vunpack.c.h.b16 %v1455
    %v1525 = vunpack.c.l.b16 %v1456
    %v1526 = vunpack.c.l.b16 %v1457
    %v1527 = vunpack.c.h.b16 %v1457
    %v1528 = vunpack.c.l.b16 %v1458
    %v1529 = vunpack.c.l.b16 %v1459
    %v1530 = vunpack.c.h.b16 %v1459
    %v1531 = vunpack.c.l.b16 %v1460
    %v1532 = vunpack.c.l.b16 %v1461
    %v1533 = vunpack.c.h.b16 %v1461
    %v1534 = vunpack.c.l.b16 %v1462
    %v1535 = vunpack.c.l.b16 %v1463
    %v1536 = vunpack.c.h.b16 %v1463
    %v1537 = vunpack.c.l.b16 %v1464
    %v1538 = vunpack.c.l.b16 %v1465
    %v1539 = vunpack.c.h.b16 %v1465
    %v1540 = vunpack.c.l.b16 %v1466
    %v1541 = vunpack.c.l.b16 %v1467
    %v1542 = vunpack.c.h.b16 %v1467
    %v1543 = vunpack.c.l.b16 %v1468
    %v1544 = vunpack.c.l.b16 %v1469
    %v1545 = vunpack.c.h.b16 %v1469
    %v1546 = vunpack.c.l.b16 %v1470
    %v1547 = vunpack.c.l.b16 %v1471
    %v1548 = vunpack.c.h.b16 %v1471
    %v1549 = vunpack.c.l.b16 %v1472
    %v1550 = vunpack.c.l.b16 %v1473
    %v1551 = vunpack.c.h.b16 %v1473
    %v1552 = vunpack.c.l.b16 %v1474
    %v1553 = vunpack.c.l.b16 %v1475
    %v1554 = vunpack.c.h.b16 %v1475
    %v1555 = vunpack.c.l.b16 %v1476
    %v1556 = vunpack.c.l.b16 %v1477
    %v1557 = vunpack.c.h.b16 %v1477
    %v1558 = vunpack.c.l.b16 %v1478
    %v1559 = vpack.c.b16 %v1514, %v1511
    %v1560 = vpack.c.b16 %v1515, %v1512
    %v1561 = vpack.c.b16 %v1516, %v1513
    %v1562 = vpack.c.b16 %v1520, %v1517
    %v1563 = vpack.c.b16 %v1521, %v1518
    %v1564 = vpack.c.b16 %v1522, %v1519
    %v1565 = vpack.c.b16 %v1526, %v1523
    %v1566 = vpack.c.b16 %v1527, %v1524
    %v1567 = vpack.c.b16 %v1528, %v1525
    %v1568 = vpack.c.b16 %v1532, %v1529
    %v1569 = vpack.c.b16 %v1533, %v1530
    %v1570 = vpack.c.b16 %v1534, %v1531
    %v1571 = vpack.c.b16 %v1538, %v1535
    %v1572 = vpack.c.b16 %v1539, %v1536
    %v1573 = vpack.c.b16 %v1540, %v1537
    %v1574 = vpack.c.b16 %v1544, %v1541
    %v1575 = vpack.c.b16 %v1545, %v1542
    %v1576 = vpack.c.b16 %v1546, %v1543
    %v1577 = vpack.c.b16 %v1550, %v1547
    %v1578 = vpack.c.b16 %v1551, %v1548
    %v1579 = vpack.c.b16 %v1552, %v1549
    %v1580 = vpack.c.b16 %v1556, %v1553
    %v1581 = vpack.c.b16 %v1557, %v1554
    %v1582 = vpack.c.b16 %v1558, %v1555
    %1607 = vmatpush.bf16.msra.mxu0 %v1580
    %1608 = vmatpush.bf16.msra.mxu0 %v1577
    %1609 = vmatpush.bf16.msra.mxu0 %v1574
    %1610 = vmatpush.bf16.msra.mxu0 %v1571
    %1611 = vmatpush.bf16.msra.mxu0 %v1568
    %1612 = vmatpush.bf16.msra.mxu0 %v1565
    %1613 = vmatpush.bf16.msra.mxu0 %v1562
    %1614 = vmatpush.bf16.msra.mxu0 %v1559
    %1615 = vmatmul.bf16.gmra.mxu0 %v1442
    %v1616 = vpop.f32.mrf.mxu0
    %v1617 = vadd.f32 0.0, %v1616
    %v1618 = vpop.f32.mrf.mxu0
    %1619 = vdwg.mxu0
    %1620 = vmatpush.bf16.msra.mxu0 %v1581
    %1621 = vmatpush.bf16.msra.mxu0 %v1578
    %1622 = vmatpush.bf16.msra.mxu0 %v1575
    %1623 = vmatpush.bf16.msra.mxu0 %v1572
    %1624 = vmatpush.bf16.msra.mxu0 %v1569
    %1625 = vmatpush.bf16.msra.mxu0 %v1566
    %1626 = vmatpush.bf16.msra.mxu0 %v1563
    %1627 = vmatpush.bf16.msra.mxu0 %v1560
    %1628 = vmatmul.bf16.gmra.mxu0 %v1442
    %v1629 = vpop.f32.mrf.mxu0
    %v1630 = vadd.f32 0.0, %v1629
    %v1631 = vpop.f32.mrf.mxu0
    %1632 = vdwg.mxu0
    %1633 = vmatpush.bf16.msra.mxu0 %v1582
    %1634 = vmatpush.bf16.msra.mxu0 %v1579
    %1635 = vmatpush.bf16.msra.mxu0 %v1576
    %1636 = vmatpush.bf16.msra.mxu0 %v1573
    %1637 = vmatpush.bf16.msra.mxu0 %v1570
    %1638 = vmatpush.bf16.msra.mxu0 %v1567
    %1639 = vmatpush.bf16.msra.mxu0 %v1564
    %1640 = vmatpush.bf16.msra.mxu0 %v1561
    %1641 = vmatmul.bf16.gmra.mxu0 %v1442
    %v1642 = vpop.f32.mrf.mxu0
    %v1643 = vadd.f32 0.0, %v1642
    %v1644 = vpop.f32.mrf.mxu0
    %1645 = vdwg.mxu0
    %v1646 = vunpack.c.l.bf16 %v1446
    %v1647 = vadd.f32 %v1646, %v1617
    %v1648 = vmul.f32 %v1647, 0.5
    %v1649 = vtanh.pop %v1648
    %v1650 = vmul.f32 %v1649, 0.5
    %v1651 = vadd.f32 %v1650, 0.5
    %v1653 = vrot.slane %v1446, 1
    %v1655 = vunpack.c.l.bf16 %v1653
    %v1656 = vadd.f32 %v1655, %v1630
    %v1657 = vmul.f32 %v1656, 0.5
    %v1658 = vtanh.pop %v1657
    %v1659 = vmul.f32 %v1658, 0.5
    %v1660 = vadd.f32 %v1659, 0.5
    %v1661 = vld [vmem:[%s3] sm:$0x1]
    %v1663 = vperm.slane %v1661, 0
    %v1665 = vadd.f32 %v1643, %v1663
    %v1666 = vmul.f32 %v1651, %v1665
    %v1667 = vrot.slane %v1446, 2
    %v1669 = vunpack.c.l.bf16 %v1667
    %v1670 = vadd.f32 %v1669, %v1666
    %v1671 = vtanh.pop %v1670
    %v1672 = vsub.f32 1.0, %v1660
    %v1673 = vmul.f32 %v1672, %v1671
    %v1674 = vmul.f32 %v1660, %v1441
    %v1675 = vadd.f32 %v1673, %v1674
    %v1676 = vpack.c.bf16 %v1675, %v1675
    %s1677 = scalar_lea.vmem %s4, 6
    %1678 = vst [vmem:[%s1677] sm:$0x1] %v1676
    %s1679 = scalar_lea.vmem %s0, 21
    %v1680 = vld [vmem:[%s1679] sm:$0x7]
    %v1681 = vld [vmem:[#allocation3] sm:$0xff]
    %v1682 = vld [vmem:[#allocation3 + $0x8] sm:$0xf]
    %v1683 = vld [vmem:[#allocation3 + $0xc] sm:$0xff]
    %v1684 = vld [vmem:[#allocation3 + $0x14] sm:$0xf]
    %v1685 = vld [vmem:[#allocation3 + $0x18] sm:$0xff]
    %v1686 = vld [vmem:[#allocation3 + $0x20] sm:$0xf]
    %v1687 = vld [vmem:[#allocation3 + $0x24] sm:$0xff]
    %v1688 = vld [vmem:[#allocation3 + $0x2c] sm:$0xf]
    %v1689 = vld [vmem:[#allocation3 + $0x30] sm:$0xff]
    %v1690 = vld [vmem:[#allocation3 + $0x38] sm:$0xf]
    %v1691 = vld [vmem:[#allocation3 + $0x3c] sm:$0xff]
    %v1692 = vld [vmem:[#allocation3 + $0x44] sm:$0xf]
    %v1693 = vld [vmem:[#allocation3 + $0x48] sm:$0xff]
    %v1694 = vld [vmem:[#allocation3 + $0x50] sm:$0xf]
    %v1695 = vld [vmem:[#allocation3 + $0x54] sm:$0xff]
    %v1696 = vld [vmem:[#allocation3 + $0x5c] sm:$0xf]
    %v1697 = vld [vmem:[#allocation3 + $0x60] sm:$0xff]
    %v1698 = vld [vmem:[#allocation3 + $0x68] sm:$0xf]
    %v1699 = vld [vmem:[#allocation3 + $0x6c] sm:$0xff]
    %v1700 = vld [vmem:[#allocation3 + $0x74] sm:$0xf]
    %v1701 = vld [vmem:[#allocation3 + $0x78] sm:$0xff]
    %v1702 = vld [vmem:[#allocation3 + $0x80] sm:$0xf]
    %v1703 = vld [vmem:[#allocation3 + $0x84] sm:$0xff]
    %v1704 = vld [vmem:[#allocation3 + $0x8c] sm:$0xf]
    %v1705 = vld [vmem:[#allocation3 + $0x90] sm:$0xff]
    %v1706 = vld [vmem:[#allocation3 + $0x98] sm:$0xf]
    %v1707 = vld [vmem:[#allocation3 + $0x9c] sm:$0xff]
    %v1708 = vld [vmem:[#allocation3 + $0xa4] sm:$0xf]
    %v1709 = vld [vmem:[#allocation3 + $0xa8] sm:$0xff]
    %v1710 = vld [vmem:[#allocation3 + $0xb0] sm:$0xf]
    %v1711 = vld [vmem:[#allocation3 + $0xb4] sm:$0xff]
    %v1712 = vld [vmem:[#allocation3 + $0xbc] sm:$0xf]
    %v1745 = vunpack.c.l.b16 %v1681
    %v1746 = vunpack.c.h.b16 %v1681
    %v1747 = vunpack.c.l.b16 %v1682
    %v1748 = vunpack.c.l.b16 %v1683
    %v1749 = vunpack.c.h.b16 %v1683
    %v1750 = vunpack.c.l.b16 %v1684
    %v1751 = vunpack.c.l.b16 %v1685
    %v1752 = vunpack.c.h.b16 %v1685
    %v1753 = vunpack.c.l.b16 %v1686
    %v1754 = vunpack.c.l.b16 %v1687
    %v1755 = vunpack.c.h.b16 %v1687
    %v1756 = vunpack.c.l.b16 %v1688
    %v1757 = vunpack.c.l.b16 %v1689
    %v1758 = vunpack.c.h.b16 %v1689
    %v1759 = vunpack.c.l.b16 %v1690
    %v1760 = vunpack.c.l.b16 %v1691
    %v1761 = vunpack.c.h.b16 %v1691
    %v1762 = vunpack.c.l.b16 %v1692
    %v1763 = vunpack.c.l.b16 %v1693
    %v1764 = vunpack.c.h.b16 %v1693
    %v1765 = vunpack.c.l.b16 %v1694
    %v1766 = vunpack.c.l.b16 %v1695
    %v1767 = vunpack.c.h.b16 %v1695
    %v1768 = vunpack.c.l.b16 %v1696
    %v1769 = vunpack.c.l.b16 %v1697
    %v1770 = vunpack.c.h.b16 %v1697
    %v1771 = vunpack.c.l.b16 %v1698
    %v1772 = vunpack.c.l.b16 %v1699
    %v1773 = vunpack.c.h.b16 %v1699
    %v1774 = vunpack.c.l.b16 %v1700
    %v1775 = vunpack.c.l.b16 %v1701
    %v1776 = vunpack.c.h.b16 %v1701
    %v1777 = vunpack.c.l.b16 %v1702
    %v1778 = vunpack.c.l.b16 %v1703
    %v1779 = vunpack.c.h.b16 %v1703
    %v1780 = vunpack.c.l.b16 %v1704
    %v1781 = vunpack.c.l.b16 %v1705
    %v1782 = vunpack.c.h.b16 %v1705
    %v1783 = vunpack.c.l.b16 %v1706
    %v1784 = vunpack.c.l.b16 %v1707
    %v1785 = vunpack.c.h.b16 %v1707
    %v1786 = vunpack.c.l.b16 %v1708
    %v1787 = vunpack.c.l.b16 %v1709
    %v1788 = vunpack.c.h.b16 %v1709
    %v1789 = vunpack.c.l.b16 %v1710
    %v1790 = vunpack.c.l.b16 %v1711
    %v1791 = vunpack.c.h.b16 %v1711
    %v1792 = vunpack.c.l.b16 %v1712
    %v1793 = vpack.c.b16 %v1748, %v1745
    %v1794 = vpack.c.b16 %v1749, %v1746
    %v1795 = vpack.c.b16 %v1750, %v1747
    %v1796 = vpack.c.b16 %v1754, %v1751
    %v1797 = vpack.c.b16 %v1755, %v1752
    %v1798 = vpack.c.b16 %v1756, %v1753
    %v1799 = vpack.c.b16 %v1760, %v1757
    %v1800 = vpack.c.b16 %v1761, %v1758
    %v1801 = vpack.c.b16 %v1762, %v1759
    %v1802 = vpack.c.b16 %v1766, %v1763
    %v1803 = vpack.c.b16 %v1767, %v1764
    %v1804 = vpack.c.b16 %v1768, %v1765
    %v1805 = vpack.c.b16 %v1772, %v1769
    %v1806 = vpack.c.b16 %v1773, %v1770
    %v1807 = vpack.c.b16 %v1774, %v1771
    %v1808 = vpack.c.b16 %v1778, %v1775
    %v1809 = vpack.c.b16 %v1779, %v1776
    %v1810 = vpack.c.b16 %v1780, %v1777
    %v1811 = vpack.c.b16 %v1784, %v1781
    %v1812 = vpack.c.b16 %v1785, %v1782
    %v1813 = vpack.c.b16 %v1786, %v1783
    %v1814 = vpack.c.b16 %v1790, %v1787
    %v1815 = vpack.c.b16 %v1791, %v1788
    %v1816 = vpack.c.b16 %v1792, %v1789
    %1841 = vmatpush.bf16.msra.mxu0 %v1814
    %1842 = vmatpush.bf16.msra.mxu0 %v1811
    %1843 = vmatpush.bf16.msra.mxu0 %v1808
    %1844 = vmatpush.bf16.msra.mxu0 %v1805
    %1845 = vmatpush.bf16.msra.mxu0 %v1802
    %1846 = vmatpush.bf16.msra.mxu0 %v1799
    %1847 = vmatpush.bf16.msra.mxu0 %v1796
    %1848 = vmatpush.bf16.msra.mxu0 %v1793
    %1849 = vmatmul.bf16.gmra.mxu0 %v1676
    %v1850 = vpop.f32.mrf.mxu0
    %v1851 = vadd.f32 0.0, %v1850
    %v1852 = vpop.f32.mrf.mxu0
    %1853 = vdwg.mxu0
    %1854 = vmatpush.bf16.msra.mxu0 %v1815
    %1855 = vmatpush.bf16.msra.mxu0 %v1812
    %1856 = vmatpush.bf16.msra.mxu0 %v1809
    %1857 = vmatpush.bf16.msra.mxu0 %v1806
    %1858 = vmatpush.bf16.msra.mxu0 %v1803
    %1859 = vmatpush.bf16.msra.mxu0 %v1800
    %1860 = vmatpush.bf16.msra.mxu0 %v1797
    %1861 = vmatpush.bf16.msra.mxu0 %v1794
    %1862 = vmatmul.bf16.gmra.mxu0 %v1676
    %v1863 = vpop.f32.mrf.mxu0
    %v1864 = vadd.f32 0.0, %v1863
    %v1865 = vpop.f32.mrf.mxu0
    %1866 = vdwg.mxu0
    %1867 = vmatpush.bf16.msra.mxu0 %v1816
    %1868 = vmatpush.bf16.msra.mxu0 %v1813
    %1869 = vmatpush.bf16.msra.mxu0 %v1810
    %1870 = vmatpush.bf16.msra.mxu0 %v1807
    %1871 = vmatpush.bf16.msra.mxu0 %v1804
    %1872 = vmatpush.bf16.msra.mxu0 %v1801
    %1873 = vmatpush.bf16.msra.mxu0 %v1798
    %1874 = vmatpush.bf16.msra.mxu0 %v1795
    %1875 = vmatmul.bf16.gmra.mxu0 %v1676
    %v1876 = vpop.f32.mrf.mxu0
    %v1877 = vadd.f32 0.0, %v1876
    %v1878 = vpop.f32.mrf.mxu0
    %1879 = vdwg.mxu0
    %v1880 = vunpack.c.l.bf16 %v1680
    %v1881 = vadd.f32 %v1880, %v1851
    %v1882 = vmul.f32 %v1881, 0.5
    %v1883 = vtanh.pop %v1882
    %v1884 = vmul.f32 %v1883, 0.5
    %v1885 = vadd.f32 %v1884, 0.5
    %v1887 = vrot.slane %v1680, 1
    %v1889 = vunpack.c.l.bf16 %v1887
    %v1890 = vadd.f32 %v1889, %v1864
    %v1891 = vmul.f32 %v1890, 0.5
    %v1892 = vtanh.pop %v1891
    %v1893 = vmul.f32 %v1892, 0.5
    %v1894 = vadd.f32 %v1893, 0.5
    %v1895 = vld [vmem:[%s3] sm:$0x1]
    %v1897 = vperm.slane %v1895, 0
    %v1899 = vadd.f32 %v1877, %v1897
    %v1900 = vmul.f32 %v1885, %v1899
    %v1901 = vrot.slane %v1680, 2
    %v1903 = vunpack.c.l.bf16 %v1901
    %v1904 = vadd.f32 %v1903, %v1900
    %v1905 = vtanh.pop %v1904
    %v1906 = vsub.f32 1.0, %v1894
    %v1907 = vmul.f32 %v1906, %v1905
    %v1908 = vmul.f32 %v1894, %v1675
    %v1909 = vadd.f32 %v1907, %v1908
    %v1910 = vpack.c.bf16 %v1909, %v1909
    %s1911 = scalar_lea.vmem %s4, 7
    %1912 = vst [vmem:[%s1911] sm:$0x1] %v1910
    %1913 = vst [vmem:[#allocation2] sm:$0x3] %v1909
    // Predicated region
    $region26: #{recurrent_model_forward.6} parent=1 // pred_check
      %p1914 = pneg %p35
    $region27: #{recurrent_model_forward.6} parent=1 // pred_check_branch
      %1916 = sbr.rel (%p1914) target = $region29
    $region28: #{recurrent_model_forward.6} parent=1 // pred_region
      %1917 = vst [vmem:[%s5] sm:$0x3] %v1909
    $region29: #{recurrent_model_forward.6} parent=1 // pred_fallthru
      _
    // Predicated region
    $region30: #{recurrent_model_forward.6} parent=1 // pred_check
      _
    $region31: #{recurrent_model_forward.6} parent=1 // pred_check_branch
      %1919 = sbr.rel (0) target = $region33
    $region32: #{recurrent_model_forward.6} parent=1 // pred_region
      _
    $region33: #{recurrent_model_forward.6} parent=1 // pred_fallthru
      _
    // Predicated region
    $region34: #{recurrent_model_forward.6} parent=1 // pred_check
      _
    $region35: #{recurrent_model_forward.6} parent=1 // pred_check_branch
      %1921 = sbr.rel (0) target = $region37
    $region36: #{recurrent_model_forward.6} parent=1 // pred_region
      _
    $region37: #{recurrent_model_forward.6} parent=1 // pred_fallthru
      _
    // Predicated region
    $region38: #{recurrent_model_forward.6} parent=1 // pred_check
      _
    $region39: #{recurrent_model_forward.6} parent=1 // pred_check_branch
      %1923 = sbr.rel (0) target = $region41
    $region40: #{recurrent_model_forward.6} parent=1 // pred_region
      _
    $region41: #{recurrent_model_forward.6} parent=1 // pred_fallthru
      _
    // Predicated region
    $region42: #{recurrent_model_forward.6} parent=1 // pred_check
      _
    $region43: #{recurrent_model_forward.6} parent=1 // pred_check_branch
      %1925 = sbr.rel (0) target = $region45
    $region44: #{recurrent_model_forward.6} parent=1 // pred_region
      _
    $region45: #{recurrent_model_forward.6} parent=1 // pred_fallthru
      _
    %1926 = vsyncpa [#allocation4], 1

</llo_original>
